<compile_context>
chip_gen: v7x
topology: tpu7x:2x2x1
jax: 0.10.0
libtpu: 0.0.40
codegen_flags: <defaults>
</compile_context>

<pallas_src>
import math

import jax
import jax.numpy as jnp
from jax import lax
from jax.experimental import pallas as pl
from jax.experimental.pallas import tpu as pltpu

d_k = d_v = 32
d_model = 116
n_heads = 4
d_ff = 116
N_LAYERS = 2
LN_EPS = 1e-5

D_PAD = 128                      # lane-dense padded model / ffn dim
QKV_COLS = 3 * n_heads * d_k     # 384
N_VEC_ROWS = 16                  # packed per-layer vector rows (padded)


def _layer_norm_masked(x, gamma, beta, mask):
    """LayerNorm over the 116 valid lanes of a (rows, 128) activation.

    `mask` is 1.0 on lanes < d_model and 0.0 on pad lanes, so the statistics only
    see valid lanes (two-pass centered variance) and padded output lanes are
    exactly beta_pad == 0 regardless of upstream pad-lane content.
    """
    inv_n = 1.0 / d_model
    xm = x * mask
    mean = jnp.sum(xm, axis=-1, keepdims=True) * inv_n
    centered = (xm - mean) * mask
    var = jnp.sum(centered * centered, axis=-1, keepdims=True) * inv_n
    inv = lax.rsqrt(var + LN_EPS)
    return centered * inv * gamma + beta


def make_encoder_kernel(seq_len, bt):
    """Kernel closure over static seq_len / per-block batch count."""

    def encoder_kernel(x_ref, wqkv_ref, wrest_ref, vecs_ref, o_ref, xpad_ref, ctx_ref):
        # x_ref:    (bt*S, d_model)       f32   raw (unpadded) activation block
        # wqkv_ref: (L, 128, 384)         bf16  [W_Q/sqrt(dk) | W_K | W_V]
        # wrest_ref:(L, 128, 384)         bf16  [W_O | W1 | W2]
        # vecs_ref: (L, 16, 128)          f32   biases / LN params / lane mask
        # o_ref:    (bt*S, d_model)       f32
        # xpad_ref: (bt*S, 128)  f32 scratch  — lane-dense padded activation
        # ctx_ref:  (bt*S, 128)  f32 scratch  — assembled per-head contexts

        # Zero-pad the input into a lane-dense VMEM buffer (done every grid step so
        # it stays correct under "parallel" megacore sharding of the grid).
        xpad_ref[...] = jnp.zeros_like(xpad_ref)
        xpad_ref[:, :d_model] = x_ref[...]
        x = xpad_ref[...]                                  # (rows, 128) f32, pad lanes == 0

        for l in range(N_LAYERS):                          # statically unrolled
            wqkv = wqkv_ref[l]                             # (128, 384) bf16
            wrest = wrest_ref[l]                           # (128, 384) bf16
            vec = vecs_ref[l]                              # (16, 128)  f32

            bq, bk, bv, bo = vec[0:1], vec[1:2], vec[2:3], vec[3:4]
            ln1_g, ln1_b = vec[4:5], vec[5:6]
            b1, b2 = vec[6:7], vec[7:8]
            ln2_g, ln2_b = vec[8:9], vec[9:10]
            mask = vec[10:11]                              # 1.0 for lanes < d_model

            wo = wrest[:, 0:D_PAD]
            w1 = wrest[:, D_PAD:2 * D_PAD]
            w2 = wrest[:, 2 * D_PAD:3 * D_PAD]

            # ---- fused QKV projection: one (rows,128)@(128,384) bf16 matmul ----
            qkv = jnp.dot(x.astype(jnp.bfloat16), wqkv,
                          preferred_element_type=jnp.float32)        # (rows, 384) f32
            q = (qkv[:, 0:D_PAD] + bq).astype(jnp.bfloat16)          # scale folded into W_Q/b_q
            k = (qkv[:, D_PAD:2 * D_PAD] + bk).astype(jnp.bfloat16)
            v = (qkv[:, 2 * D_PAD:3 * D_PAD] + bv).astype(jnp.bfloat16)

            # ---- attention scores per (batch, head); softmax batched over all ----
            score_blocks = []
            for b in range(bt):
                r0 = b * seq_len
                for h in range(n_heads):
                    c0 = h * d_k
                    qh = q[r0:r0 + seq_len, c0:c0 + d_k]
                    kh = k[r0:r0 + seq_len, c0:c0 + d_k]
                    score_blocks.append(
                        lax.dot_general(qh, kh, (((1,), (1,)), ((), ())),
                                        preferred_element_type=jnp.float32))  # (S, S)
            scores = jnp.concatenate(score_blocks, axis=0)            # (bt*nh*S, S)
            scores = scores - jnp.max(scores, axis=-1, keepdims=True)
            p = jnp.exp(scores)
            p = p * pl.reciprocal(jnp.sum(p, axis=-1, keepdims=True), approx=True)
            p = p.astype(jnp.bfloat16)

            # ---- per-head context written into its 32-lane slot -> one W_O matmul ----
            for b in range(bt):
                r0 = b * seq_len
                for h in range(n_heads):
                    c0 = h * d_k
                    idx = (b * n_heads + h) * seq_len
                    pb = p[idx:idx + seq_len, :]                       # (S, S)  bf16
                    vh = v[r0:r0 + seq_len, c0:c0 + d_k]               # (S, 32) bf16
                    ctx_ref[r0:r0 + seq_len, c0:c0 + d_k] = jnp.dot(
                        pb, vh, preferred_element_type=jnp.float32)

            attn_out = jnp.dot(ctx_ref[...].astype(jnp.bfloat16), wo,
                               preferred_element_type=jnp.float32) + bo   # (rows, 128)

            y1 = _layer_norm_masked(attn_out + x, ln1_g, ln1_b, mask)

            # ---- position-wise FFN (Conv1d k=1 == Linear over D) ----
            h1 = jnp.dot(y1.astype(jnp.bfloat16), w1,
                         preferred_element_type=jnp.float32) + b1
            h1 = jnp.maximum(h1, 0.0)
            h2 = jnp.dot(h1.astype(jnp.bfloat16), w2,
                         preferred_element_type=jnp.float32) + b2

            x = _layer_norm_masked(h2 + y1, ln2_g, ln2_b, mask)

        o_ref[...] = x[:, :d_model]                                    # (rows, 116)

    return encoder_kernel


def pack_encoder_params(layer_params):
    """Pack per-layer params into 3 stacked, padded arrays (weights in bf16).

    1/sqrt(d_k) is folded into W_Q and b_q so scores need no in-kernel scaling.
    All padding is zero (load-bearing for the pad-lane invariant); a lane-mask row
    is packed alongside the vectors for masked LayerNorm statistics.
    """
    scale = 1.0 / math.sqrt(d_k)
    lane_mask = jnp.concatenate(
        [jnp.ones((1, d_model), jnp.float32),
         jnp.zeros((1, D_PAD - d_model), jnp.float32)], axis=1)

    wqkv_list, wrest_list, vecs_list = [], [], []
    for p in layer_params:
        def pad_rows(w):
            return jnp.pad(w, ((0, D_PAD - w.shape[0]), (0, 0)))

        def pad_cols(w):
            return jnp.pad(w, ((0, 0), (0, D_PAD - w.shape[1])))

        wqkv = jnp.concatenate(
            [pad_rows(p["wq"] * scale), pad_rows(p["wk"]), pad_rows(p["wv"])],
            axis=1)                                                    # (128, 384)
        wrest = jnp.concatenate(
            [pad_cols(p["wo"]),
             pad_cols(pad_rows(p["w1"])),
             pad_cols(pad_rows(p["w2"]))], axis=1)                     # (128, 384)

        def pad_vec(v):
            v = v.reshape(1, -1)
            return jnp.pad(v, ((0, 0), (0, D_PAD - v.shape[-1])))

        rows = [pad_vec(p["bq"] * scale), pad_vec(p["bk"]), pad_vec(p["bv"]), pad_vec(p["bo"]),
                pad_vec(p["ln1_g"]), pad_vec(p["ln1_b"]),
                pad_vec(p["b1"]), pad_vec(p["b2"]),
                pad_vec(p["ln2_g"]), pad_vec(p["ln2_b"]),
                lane_mask]
        vecs = jnp.concatenate(
            rows + [jnp.zeros((N_VEC_ROWS - len(rows), D_PAD), jnp.float32)], axis=0)

        wqkv_list.append(wqkv.astype(jnp.bfloat16))
        wrest_list.append(wrest.astype(jnp.bfloat16))
        vecs_list.append(vecs)

    return (jnp.stack(wqkv_list), jnp.stack(wrest_list), jnp.stack(vecs_list))


def _pick_block_batch(B, S):
    """Largest divisor of B whose flattened row count (bt*S) is a legal block
    second-to-last dim and stays VMEM-friendly; fills the MXU M dimension."""
    best = None
    for bt in range(1, B + 1):
        if B % bt:
            continue
        rows = bt * S
        if (rows % 8 == 0 or bt == B) and rows <= 1024:
            best = bt
    return best if best is not None else B


def encoder_forward_pallas(x, packed):
    """Eval-mode Encoder forward: both layers fused in one pallas_call."""
    wqkv, wrest, vecs = packed
    B, S, Dm = x.shape
    assert Dm == d_model
    L = wqkv.shape[0]

    bt = _pick_block_batch(B, S)
    rows = bt * S
    grid = (B // bt,)

    # Free (layout-preserving) reshape — no HBM pad/slice passes in the wrapper.
    x2 = x.reshape(B * S, d_model)
    BS = B * S

    flops = N_LAYERS * (2 * BS * D_PAD * QKV_COLS            # QKV projection
                        + 4 * B * n_heads * S * S * d_k      # scores + context
                        + 3 * 2 * BS * D_PAD * D_PAD)        # W_O, W1, W2
    transcendentals = N_LAYERS * B * n_heads * S * S
    bytes_accessed = int(x2.size * 4 + BS * d_model * 4
                         + wqkv.size * 2 + wrest.size * 2 + vecs.size * 4)

    out = pl.pallas_call(
        make_encoder_kernel(S, bt),
        out_shape=jax.ShapeDtypeStruct((BS, d_model), jnp.float32),
        grid_spec=pltpu.PrefetchScalarGridSpec(
            num_scalar_prefetch=0,
            grid=grid,
            in_specs=[
                pl.BlockSpec((rows, d_model), lambda i: (i, 0)),
                pl.BlockSpec((L, D_PAD, QKV_COLS), lambda i: (0, 0, 0)),
                pl.BlockSpec((L, D_PAD, QKV_COLS), lambda i: (0, 0, 0)),
                pl.BlockSpec((L, N_VEC_ROWS, D_PAD), lambda i: (0, 0, 0)),
            ],
            out_specs=pl.BlockSpec((rows, d_model), lambda i: (i, 0)),
            scratch_shapes=[pltpu.VMEM((rows, D_PAD), jnp.float32),   # padded activation
                            pltpu.VMEM((rows, D_PAD), jnp.float32)],  # assembled context
        ),
        compiler_params=pltpu.CompilerParams(dimension_semantics=("parallel",)),
        cost_estimate=pl.CostEstimate(flops=int(flops),
                                      transcendentals=int(transcendentals),
                                      bytes_accessed=bytes_accessed),
    )(x2, wqkv, wrest, vecs)

    return out.reshape(B, S, d_model), []


# ---------------------- pure-JAX reference (for checking) ----------------------
def _ref_ln(x, g, b):
    m = jnp.mean(x, axis=-1, keepdims=True)
    v = jnp.mean((x - m) ** 2, axis=-1, keepdims=True)
    return (x - m) * jax.lax.rsqrt(v + LN_EPS) * g + b


def _ref_layer(x, p):
    B, S, D = x.shape
    q = x @ p["wq"] + p["bq"]
    k = x @ p["wk"] + p["bk"]
    v = x @ p["wv"] + p["bv"]
    q = q.reshape(B, S, n_heads, d_k).transpose(0, 2, 1, 3)
    k = k.reshape(B, S, n_heads, d_k).transpose(0, 2, 1, 3)
    v = v.reshape(B, S, n_heads, d_v).transpose(0, 2, 1, 3)
    s = jnp.einsum("bhqd,bhkd->bhqk", q, k) / math.sqrt(d_k)
    a = jax.nn.softmax(s, axis=-1)
    ctx = jnp.einsum("bhqk,bhkd->bhqd", a, v).transpose(0, 2, 1, 3).reshape(B, S, n_heads * d_v)
    out = ctx @ p["wo"] + p["bo"]
    y1 = _ref_ln(out + x, p["ln1_g"], p["ln1_b"])
    h = jax.nn.relu(y1 @ p["w1"] + p["b1"])
    h = h @ p["w2"] + p["b2"]
    return _ref_ln(h + y1, p["ln2_g"], p["ln2_b"])


def make_layer_params(key):
    ks = jax.random.split(key, 12)

    def lin(k, fan_in, fan_out):
        bound = 1.0 / math.sqrt(fan_in)
        kw, kb = jax.random.split(k)
        w = jax.random.uniform(kw, (fan_in, fan_out), jnp.float32, -bound, bound)
        b = jax.random.uniform(kb, (1, fan_out), jnp.float32, -bound, bound)
        return w, b

    wq, bq = lin(ks[0], d_model, n_heads * d_k)
    wk, bk = lin(ks[1], d_model, n_heads * d_k)
    wv, bv = lin(ks[2], d_model, n_heads * d_v)
    wo, bo = lin(ks[3], n_heads * d_v, d_model)
    w1, b1 = lin(ks[4], d_model, d_ff)      # conv1 (kernel_size=1)
    w2, b2 = lin(ks[5], d_ff, d_model)      # conv2 (kernel_size=1)
    return dict(
        wq=wq, bq=bq, wk=wk, bk=bk, wv=wv, bv=bv, wo=wo, bo=bo,
        ln1_g=jnp.ones((1, d_model), jnp.float32), ln1_b=jnp.zeros((1, d_model), jnp.float32),
        w1=w1, b1=b1, w2=w2, b2=b2,
        ln2_g=jnp.ones((1, d_model), jnp.float32), ln2_b=jnp.zeros((1, d_model), jnp.float32),
    )


if __name__ == "__main__":
    B, S = 2, 8
    key = jax.random.PRNGKey(0)
    kx, k0, k1 = jax.random.split(key, 3)
    x = jax.random.normal(kx, (B, S, d_model), jnp.float32)
    layer_params = [make_layer_params(k0), make_layer_params(k1)]

    packed = pack_encoder_params(layer_params)
    y, attns = encoder_forward_pallas(x, packed)
    y = jax.block_until_ready(y)

    # f32 reference (bf16 MXU operands + approx reciprocal loosen the tolerance)
    y_ref = x
    for p in layer_params:
        y_ref = _ref_layer(y_ref, p)

    assert y.shape == (B, S, d_model)
    max_err = float(jnp.max(jnp.abs(y - y_ref)))
    assert jnp.allclose(y, y_ref, atol=5e-2, rtol=5e-2), max_err
    print("KERNEL_OK")
</pallas_src>

<mosaic_0001>
module attributes {stable_mosaic.version = 11 : i64} {
  func.func @encoder_kernel(%arg0: i32, %arg1: memref<16x116xf32, #tpu.memory_space<vmem>>, %arg2: memref<2x128x384xbf16, #tpu.memory_space<vmem>>, %arg3: memref<2x128x384xbf16, #tpu.memory_space<vmem>>, %arg4: memref<2x16x128xf32, #tpu.memory_space<vmem>>, %arg5: memref<16x116xf32, #tpu.memory_space<vmem>>, %arg6: memref<16x128xf32, #tpu.memory_space<vmem>>, %arg7: memref<16x128xf32, #tpu.memory_space<vmem>>) attributes {dimension_semantics = [#tpu.dimension_semantics<parallel>], iteration_bounds = array<i64: 1>, scalar_prefetch = 0 : i64, scratch_operands = 2 : i64, tpu.core_type = #tpu.core_type<tc>, window_params = [{transform_indices = @transform_0, window_bounds = array<i64: 16, 116>}, {pipeline_mode = #tpu.pipeline_mode<synchronous>, transform_indices = @transform_1, window_bounds = array<i64: 2, 128, 384>}, {pipeline_mode = #tpu.pipeline_mode<synchronous>, transform_indices = @transform_2, window_bounds = array<i64: 2, 128, 384>}, {pipeline_mode = #tpu.pipeline_mode<synchronous>, transform_indices = @transform_3, window_bounds = array<i64: 2, 16, 128>}, {transform_indices = @transform_4, window_bounds = array<i64: 16, 116>}]} {
    %cst = arith.constant 0.000000e+00 : f32
    %0 = vector.broadcast %cst : f32 to vector<16x128xf32>
    %c0 = arith.constant 0 : index
    %c0_0 = arith.constant 0 : index
    %1 = vector.load %arg6[%c0, %c0_0] : memref<16x128xf32, #tpu.memory_space<vmem>>, vector<16x128xf32>
    tpu.vector_store %arg6[%c0, %c0_0], %0 {strides = array<i32>} : memref<16x128xf32, #tpu.memory_space<vmem>>, vector<16x128xf32>,
    %c0_1 = arith.constant 0 : index
    %c0_2 = arith.constant 0 : index
    %2 = vector.load %arg1[%c0_1, %c0_2] : memref<16x116xf32, #tpu.memory_space<vmem>>, vector<16x116xf32>
    %c0_3 = arith.constant 0 : index
    %c0_4 = arith.constant 0 : index
    %3 = vector.load %arg6[%c0_3, %c0_4] : memref<16x128xf32, #tpu.memory_space<vmem>>, vector<16x116xf32>
    tpu.vector_store %arg6[%c0_3, %c0_4], %2 {strides = array<i32>} : memref<16x128xf32, #tpu.memory_space<vmem>>, vector<16x116xf32>,
    %c0_5 = arith.constant 0 : index
    %c0_6 = arith.constant 0 : index
    %4 = vector.load %arg6[%c0_5, %c0_6] : memref<16x128xf32, #tpu.memory_space<vmem>>, vector<16x128xf32>
    %c0_7 = arith.constant 0 : index
    %c0_8 = arith.constant 0 : index
    %c0_9 = arith.constant 0 : index
    %5 = vector.load %arg2[%c0_7, %c0_8, %c0_9] : memref<2x128x384xbf16, #tpu.memory_space<vmem>>, vector<1x128x384xbf16>
    %6 = vector.shape_cast %5 : vector<1x128x384xbf16> to vector<128x384xbf16>
    %c0_10 = arith.constant 0 : index
    %c0_11 = arith.constant 0 : index
    %c0_12 = arith.constant 0 : index
    %7 = vector.load %arg3[%c0_10, %c0_11, %c0_12] : memref<2x128x384xbf16, #tpu.memory_space<vmem>>, vector<1x128x384xbf16>
    %8 = vector.shape_cast %7 : vector<1x128x384xbf16> to vector<128x384xbf16>
    %c0_13 = arith.constant 0 : index
    %c0_14 = arith.constant 0 : index
    %c0_15 = arith.constant 0 : index
    %9 = vector.load %arg4[%c0_13, %c0_14, %c0_15] : memref<2x16x128xf32, #tpu.memory_space<vmem>>, vector<1x16x128xf32>
    %10 = vector.shape_cast %9 : vector<1x16x128xf32> to vector<16x128xf32>
    %11 = vector.extract_strided_slice %10 {offsets = [0, 0], sizes = [1, 128], strides = [1, 1]} : vector<16x128xf32> to vector<1x128xf32>
    %12 = vector.extract_strided_slice %10 {offsets = [1, 0], sizes = [1, 128], strides = [1, 1]} : vector<16x128xf32> to vector<1x128xf32>
    %13 = vector.extract_strided_slice %10 {offsets = [2, 0], sizes = [1, 128], strides = [1, 1]} : vector<16x128xf32> to vector<1x128xf32>
    %14 = vector.extract_strided_slice %10 {offsets = [3, 0], sizes = [1, 128], strides = [1, 1]} : vector<16x128xf32> to vector<1x128xf32>
    %15 = vector.extract_strided_slice %10 {offsets = [4, 0], sizes = [1, 128], strides = [1, 1]} : vector<16x128xf32> to vector<1x128xf32>
    %16 = vector.extract_strided_slice %10 {offsets = [5, 0], sizes = [1, 128], strides = [1, 1]} : vector<16x128xf32> to vector<1x128xf32>
    %17 = vector.extract_strided_slice %10 {offsets = [6, 0], sizes = [1, 128], strides = [1, 1]} : vector<16x128xf32> to vector<1x128xf32>
    %18 = vector.extract_strided_slice %10 {offsets = [7, 0], sizes = [1, 128], strides = [1, 1]} : vector<16x128xf32> to vector<1x128xf32>
    %19 = vector.extract_strided_slice %10 {offsets = [8, 0], sizes = [1, 128], strides = [1, 1]} : vector<16x128xf32> to vector<1x128xf32>
    %20 = vector.extract_strided_slice %10 {offsets = [9, 0], sizes = [1, 128], strides = [1, 1]} : vector<16x128xf32> to vector<1x128xf32>
    %21 = vector.extract_strided_slice %10 {offsets = [10, 0], sizes = [1, 128], strides = [1, 1]} : vector<16x128xf32> to vector<1x128xf32>
    %22 = vector.extract_strided_slice %8 {offsets = [0, 0], sizes = [128, 128], strides = [1, 1]} : vector<128x384xbf16> to vector<128x128xbf16>
    %23 = vector.extract_strided_slice %8 {offsets = [0, 128], sizes = [128, 128], strides = [1, 1]} : vector<128x384xbf16> to vector<128x128xbf16>
    %24 = vector.extract_strided_slice %8 {offsets = [0, 256], sizes = [128, 128], strides = [1, 1]} : vector<128x384xbf16> to vector<128x128xbf16>
    %25 = arith.truncf %4 : vector<16x128xf32> to vector<16x128xbf16>
    %cst_16 = arith.constant dense<0.000000e+00> : vector<16x384xf32>
    %26 = tpu.matmul %25, %6, %cst_16 {dimension_numbers = #tpu.dot_dimension_numbers<[1], [0], [0], [1], [0, 0, 1, 1], [], []>} : vector<16x128xbf16>, vector<128x384xbf16>, vector<16x384xf32> -> vector<16x384xf32>
    %27 = vector.extract_strided_slice %26 {offsets = [0, 0], sizes = [16, 128], strides = [1, 1]} : vector<16x384xf32> to vector<16x128xf32>
    %28 = vector.broadcast %11 : vector<1x128xf32> to vector<16x128xf32>
    %29 = arith.addf %27, %28 : vector<16x128xf32>
    %30 = arith.truncf %29 : vector<16x128xf32> to vector<16x128xbf16>
    %31 = vector.extract_strided_slice %26 {offsets = [0, 128], sizes = [16, 128], strides = [1, 1]} : vector<16x384xf32> to vector<16x128xf32>
    %32 = vector.broadcast %12 : vector<1x128xf32> to vector<16x128xf32>
    %33 = arith.addf %31, %32 : vector<16x128xf32>
    %34 = arith.truncf %33 : vector<16x128xf32> to vector<16x128xbf16>
    %35 = vector.extract_strided_slice %26 {offsets = [0, 256], sizes = [16, 128], strides = [1, 1]} : vector<16x384xf32> to vector<16x128xf32>
    %36 = vector.broadcast %13 : vector<1x128xf32> to vector<16x128xf32>
    %37 = arith.addf %35, %36 : vector<16x128xf32>
    %38 = arith.truncf %37 : vector<16x128xf32> to vector<16x128xbf16>
    %39 = vector.extract_strided_slice %30 {offsets = [0, 0], sizes = [8, 32], strides = [1, 1]} : vector<16x128xbf16> to vector<8x32xbf16>
    %40 = vector.extract_strided_slice %34 {offsets = [0, 0], sizes = [8, 32], strides = [1, 1]} : vector<16x128xbf16> to vector<8x32xbf16>
    %cst_17 = arith.constant dense<0.000000e+00> : vector<8x8xf32>
    %41 = tpu.matmul %39, %40, %cst_17 {dimension_numbers = #tpu.dot_dimension_numbers<[1], [1], [0], [0], [0, 0, 1, 0], [], []>} : vector<8x32xbf16>, vector<8x32xbf16>, vector<8x8xf32> -> vector<8x8xf32>
    %42 = vector.extract_strided_slice %30 {offsets = [0, 32], sizes = [8, 32], strides = [1, 1]} : vector<16x128xbf16> to vector<8x32xbf16>
    %43 = vector.extract_strided_slice %34 {offsets = [0, 32], sizes = [8, 32], strides = [1, 1]} : vector<16x128xbf16> to vector<8x32xbf16>
    %cst_18 = arith.constant dense<0.000000e+00> : vector<8x8xf32>
    %44 = tpu.matmul %42, %43, %cst_18 {dimension_numbers = #tpu.dot_dimension_numbers<[1], [1], [0], [0], [0, 0, 1, 0], [], []>} : vector<8x32xbf16>, vector<8x32xbf16>, vector<8x8xf32> -> vector<8x8xf32>
    %45 = vector.extract_strided_slice %30 {offsets = [0, 64], sizes = [8, 32], strides = [1, 1]} : vector<16x128xbf16> to vector<8x32xbf16>
    %46 = vector.extract_strided_slice %34 {offsets = [0, 64], sizes = [8, 32], strides = [1, 1]} : vector<16x128xbf16> to vector<8x32xbf16>
    %cst_19 = arith.constant dense<0.000000e+00> : vector<8x8xf32>
    %47 = tpu.matmul %45, %46, %cst_19 {dimension_numbers = #tpu.dot_dimension_numbers<[1], [1], [0], [0], [0, 0, 1, 0], [], []>} : vector<8x32xbf16>, vector<8x32xbf16>, vector<8x8xf32> -> vector<8x8xf32>
    %48 = vector.extract_strided_slice %30 {offsets = [0, 96], sizes = [8, 32], strides = [1, 1]} : vector<16x128xbf16> to vector<8x32xbf16>
    %49 = vector.extract_strided_slice %34 {offsets = [0, 96], sizes = [8, 32], strides = [1, 1]} : vector<16x128xbf16> to vector<8x32xbf16>
    %cst_20 = arith.constant dense<0.000000e+00> : vector<8x8xf32>
    %50 = tpu.matmul %48, %49, %cst_20 {dimension_numbers = #tpu.dot_dimension_numbers<[1], [1], [0], [0], [0, 0, 1, 0], [], []>} : vector<8x32xbf16>, vector<8x32xbf16>, vector<8x8xf32> -> vector<8x8xf32>
    %51 = vector.extract_strided_slice %30 {offsets = [8, 0], sizes = [8, 32], strides = [1, 1]} : vector<16x128xbf16> to vector<8x32xbf16>
    %52 = vector.extract_strided_slice %34 {offsets = [8, 0], sizes = [8, 32], strides = [1, 1]} : vector<16x128xbf16> to vector<8x32xbf16>
    %cst_21 = arith.constant dense<0.000000e+00> : vector<8x8xf32>
    %53 = tpu.matmul %51, %52, %cst_21 {dimension_numbers = #tpu.dot_dimension_numbers<[1], [1], [0], [0], [0, 0, 1, 0], [], []>} : vector<8x32xbf16>, vector<8x32xbf16>, vector<8x8xf32> -> vector<8x8xf32>
    %54 = vector.extract_strided_slice %30 {offsets = [8, 32], sizes = [8, 32], strides = [1, 1]} : vector<16x128xbf16> to vector<8x32xbf16>
    %55 = vector.extract_strided_slice %34 {offsets = [8, 32], sizes = [8, 32], strides = [1, 1]} : vector<16x128xbf16> to vector<8x32xbf16>
    %cst_22 = arith.constant dense<0.000000e+00> : vector<8x8xf32>
    %56 = tpu.matmul %54, %55, %cst_22 {dimension_numbers = #tpu.dot_dimension_numbers<[1], [1], [0], [0], [0, 0, 1, 0], [], []>} : vector<8x32xbf16>, vector<8x32xbf16>, vector<8x8xf32> -> vector<8x8xf32>
    %57 = vector.extract_strided_slice %30 {offsets = [8, 64], sizes = [8, 32], strides = [1, 1]} : vector<16x128xbf16> to vector<8x32xbf16>
    %58 = vector.extract_strided_slice %34 {offsets = [8, 64], sizes = [8, 32], strides = [1, 1]} : vector<16x128xbf16> to vector<8x32xbf16>
    %cst_23 = arith.constant dense<0.000000e+00> : vector<8x8xf32>
    %59 = tpu.matmul %57, %58, %cst_23 {dimension_numbers = #tpu.dot_dimension_numbers<[1], [1], [0], [0], [0, 0, 1, 0], [], []>} : vector<8x32xbf16>, vector<8x32xbf16>, vector<8x8xf32> -> vector<8x8xf32>
    %60 = vector.extract_strided_slice %30 {offsets = [8, 96], sizes = [8, 32], strides = [1, 1]} : vector<16x128xbf16> to vector<8x32xbf16>
    %61 = vector.extract_strided_slice %34 {offsets = [8, 96], sizes = [8, 32], strides = [1, 1]} : vector<16x128xbf16> to vector<8x32xbf16>
    %cst_24 = arith.constant dense<0.000000e+00> : vector<8x8xf32>
    %62 = tpu.matmul %60, %61, %cst_24 {dimension_numbers = #tpu.dot_dimension_numbers<[1], [1], [0], [0], [0, 0, 1, 0], [], []>} : vector<8x32xbf16>, vector<8x32xbf16>, vector<8x8xf32> -> vector<8x8xf32>
    %63 = tpu.concatenate %41, %44, %47, %50, %53, %56, %59, %62 in 0 : vector<8x8xf32>, vector<8x8xf32>, vector<8x8xf32>, vector<8x8xf32>, vector<8x8xf32>, vector<8x8xf32>, vector<8x8xf32>, vector<8x8xf32> -> vector<64x8xf32>
    %cst_25 = arith.constant dense<0xFF800000> : vector<64xf32>
    %64 = vector.multi_reduction <maximumf>, %63, %cst_25 [1] : vector<64x8xf32> to vector<64xf32>
    %65 = vector.shape_cast %64 : vector<64xf32> to vector<64x1xf32>
    %66 = vector.broadcast %65 : vector<64x1xf32> to vector<64x8xf32>
    %67 = arith.subf %63, %66 : vector<64x8xf32>
    %68 = math.exp %67 : vector<64x8xf32>
    %cst_26 = arith.constant dense<0.000000e+00> : vector<64xf32>
    %69 = vector.multi_reduction <add>, %68, %cst_26 [1] : vector<64x8xf32> to vector<64xf32>
    %70 = vector.shape_cast %69 : vector<64xf32> to vector<64x1xf32>
    %71 = tpu.reciprocal %70 {approx = true} : vector<64x1xf32> -> vector<64x1xf32>
    %72 = vector.broadcast %71 : vector<64x1xf32> to vector<64x8xf32>
    %73 = arith.mulf %68, %72 : vector<64x8xf32>
    %74 = arith.truncf %73 : vector<64x8xf32> to vector<64x8xbf16>
    %75 = vector.extract_strided_slice %74 {offsets = [0, 0], sizes = [8, 8], strides = [1, 1]} : vector<64x8xbf16> to vector<8x8xbf16>
    %76 = vector.extract_strided_slice %38 {offsets = [0, 0], sizes = [8, 32], strides = [1, 1]} : vector<16x128xbf16> to vector<8x32xbf16>
    %cst_27 = arith.constant dense<0.000000e+00> : vector<8x32xf32>
    %77 = tpu.matmul %75, %76, %cst_27 {dimension_numbers = #tpu.dot_dimension_numbers<[1], [0], [0], [1], [0, 0, 1, 1], [], []>} : vector<8x8xbf16>, vector<8x32xbf16>, vector<8x32xf32> -> vector<8x32xf32>
    %c0_28 = arith.constant 0 : index
    %c0_29 = arith.constant 0 : index
    %78 = vector.load %arg7[%c0_28, %c0_29] : memref<16x128xf32, #tpu.memory_space<vmem>>, vector<8x32xf32>
    tpu.vector_store %arg7[%c0_28, %c0_29], %77 {strides = array<i32>} : memref<16x128xf32, #tpu.memory_space<vmem>>, vector<8x32xf32>,
    %79 = vector.extract_strided_slice %74 {offsets = [8, 0], sizes = [8, 8], strides = [1, 1]} : vector<64x8xbf16> to vector<8x8xbf16>
    %80 = vector.extract_strided_slice %38 {offsets = [0, 32], sizes = [8, 32], strides = [1, 1]} : vector<16x128xbf16> to vector<8x32xbf16>
    %cst_30 = arith.constant dense<0.000000e+00> : vector<8x32xf32>
    %81 = tpu.matmul %79, %80, %cst_30 {dimension_numbers = #tpu.dot_dimension_numbers<[1], [0], [0], [1], [0, 0, 1, 1], [], []>} : vector<8x8xbf16>, vector<8x32xbf16>, vector<8x32xf32> -> vector<8x32xf32>
    %c0_31 = arith.constant 0 : index
    %c32 = arith.constant 32 : index
    %82 = vector.load %arg7[%c0_31, %c32] : memref<16x128xf32, #tpu.memory_space<vmem>>, vector<8x32xf32>
    tpu.vector_store %arg7[%c0_31, %c32], %81 {strides = array<i32>} : memref<16x128xf32, #tpu.memory_space<vmem>>, vector<8x32xf32>,
    %83 = vector.extract_strided_slice %74 {offsets = [16, 0], sizes = [8, 8], strides = [1, 1]} : vector<64x8xbf16> to vector<8x8xbf16>
    %84 = vector.extract_strided_slice %38 {offsets = [0, 64], sizes = [8, 32], strides = [1, 1]} : vector<16x128xbf16> to vector<8x32xbf16>
    %cst_32 = arith.constant dense<0.000000e+00> : vector<8x32xf32>
    %85 = tpu.matmul %83, %84, %cst_32 {dimension_numbers = #tpu.dot_dimension_numbers<[1], [0], [0], [1], [0, 0, 1, 1], [], []>} : vector<8x8xbf16>, vector<8x32xbf16>, vector<8x32xf32> -> vector<8x32xf32>
    %c0_33 = arith.constant 0 : index
    %c64 = arith.constant 64 : index
    %86 = vector.load %arg7[%c0_33, %c64] : memref<16x128xf32, #tpu.memory_space<vmem>>, vector<8x32xf32>
    tpu.vector_store %arg7[%c0_33, %c64], %85 {strides = array<i32>} : memref<16x128xf32, #tpu.memory_space<vmem>>, vector<8x32xf32>,
    %87 = vector.extract_strided_slice %74 {offsets = [24, 0], sizes = [8, 8], strides = [1, 1]} : vector<64x8xbf16> to vector<8x8xbf16>
    %88 = vector.extract_strided_slice %38 {offsets = [0, 96], sizes = [8, 32], strides = [1, 1]} : vector<16x128xbf16> to vector<8x32xbf16>
    %cst_34 = arith.constant dense<0.000000e+00> : vector<8x32xf32>
    %89 = tpu.matmul %87, %88, %cst_34 {dimension_numbers = #tpu.dot_dimension_numbers<[1], [0], [0], [1], [0, 0, 1, 1], [], []>} : vector<8x8xbf16>, vector<8x32xbf16>, vector<8x32xf32> -> vector<8x32xf32>
    %c0_35 = arith.constant 0 : index
    %c96 = arith.constant 96 : index
    %90 = vector.load %arg7[%c0_35, %c96] : memref<16x128xf32, #tpu.memory_space<vmem>>, vector<8x32xf32>
    tpu.vector_store %arg7[%c0_35, %c96], %89 {strides = array<i32>} : memref<16x128xf32, #tpu.memory_space<vmem>>, vector<8x32xf32>,
    %91 = vector.extract_strided_slice %74 {offsets = [32, 0], sizes = [8, 8], strides = [1, 1]} : vector<64x8xbf16> to vector<8x8xbf16>
    %92 = vector.extract_strided_slice %38 {offsets = [8, 0], sizes = [8, 32], strides = [1, 1]} : vector<16x128xbf16> to vector<8x32xbf16>
    %cst_36 = arith.constant dense<0.000000e+00> : vector<8x32xf32>
    %93 = tpu.matmul %91, %92, %cst_36 {dimension_numbers = #tpu.dot_dimension_numbers<[1], [0], [0], [1], [0, 0, 1, 1], [], []>} : vector<8x8xbf16>, vector<8x32xbf16>, vector<8x32xf32> -> vector<8x32xf32>
    %c8 = arith.constant 8 : index
    %c0_37 = arith.constant 0 : index
    %94 = vector.load %arg7[%c8, %c0_37] : memref<16x128xf32, #tpu.memory_space<vmem>>, vector<8x32xf32>
    tpu.vector_store %arg7[%c8, %c0_37], %93 {strides = array<i32>} : memref<16x128xf32, #tpu.memory_space<vmem>>, vector<8x32xf32>,
    %95 = vector.extract_strided_slice %74 {offsets = [40, 0], sizes = [8, 8], strides = [1, 1]} : vector<64x8xbf16> to vector<8x8xbf16>
    %96 = vector.extract_strided_slice %38 {offsets = [8, 32], sizes = [8, 32], strides = [1, 1]} : vector<16x128xbf16> to vector<8x32xbf16>
    %cst_38 = arith.constant dense<0.000000e+00> : vector<8x32xf32>
    %97 = tpu.matmul %95, %96, %cst_38 {dimension_numbers = #tpu.dot_dimension_numbers<[1], [0], [0], [1], [0, 0, 1, 1], [], []>} : vector<8x8xbf16>, vector<8x32xbf16>, vector<8x32xf32> -> vector<8x32xf32>
    %c8_39 = arith.constant 8 : index
    %c32_40 = arith.constant 32 : index
    %98 = vector.load %arg7[%c8_39, %c32_40] : memref<16x128xf32, #tpu.memory_space<vmem>>, vector<8x32xf32>
    tpu.vector_store %arg7[%c8_39, %c32_40], %97 {strides = array<i32>} : memref<16x128xf32, #tpu.memory_space<vmem>>, vector<8x32xf32>,
    %99 = vector.extract_strided_slice %74 {offsets = [48, 0], sizes = [8, 8], strides = [1, 1]} : vector<64x8xbf16> to vector<8x8xbf16>
    %100 = vector.extract_strided_slice %38 {offsets = [8, 64], sizes = [8, 32], strides = [1, 1]} : vector<16x128xbf16> to vector<8x32xbf16>
    %cst_41 = arith.constant dense<0.000000e+00> : vector<8x32xf32>
    %101 = tpu.matmul %99, %100, %cst_41 {dimension_numbers = #tpu.dot_dimension_numbers<[1], [0], [0], [1], [0, 0, 1, 1], [], []>} : vector<8x8xbf16>, vector<8x32xbf16>, vector<8x32xf32> -> vector<8x32xf32>
    %c8_42 = arith.constant 8 : index
    %c64_43 = arith.constant 64 : index
    %102 = vector.load %arg7[%c8_42, %c64_43] : memref<16x128xf32, #tpu.memory_space<vmem>>, vector<8x32xf32>
    tpu.vector_store %arg7[%c8_42, %c64_43], %101 {strides = array<i32>} : memref<16x128xf32, #tpu.memory_space<vmem>>, vector<8x32xf32>,
    %103 = vector.extract_strided_slice %74 {offsets = [56, 0], sizes = [8, 8], strides = [1, 1]} : vector<64x8xbf16> to vector<8x8xbf16>
    %104 = vector.extract_strided_slice %38 {offsets = [8, 96], sizes = [8, 32], strides = [1, 1]} : vector<16x128xbf16> to vector<8x32xbf16>
    %cst_44 = arith.constant dense<0.000000e+00> : vector<8x32xf32>
    %105 = tpu.matmul %103, %104, %cst_44 {dimension_numbers = #tpu.dot_dimension_numbers<[1], [0], [0], [1], [0, 0, 1, 1], [], []>} : vector<8x8xbf16>, vector<8x32xbf16>, vector<8x32xf32> -> vector<8x32xf32>
    %c8_45 = arith.constant 8 : index
    %c96_46 = arith.constant 96 : index
    %106 = vector.load %arg7[%c8_45, %c96_46] : memref<16x128xf32, #tpu.memory_space<vmem>>, vector<8x32xf32>
    tpu.vector_store %arg7[%c8_45, %c96_46], %105 {strides = array<i32>} : memref<16x128xf32, #tpu.memory_space<vmem>>, vector<8x32xf32>,
    %c0_47 = arith.constant 0 : index
    %c0_48 = arith.constant 0 : index
    %107 = vector.load %arg7[%c0_47, %c0_48] : memref<16x128xf32, #tpu.memory_space<vmem>>, vector<16x128xf32>
    %108 = arith.truncf %107 : vector<16x128xf32> to vector<16x128xbf16>
    %cst_49 = arith.constant dense<0.000000e+00> : vector<16x128xf32>
    %109 = tpu.matmul %108, %22, %cst_49 {dimension_numbers = #tpu.dot_dimension_numbers<[1], [0], [0], [1], [0, 0, 1, 1], [], []>} : vector<16x128xbf16>, vector<128x128xbf16>, vector<16x128xf32> -> vector<16x128xf32>
    %110 = vector.broadcast %14 : vector<1x128xf32> to vector<16x128xf32>
    %111 = arith.addf %109, %110 : vector<16x128xf32>
    %112 = arith.addf %111, %4 : vector<16x128xf32>
    %113 = vector.broadcast %21 : vector<1x128xf32> to vector<16x128xf32>
    %114 = arith.mulf %112, %113 : vector<16x128xf32>
    %cst_50 = arith.constant dense<0.000000e+00> : vector<16xf32>
    %115 = vector.multi_reduction <add>, %114, %cst_50 [1] : vector<16x128xf32> to vector<16xf32>
    %116 = vector.shape_cast %115 : vector<16xf32> to vector<16x1xf32>
    %cst_51 = arith.constant 8.620690e-03 : f32
    %117 = vector.broadcast %cst_51 : f32 to vector<16x1xf32>
    %118 = arith.mulf %116, %117 : vector<16x1xf32>
    %119 = vector.broadcast %118 : vector<16x1xf32> to vector<16x128xf32>
    %120 = arith.subf %114, %119 : vector<16x128xf32>
    %121 = vector.broadcast %21 : vector<1x128xf32> to vector<16x128xf32>
    %122 = arith.mulf %120, %121 : vector<16x128xf32>
    %123 = arith.mulf %122, %122 : vector<16x128xf32>
    %cst_52 = arith.constant dense<0.000000e+00> : vector<16xf32>
    %124 = vector.multi_reduction <add>, %123, %cst_52 [1] : vector<16x128xf32> to vector<16xf32>
    %125 = vector.shape_cast %124 : vector<16xf32> to vector<16x1xf32>
    %cst_53 = arith.constant 8.620690e-03 : f32
    %126 = vector.broadcast %cst_53 : f32 to vector<16x1xf32>
    %127 = arith.mulf %125, %126 : vector<16x1xf32>
    %cst_54 = arith.constant 9.99999974E-6 : f32
    %128 = vector.broadcast %cst_54 : f32 to vector<16x1xf32>
    %129 = arith.addf %127, %128 : vector<16x1xf32>
    %130 = math.rsqrt %129 : vector<16x1xf32>
    %131 = vector.broadcast %130 : vector<16x1xf32> to vector<16x128xf32>
    %132 = arith.mulf %122, %131 : vector<16x128xf32>
    %133 = vector.broadcast %15 : vector<1x128xf32> to vector<16x128xf32>
    %134 = arith.mulf %132, %133 : vector<16x128xf32>
    %135 = vector.broadcast %16 : vector<1x128xf32> to vector<16x128xf32>
    %136 = arith.addf %134, %135 : vector<16x128xf32>
    %137 = arith.truncf %136 : vector<16x128xf32> to vector<16x128xbf16>
    %cst_55 = arith.constant dense<0.000000e+00> : vector<16x128xf32>
    %138 = tpu.matmul %137, %23, %cst_55 {dimension_numbers = #tpu.dot_dimension_numbers<[1], [0], [0], [1], [0, 0, 1, 1], [], []>} : vector<16x128xbf16>, vector<128x128xbf16>, vector<16x128xf32> -> vector<16x128xf32>
    %139 = vector.broadcast %17 : vector<1x128xf32> to vector<16x128xf32>
    %140 = arith.addf %138, %139 : vector<16x128xf32>
    %cst_56 = arith.constant 0.000000e+00 : f32
    %141 = vector.broadcast %cst_56 : f32 to vector<16x128xf32>
    %142 = arith.maximumf %140, %141 : vector<16x128xf32>
    %143 = arith.truncf %142 : vector<16x128xf32> to vector<16x128xbf16>
    %cst_57 = arith.constant dense<0.000000e+00> : vector<16x128xf32>
    %144 = tpu.matmul %143, %24, %cst_57 {dimension_numbers = #tpu.dot_dimension_numbers<[1], [0], [0], [1], [0, 0, 1, 1], [], []>} : vector<16x128xbf16>, vector<128x128xbf16>, vector<16x128xf32> -> vector<16x128xf32>
    %145 = vector.broadcast %18 : vector<1x128xf32> to vector<16x128xf32>
    %146 = arith.addf %144, %145 : vector<16x128xf32>
    %147 = arith.addf %146, %136 : vector<16x128xf32>
    %148 = vector.broadcast %21 : vector<1x128xf32> to vector<16x128xf32>
    %149 = arith.mulf %147, %148 : vector<16x128xf32>
    %cst_58 = arith.constant dense<0.000000e+00> : vector<16xf32>
    %150 = vector.multi_reduction <add>, %149, %cst_58 [1] : vector<16x128xf32> to vector<16xf32>
    %151 = vector.shape_cast %150 : vector<16xf32> to vector<16x1xf32>
    %cst_59 = arith.constant 8.620690e-03 : f32
    %152 = vector.broadcast %cst_59 : f32 to vector<16x1xf32>
    %153 = arith.mulf %151, %152 : vector<16x1xf32>
    %154 = vector.broadcast %153 : vector<16x1xf32> to vector<16x128xf32>
    %155 = arith.subf %149, %154 : vector<16x128xf32>
    %156 = vector.broadcast %21 : vector<1x128xf32> to vector<16x128xf32>
    %157 = arith.mulf %155, %156 : vector<16x128xf32>
    %158 = arith.mulf %157, %157 : vector<16x128xf32>
    %cst_60 = arith.constant dense<0.000000e+00> : vector<16xf32>
    %159 = vector.multi_reduction <add>, %158, %cst_60 [1] : vector<16x128xf32> to vector<16xf32>
    %160 = vector.shape_cast %159 : vector<16xf32> to vector<16x1xf32>
    %cst_61 = arith.constant 8.620690e-03 : f32
    %161 = vector.broadcast %cst_61 : f32 to vector<16x1xf32>
    %162 = arith.mulf %160, %161 : vector<16x1xf32>
    %cst_62 = arith.constant 9.99999974E-6 : f32
    %163 = vector.broadcast %cst_62 : f32 to vector<16x1xf32>
    %164 = arith.addf %162, %163 : vector<16x1xf32>
    %165 = math.rsqrt %164 : vector<16x1xf32>
    %166 = vector.broadcast %165 : vector<16x1xf32> to vector<16x128xf32>
    %167 = arith.mulf %157, %166 : vector<16x128xf32>
    %168 = vector.broadcast %19 : vector<1x128xf32> to vector<16x128xf32>
    %169 = arith.mulf %167, %168 : vector<16x128xf32>
    %170 = vector.broadcast %20 : vector<1x128xf32> to vector<16x128xf32>
    %171 = arith.addf %169, %170 : vector<16x128xf32>
    %c1 = arith.constant 1 : index
    %c0_63 = arith.constant 0 : index
    %c0_64 = arith.constant 0 : index
    %172 = vector.load %arg2[%c1, %c0_63, %c0_64] : memref<2x128x384xbf16, #tpu.memory_space<vmem>>, vector<1x128x384xbf16>
    %173 = vector.shape_cast %172 : vector<1x128x384xbf16> to vector<128x384xbf16>
    %c1_65 = arith.constant 1 : index
    %c0_66 = arith.constant 0 : index
    %c0_67 = arith.constant 0 : index
    %174 = vector.load %arg3[%c1_65, %c0_66, %c0_67] : memref<2x128x384xbf16, #tpu.memory_space<vmem>>, vector<1x128x384xbf16>
    %175 = vector.shape_cast %174 : vector<1x128x384xbf16> to vector<128x384xbf16>
    %c1_68 = arith.constant 1 : index
    %c0_69 = arith.constant 0 : index
    %c0_70 = arith.constant 0 : index
    %176 = vector.load %arg4[%c1_68, %c0_69, %c0_70] : memref<2x16x128xf32, #tpu.memory_space<vmem>>, vector<1x16x128xf32>
    %177 = vector.shape_cast %176 : vector<1x16x128xf32> to vector<16x128xf32>
    %178 = vector.extract_strided_slice %177 {offsets = [0, 0], sizes = [1, 128], strides = [1, 1]} : vector<16x128xf32> to vector<1x128xf32>
    %179 = vector.extract_strided_slice %177 {offsets = [1, 0], sizes = [1, 128], strides = [1, 1]} : vector<16x128xf32> to vector<1x128xf32>
    %180 = vector.extract_strided_slice %177 {offsets = [2, 0], sizes = [1, 128], strides = [1, 1]} : vector<16x128xf32> to vector<1x128xf32>
    %181 = vector.extract_strided_slice %177 {offsets = [3, 0], sizes = [1, 128], strides = [1, 1]} : vector<16x128xf32> to vector<1x128xf32>
    %182 = vector.extract_strided_slice %177 {offsets = [4, 0], sizes = [1, 128], strides = [1, 1]} : vector<16x128xf32> to vector<1x128xf32>
    %183 = vector.extract_strided_slice %177 {offsets = [5, 0], sizes = [1, 128], strides = [1, 1]} : vector<16x128xf32> to vector<1x128xf32>
    %184 = vector.extract_strided_slice %177 {offsets = [6, 0], sizes = [1, 128], strides = [1, 1]} : vector<16x128xf32> to vector<1x128xf32>
    %185 = vector.extract_strided_slice %177 {offsets = [7, 0], sizes = [1, 128], strides = [1, 1]} : vector<16x128xf32> to vector<1x128xf32>
    %186 = vector.extract_strided_slice %177 {offsets = [8, 0], sizes = [1, 128], strides = [1, 1]} : vector<16x128xf32> to vector<1x128xf32>
    %187 = vector.extract_strided_slice %177 {offsets = [9, 0], sizes = [1, 128], strides = [1, 1]} : vector<16x128xf32> to vector<1x128xf32>
    %188 = vector.extract_strided_slice %177 {offsets = [10, 0], sizes = [1, 128], strides = [1, 1]} : vector<16x128xf32> to vector<1x128xf32>
    %189 = vector.extract_strided_slice %175 {offsets = [0, 0], sizes = [128, 128], strides = [1, 1]} : vector<128x384xbf16> to vector<128x128xbf16>
    %190 = vector.extract_strided_slice %175 {offsets = [0, 128], sizes = [128, 128], strides = [1, 1]} : vector<128x384xbf16> to vector<128x128xbf16>
    %191 = vector.extract_strided_slice %175 {offsets = [0, 256], sizes = [128, 128], strides = [1, 1]} : vector<128x384xbf16> to vector<128x128xbf16>
    %192 = arith.truncf %171 : vector<16x128xf32> to vector<16x128xbf16>
    %cst_71 = arith.constant dense<0.000000e+00> : vector<16x384xf32>
    %193 = tpu.matmul %192, %173, %cst_71 {dimension_numbers = #tpu.dot_dimension_numbers<[1], [0], [0], [1], [0, 0, 1, 1], [], []>} : vector<16x128xbf16>, vector<128x384xbf16>, vector<16x384xf32> -> vector<16x384xf32>
    %194 = vector.extract_strided_slice %193 {offsets = [0, 0], sizes = [16, 128], strides = [1, 1]} : vector<16x384xf32> to vector<16x128xf32>
    %195 = vector.broadcast %178 : vector<1x128xf32> to vector<16x128xf32>
    %196 = arith.addf %194, %195 : vector<16x128xf32>
    %197 = arith.truncf %196 : vector<16x128xf32> to vector<16x128xbf16>
    %198 = vector.extract_strided_slice %193 {offsets = [0, 128], sizes = [16, 128], strides = [1, 1]} : vector<16x384xf32> to vector<16x128xf32>
    %199 = vector.broadcast %179 : vector<1x128xf32> to vector<16x128xf32>
    %200 = arith.addf %198, %199 : vector<16x128xf32>
    %201 = arith.truncf %200 : vector<16x128xf32> to vector<16x128xbf16>
    %202 = vector.extract_strided_slice %193 {offsets = [0, 256], sizes = [16, 128], strides = [1, 1]} : vector<16x384xf32> to vector<16x128xf32>
    %203 = vector.broadcast %180 : vector<1x128xf32> to vector<16x128xf32>
    %204 = arith.addf %202, %203 : vector<16x128xf32>
    %205 = arith.truncf %204 : vector<16x128xf32> to vector<16x128xbf16>
    %206 = vector.extract_strided_slice %197 {offsets = [0, 0], sizes = [8, 32], strides = [1, 1]} : vector<16x128xbf16> to vector<8x32xbf16>
    %207 = vector.extract_strided_slice %201 {offsets = [0, 0], sizes = [8, 32], strides = [1, 1]} : vector<16x128xbf16> to vector<8x32xbf16>
    %cst_72 = arith.constant dense<0.000000e+00> : vector<8x8xf32>
    %208 = tpu.matmul %206, %207, %cst_72 {dimension_numbers = #tpu.dot_dimension_numbers<[1], [1], [0], [0], [0, 0, 1, 0], [], []>} : vector<8x32xbf16>, vector<8x32xbf16>, vector<8x8xf32> -> vector<8x8xf32>
    %209 = vector.extract_strided_slice %197 {offsets = [0, 32], sizes = [8, 32], strides = [1, 1]} : vector<16x128xbf16> to vector<8x32xbf16>
    %210 = vector.extract_strided_slice %201 {offsets = [0, 32], sizes = [8, 32], strides = [1, 1]} : vector<16x128xbf16> to vector<8x32xbf16>
    %cst_73 = arith.constant dense<0.000000e+00> : vector<8x8xf32>
    %211 = tpu.matmul %209, %210, %cst_73 {dimension_numbers = #tpu.dot_dimension_numbers<[1], [1], [0], [0], [0, 0, 1, 0], [], []>} : vector<8x32xbf16>, vector<8x32xbf16>, vector<8x8xf32> -> vector<8x8xf32>
    %212 = vector.extract_strided_slice %197 {offsets = [0, 64], sizes = [8, 32], strides = [1, 1]} : vector<16x128xbf16> to vector<8x32xbf16>
    %213 = vector.extract_strided_slice %201 {offsets = [0, 64], sizes = [8, 32], strides = [1, 1]} : vector<16x128xbf16> to vector<8x32xbf16>
    %cst_74 = arith.constant dense<0.000000e+00> : vector<8x8xf32>
    %214 = tpu.matmul %212, %213, %cst_74 {dimension_numbers = #tpu.dot_dimension_numbers<[1], [1], [0], [0], [0, 0, 1, 0], [], []>} : vector<8x32xbf16>, vector<8x32xbf16>, vector<8x8xf32> -> vector<8x8xf32>
    %215 = vector.extract_strided_slice %197 {offsets = [0, 96], sizes = [8, 32], strides = [1, 1]} : vector<16x128xbf16> to vector<8x32xbf16>
    %216 = vector.extract_strided_slice %201 {offsets = [0, 96], sizes = [8, 32], strides = [1, 1]} : vector<16x128xbf16> to vector<8x32xbf16>
    %cst_75 = arith.constant dense<0.000000e+00> : vector<8x8xf32>
    %217 = tpu.matmul %215, %216, %cst_75 {dimension_numbers = #tpu.dot_dimension_numbers<[1], [1], [0], [0], [0, 0, 1, 0], [], []>} : vector<8x32xbf16>, vector<8x32xbf16>, vector<8x8xf32> -> vector<8x8xf32>
    %218 = vector.extract_strided_slice %197 {offsets = [8, 0], sizes = [8, 32], strides = [1, 1]} : vector<16x128xbf16> to vector<8x32xbf16>
    %219 = vector.extract_strided_slice %201 {offsets = [8, 0], sizes = [8, 32], strides = [1, 1]} : vector<16x128xbf16> to vector<8x32xbf16>
    %cst_76 = arith.constant dense<0.000000e+00> : vector<8x8xf32>
    %220 = tpu.matmul %218, %219, %cst_76 {dimension_numbers = #tpu.dot_dimension_numbers<[1], [1], [0], [0], [0, 0, 1, 0], [], []>} : vector<8x32xbf16>, vector<8x32xbf16>, vector<8x8xf32> -> vector<8x8xf32>
    %221 = vector.extract_strided_slice %197 {offsets = [8, 32], sizes = [8, 32], strides = [1, 1]} : vector<16x128xbf16> to vector<8x32xbf16>
    %222 = vector.extract_strided_slice %201 {offsets = [8, 32], sizes = [8, 32], strides = [1, 1]} : vector<16x128xbf16> to vector<8x32xbf16>
    %cst_77 = arith.constant dense<0.000000e+00> : vector<8x8xf32>
    %223 = tpu.matmul %221, %222, %cst_77 {dimension_numbers = #tpu.dot_dimension_numbers<[1], [1], [0], [0], [0, 0, 1, 0], [], []>} : vector<8x32xbf16>, vector<8x32xbf16>, vector<8x8xf32> -> vector<8x8xf32>
    %224 = vector.extract_strided_slice %197 {offsets = [8, 64], sizes = [8, 32], strides = [1, 1]} : vector<16x128xbf16> to vector<8x32xbf16>
    %225 = vector.extract_strided_slice %201 {offsets = [8, 64], sizes = [8, 32], strides = [1, 1]} : vector<16x128xbf16> to vector<8x32xbf16>
    %cst_78 = arith.constant dense<0.000000e+00> : vector<8x8xf32>
    %226 = tpu.matmul %224, %225, %cst_78 {dimension_numbers = #tpu.dot_dimension_numbers<[1], [1], [0], [0], [0, 0, 1, 0], [], []>} : vector<8x32xbf16>, vector<8x32xbf16>, vector<8x8xf32> -> vector<8x8xf32>
    %227 = vector.extract_strided_slice %197 {offsets = [8, 96], sizes = [8, 32], strides = [1, 1]} : vector<16x128xbf16> to vector<8x32xbf16>
    %228 = vector.extract_strided_slice %201 {offsets = [8, 96], sizes = [8, 32], strides = [1, 1]} : vector<16x128xbf16> to vector<8x32xbf16>
    %cst_79 = arith.constant dense<0.000000e+00> : vector<8x8xf32>
    %229 = tpu.matmul %227, %228, %cst_79 {dimension_numbers = #tpu.dot_dimension_numbers<[1], [1], [0], [0], [0, 0, 1, 0], [], []>} : vector<8x32xbf16>, vector<8x32xbf16>, vector<8x8xf32> -> vector<8x8xf32>
    %230 = tpu.concatenate %208, %211, %214, %217, %220, %223, %226, %229 in 0 : vector<8x8xf32>, vector<8x8xf32>, vector<8x8xf32>, vector<8x8xf32>, vector<8x8xf32>, vector<8x8xf32>, vector<8x8xf32>, vector<8x8xf32> -> vector<64x8xf32>
    %cst_80 = arith.constant dense<0xFF800000> : vector<64xf32>
    %231 = vector.multi_reduction <maximumf>, %230, %cst_80 [1] : vector<64x8xf32> to vector<64xf32>
    %232 = vector.shape_cast %231 : vector<64xf32> to vector<64x1xf32>
    %233 = vector.broadcast %232 : vector<64x1xf32> to vector<64x8xf32>
    %234 = arith.subf %230, %233 : vector<64x8xf32>
    %235 = math.exp %234 : vector<64x8xf32>
    %cst_81 = arith.constant dense<0.000000e+00> : vector<64xf32>
    %236 = vector.multi_reduction <add>, %235, %cst_81 [1] : vector<64x8xf32> to vector<64xf32>
    %237 = vector.shape_cast %236 : vector<64xf32> to vector<64x1xf32>
    %238 = tpu.reciprocal %237 {approx = true} : vector<64x1xf32> -> vector<64x1xf32>
    %239 = vector.broadcast %238 : vector<64x1xf32> to vector<64x8xf32>
    %240 = arith.mulf %235, %239 : vector<64x8xf32>
    %241 = arith.truncf %240 : vector<64x8xf32> to vector<64x8xbf16>
    %242 = vector.extract_strided_slice %241 {offsets = [0, 0], sizes = [8, 8], strides = [1, 1]} : vector<64x8xbf16> to vector<8x8xbf16>
    %243 = vector.extract_strided_slice %205 {offsets = [0, 0], sizes = [8, 32], strides = [1, 1]} : vector<16x128xbf16> to vector<8x32xbf16>
    %cst_82 = arith.constant dense<0.000000e+00> : vector<8x32xf32>
    %244 = tpu.matmul %242, %243, %cst_82 {dimension_numbers = #tpu.dot_dimension_numbers<[1], [0], [0], [1], [0, 0, 1, 1], [], []>} : vector<8x8xbf16>, vector<8x32xbf16>, vector<8x32xf32> -> vector<8x32xf32>
    %c0_83 = arith.constant 0 : index
    %c0_84 = arith.constant 0 : index
    %245 = vector.load %arg7[%c0_83, %c0_84] : memref<16x128xf32, #tpu.memory_space<vmem>>, vector<8x32xf32>
    tpu.vector_store %arg7[%c0_83, %c0_84], %244 {strides = array<i32>} : memref<16x128xf32, #tpu.memory_space<vmem>>, vector<8x32xf32>,
    %246 = vector.extract_strided_slice %241 {offsets = [8, 0], sizes = [8, 8], strides = [1, 1]} : vector<64x8xbf16> to vector<8x8xbf16>
    %247 = vector.extract_strided_slice %205 {offsets = [0, 32], sizes = [8, 32], strides = [1, 1]} : vector<16x128xbf16> to vector<8x32xbf16>
    %cst_85 = arith.constant dense<0.000000e+00> : vector<8x32xf32>
    %248 = tpu.matmul %246, %247, %cst_85 {dimension_numbers = #tpu.dot_dimension_numbers<[1], [0], [0], [1], [0, 0, 1, 1], [], []>} : vector<8x8xbf16>, vector<8x32xbf16>, vector<8x32xf32> -> vector<8x32xf32>
    %c0_86 = arith.constant 0 : index
    %c32_87 = arith.constant 32 : index
    %249 = vector.load %arg7[%c0_86, %c32_87] : memref<16x128xf32, #tpu.memory_space<vmem>>, vector<8x32xf32>
    tpu.vector_store %arg7[%c0_86, %c32_87], %248 {strides = array<i32>} : memref<16x128xf32, #tpu.memory_space<vmem>>, vector<8x32xf32>,
    %250 = vector.extract_strided_slice %241 {offsets = [16, 0], sizes = [8, 8], strides = [1, 1]} : vector<64x8xbf16> to vector<8x8xbf16>
    %251 = vector.extract_strided_slice %205 {offsets = [0, 64], sizes = [8, 32], strides = [1, 1]} : vector<16x128xbf16> to vector<8x32xbf16>
    %cst_88 = arith.constant dense<0.000000e+00> : vector<8x32xf32>
    %252 = tpu.matmul %250, %251, %cst_88 {dimension_numbers = #tpu.dot_dimension_numbers<[1], [0], [0], [1], [0, 0, 1, 1], [], []>} : vector<8x8xbf16>, vector<8x32xbf16>, vector<8x32xf32> -> vector<8x32xf32>
    %c0_89 = arith.constant 0 : index
    %c64_90 = arith.constant 64 : index
    %253 = vector.load %arg7[%c0_89, %c64_90] : memref<16x128xf32, #tpu.memory_space<vmem>>, vector<8x32xf32>
    tpu.vector_store %arg7[%c0_89, %c64_90], %252 {strides = array<i32>} : memref<16x128xf32, #tpu.memory_space<vmem>>, vector<8x32xf32>,
    %254 = vector.extract_strided_slice %241 {offsets = [24, 0], sizes = [8, 8], strides = [1, 1]} : vector<64x8xbf16> to vector<8x8xbf16>
    %255 = vector.extract_strided_slice %205 {offsets = [0, 96], sizes = [8, 32], strides = [1, 1]} : vector<16x128xbf16> to vector<8x32xbf16>
    %cst_91 = arith.constant dense<0.000000e+00> : vector<8x32xf32>
    %256 = tpu.matmul %254, %255, %cst_91 {dimension_numbers = #tpu.dot_dimension_numbers<[1], [0], [0], [1], [0, 0, 1, 1], [], []>} : vector<8x8xbf16>, vector<8x32xbf16>, vector<8x32xf32> -> vector<8x32xf32>
    %c0_92 = arith.constant 0 : index
    %c96_93 = arith.constant 96 : index
    %257 = vector.load %arg7[%c0_92, %c96_93] : memref<16x128xf32, #tpu.memory_space<vmem>>, vector<8x32xf32>
    tpu.vector_store %arg7[%c0_92, %c96_93], %256 {strides = array<i32>} : memref<16x128xf32, #tpu.memory_space<vmem>>, vector<8x32xf32>,
    %258 = vector.extract_strided_slice %241 {offsets = [32, 0], sizes = [8, 8], strides = [1, 1]} : vector<64x8xbf16> to vector<8x8xbf16>
    %259 = vector.extract_strided_slice %205 {offsets = [8, 0], sizes = [8, 32], strides = [1, 1]} : vector<16x128xbf16> to vector<8x32xbf16>
    %cst_94 = arith.constant dense<0.000000e+00> : vector<8x32xf32>
    %260 = tpu.matmul %258, %259, %cst_94 {dimension_numbers = #tpu.dot_dimension_numbers<[1], [0], [0], [1], [0, 0, 1, 1], [], []>} : vector<8x8xbf16>, vector<8x32xbf16>, vector<8x32xf32> -> vector<8x32xf32>
    %c8_95 = arith.constant 8 : index
    %c0_96 = arith.constant 0 : index
    %261 = vector.load %arg7[%c8_95, %c0_96] : memref<16x128xf32, #tpu.memory_space<vmem>>, vector<8x32xf32>
    tpu.vector_store %arg7[%c8_95, %c0_96], %260 {strides = array<i32>} : memref<16x128xf32, #tpu.memory_space<vmem>>, vector<8x32xf32>,
    %262 = vector.extract_strided_slice %241 {offsets = [40, 0], sizes = [8, 8], strides = [1, 1]} : vector<64x8xbf16> to vector<8x8xbf16>
    %263 = vector.extract_strided_slice %205 {offsets = [8, 32], sizes = [8, 32], strides = [1, 1]} : vector<16x128xbf16> to vector<8x32xbf16>
    %cst_97 = arith.constant dense<0.000000e+00> : vector<8x32xf32>
    %264 = tpu.matmul %262, %263, %cst_97 {dimension_numbers = #tpu.dot_dimension_numbers<[1], [0], [0], [1], [0, 0, 1, 1], [], []>} : vector<8x8xbf16>, vector<8x32xbf16>, vector<8x32xf32> -> vector<8x32xf32>
    %c8_98 = arith.constant 8 : index
    %c32_99 = arith.constant 32 : index
    %265 = vector.load %arg7[%c8_98, %c32_99] : memref<16x128xf32, #tpu.memory_space<vmem>>, vector<8x32xf32>
    tpu.vector_store %arg7[%c8_98, %c32_99], %264 {strides = array<i32>} : memref<16x128xf32, #tpu.memory_space<vmem>>, vector<8x32xf32>,
    %266 = vector.extract_strided_slice %241 {offsets = [48, 0], sizes = [8, 8], strides = [1, 1]} : vector<64x8xbf16> to vector<8x8xbf16>
    %267 = vector.extract_strided_slice %205 {offsets = [8, 64], sizes = [8, 32], strides = [1, 1]} : vector<16x128xbf16> to vector<8x32xbf16>
    %cst_100 = arith.constant dense<0.000000e+00> : vector<8x32xf32>
    %268 = tpu.matmul %266, %267, %cst_100 {dimension_numbers = #tpu.dot_dimension_numbers<[1], [0], [0], [1], [0, 0, 1, 1], [], []>} : vector<8x8xbf16>, vector<8x32xbf16>, vector<8x32xf32> -> vector<8x32xf32>
    %c8_101 = arith.constant 8 : index
    %c64_102 = arith.constant 64 : index
    %269 = vector.load %arg7[%c8_101, %c64_102] : memref<16x128xf32, #tpu.memory_space<vmem>>, vector<8x32xf32>
    tpu.vector_store %arg7[%c8_101, %c64_102], %268 {strides = array<i32>} : memref<16x128xf32, #tpu.memory_space<vmem>>, vector<8x32xf32>,
    %270 = vector.extract_strided_slice %241 {offsets = [56, 0], sizes = [8, 8], strides = [1, 1]} : vector<64x8xbf16> to vector<8x8xbf16>
    %271 = vector.extract_strided_slice %205 {offsets = [8, 96], sizes = [8, 32], strides = [1, 1]} : vector<16x128xbf16> to vector<8x32xbf16>
    %cst_103 = arith.constant dense<0.000000e+00> : vector<8x32xf32>
    %272 = tpu.matmul %270, %271, %cst_103 {dimension_numbers = #tpu.dot_dimension_numbers<[1], [0], [0], [1], [0, 0, 1, 1], [], []>} : vector<8x8xbf16>, vector<8x32xbf16>, vector<8x32xf32> -> vector<8x32xf32>
    %c8_104 = arith.constant 8 : index
    %c96_105 = arith.constant 96 : index
    %273 = vector.load %arg7[%c8_104, %c96_105] : memref<16x128xf32, #tpu.memory_space<vmem>>, vector<8x32xf32>
    tpu.vector_store %arg7[%c8_104, %c96_105], %272 {strides = array<i32>} : memref<16x128xf32, #tpu.memory_space<vmem>>, vector<8x32xf32>,
    %c0_106 = arith.constant 0 : index
    %c0_107 = arith.constant 0 : index
    %274 = vector.load %arg7[%c0_106, %c0_107] : memref<16x128xf32, #tpu.memory_space<vmem>>, vector<16x128xf32>
    %275 = arith.truncf %274 : vector<16x128xf32> to vector<16x128xbf16>
    %cst_108 = arith.constant dense<0.000000e+00> : vector<16x128xf32>
    %276 = tpu.matmul %275, %189, %cst_108 {dimension_numbers = #tpu.dot_dimension_numbers<[1], [0], [0], [1], [0, 0, 1, 1], [], []>} : vector<16x128xbf16>, vector<128x128xbf16>, vector<16x128xf32> -> vector<16x128xf32>
    %277 = vector.broadcast %181 : vector<1x128xf32> to vector<16x128xf32>
    %278 = arith.addf %276, %277 : vector<16x128xf32>
    %279 = arith.addf %278, %171 : vector<16x128xf32>
    %280 = vector.broadcast %188 : vector<1x128xf32> to vector<16x128xf32>
    %281 = arith.mulf %279, %280 : vector<16x128xf32>
    %cst_109 = arith.constant dense<0.000000e+00> : vector<16xf32>
    %282 = vector.multi_reduction <add>, %281, %cst_109 [1] : vector<16x128xf32> to vector<16xf32>
    %283 = vector.shape_cast %282 : vector<16xf32> to vector<16x1xf32>
    %cst_110 = arith.constant 8.620690e-03 : f32
    %284 = vector.broadcast %cst_110 : f32 to vector<16x1xf32>
    %285 = arith.mulf %283, %284 : vector<16x1xf32>
    %286 = vector.broadcast %285 : vector<16x1xf32> to vector<16x128xf32>
    %287 = arith.subf %281, %286 : vector<16x128xf32>
    %288 = vector.broadcast %188 : vector<1x128xf32> to vector<16x128xf32>
    %289 = arith.mulf %287, %288 : vector<16x128xf32>
    %290 = arith.mulf %289, %289 : vector<16x128xf32>
    %cst_111 = arith.constant dense<0.000000e+00> : vector<16xf32>
    %291 = vector.multi_reduction <add>, %290, %cst_111 [1] : vector<16x128xf32> to vector<16xf32>
    %292 = vector.shape_cast %291 : vector<16xf32> to vector<16x1xf32>
    %cst_112 = arith.constant 8.620690e-03 : f32
    %293 = vector.broadcast %cst_112 : f32 to vector<16x1xf32>
    %294 = arith.mulf %292, %293 : vector<16x1xf32>
    %cst_113 = arith.constant 9.99999974E-6 : f32
    %295 = vector.broadcast %cst_113 : f32 to vector<16x1xf32>
    %296 = arith.addf %294, %295 : vector<16x1xf32>
    %297 = math.rsqrt %296 : vector<16x1xf32>
    %298 = vector.broadcast %297 : vector<16x1xf32> to vector<16x128xf32>
    %299 = arith.mulf %289, %298 : vector<16x128xf32>
    %300 = vector.broadcast %182 : vector<1x128xf32> to vector<16x128xf32>
    %301 = arith.mulf %299, %300 : vector<16x128xf32>
    %302 = vector.broadcast %183 : vector<1x128xf32> to vector<16x128xf32>
    %303 = arith.addf %301, %302 : vector<16x128xf32>
    %304 = arith.truncf %303 : vector<16x128xf32> to vector<16x128xbf16>
    %cst_114 = arith.constant dense<0.000000e+00> : vector<16x128xf32>
    %305 = tpu.matmul %304, %190, %cst_114 {dimension_numbers = #tpu.dot_dimension_numbers<[1], [0], [0], [1], [0, 0, 1, 1], [], []>} : vector<16x128xbf16>, vector<128x128xbf16>, vector<16x128xf32> -> vector<16x128xf32>
    %306 = vector.broadcast %184 : vector<1x128xf32> to vector<16x128xf32>
    %307 = arith.addf %305, %306 : vector<16x128xf32>
    %cst_115 = arith.constant 0.000000e+00 : f32
    %308 = vector.broadcast %cst_115 : f32 to vector<16x128xf32>
    %309 = arith.maximumf %307, %308 : vector<16x128xf32>
    %310 = arith.truncf %309 : vector<16x128xf32> to vector<16x128xbf16>
    %cst_116 = arith.constant dense<0.000000e+00> : vector<16x128xf32>
    %311 = tpu.matmul %310, %191, %cst_116 {dimension_numbers = #tpu.dot_dimension_numbers<[1], [0], [0], [1], [0, 0, 1, 1], [], []>} : vector<16x128xbf16>, vector<128x128xbf16>, vector<16x128xf32> -> vector<16x128xf32>
    %312 = vector.broadcast %185 : vector<1x128xf32> to vector<16x128xf32>
    %313 = arith.addf %311, %312 : vector<16x128xf32>
    %314 = arith.addf %313, %303 : vector<16x128xf32>
    %315 = vector.broadcast %188 : vector<1x128xf32> to vector<16x128xf32>
    %316 = arith.mulf %314, %315 : vector<16x128xf32>
    %cst_117 = arith.constant dense<0.000000e+00> : vector<16xf32>
    %317 = vector.multi_reduction <add>, %316, %cst_117 [1] : vector<16x128xf32> to vector<16xf32>
    %318 = vector.shape_cast %317 : vector<16xf32> to vector<16x1xf32>
    %cst_118 = arith.constant 8.620690e-03 : f32
    %319 = vector.broadcast %cst_118 : f32 to vector<16x1xf32>
    %320 = arith.mulf %318, %319 : vector<16x1xf32>
    %321 = vector.broadcast %320 : vector<16x1xf32> to vector<16x128xf32>
    %322 = arith.subf %316, %321 : vector<16x128xf32>
    %323 = vector.broadcast %188 : vector<1x128xf32> to vector<16x128xf32>
    %324 = arith.mulf %322, %323 : vector<16x128xf32>
    %325 = arith.mulf %324, %324 : vector<16x128xf32>
    %cst_119 = arith.constant dense<0.000000e+00> : vector<16xf32>
    %326 = vector.multi_reduction <add>, %325, %cst_119 [1] : vector<16x128xf32> to vector<16xf32>
    %327 = vector.shape_cast %326 : vector<16xf32> to vector<16x1xf32>
    %cst_120 = arith.constant 8.620690e-03 : f32
    %328 = vector.broadcast %cst_120 : f32 to vector<16x1xf32>
    %329 = arith.mulf %327, %328 : vector<16x1xf32>
    %cst_121 = arith.constant 9.99999974E-6 : f32
    %330 = vector.broadcast %cst_121 : f32 to vector<16x1xf32>
    %331 = arith.addf %329, %330 : vector<16x1xf32>
    %332 = math.rsqrt %331 : vector<16x1xf32>
    %333 = vector.broadcast %332 : vector<16x1xf32> to vector<16x128xf32>
    %334 = arith.mulf %324, %333 : vector<16x128xf32>
    %335 = vector.broadcast %186 : vector<1x128xf32> to vector<16x128xf32>
    %336 = arith.mulf %334, %335 : vector<16x128xf32>
    %337 = vector.broadcast %187 : vector<1x128xf32> to vector<16x128xf32>
    %338 = arith.addf %336, %337 : vector<16x128xf32>
    %339 = vector.extract_strided_slice %338 {offsets = [0, 0], sizes = [16, 116], strides = [1, 1]} : vector<16x128xf32> to vector<16x116xf32>
    %c0_122 = arith.constant 0 : index
    %c0_123 = arith.constant 0 : index
    %340 = vector.load %arg5[%c0_122, %c0_123] : memref<16x116xf32, #tpu.memory_space<vmem>>, vector<16x116xf32>
    tpu.vector_store %arg5[%c0_122, %c0_123], %339 {strides = array<i32>} : memref<16x116xf32, #tpu.memory_space<vmem>>, vector<16x116xf32>,
    return
  }
  func.func @transform_0(%arg0: i32) -> (i32, i32) {
    %c0_i32 = arith.constant 0 : i32
    %c0_i32_0 = arith.constant 0 : i32
    return %arg0, %c0_i32 : i32, i32
  }
  func.func @transform_1(%arg0: i32) -> (i32, i32, i32) {
    %c0_i32 = arith.constant 0 : i32
    %c0_i32_0 = arith.constant 0 : i32
    %c0_i32_1 = arith.constant 0 : i32
    %c0_i32_2 = arith.constant 0 : i32
    return %c0_i32, %c0_i32_0, %c0_i32_1 : i32, i32, i32
  }
  func.func @transform_2(%arg0: i32) -> (i32, i32, i32) {
    %c0_i32 = arith.constant 0 : i32
    %c0_i32_0 = arith.constant 0 : i32
    %c0_i32_1 = arith.constant 0 : i32
    %c0_i32_2 = arith.constant 0 : i32
    return %c0_i32, %c0_i32_0, %c0_i32_1 : i32, i32, i32
  }
  func.func @transform_3(%arg0: i32) -> (i32, i32, i32) {
    %c0_i32 = arith.constant 0 : i32
    %c0_i32_0 = arith.constant 0 : i32
    %c0_i32_1 = arith.constant 0 : i32
    %c0_i32_2 = arith.constant 0 : i32
    return %c0_i32, %c0_i32_0, %c0_i32_1 : i32, i32, i32
  }
  func.func @transform_4(%arg0: i32) -> (i32, i32) {
    %c0_i32 = arith.constant 0 : i32
    %c0_i32_0 = arith.constant 0 : i32
    return %arg0, %c0_i32 : i32, i32
  }
}

</mosaic_0001>

<llo_original>
// kernel: tpu_custom_call.1
$region0: #{tpu_custom_call.1}
  #allocation0 [shape = 'u32[]', space=smem, size = 0x4, offset = 0x4, fixed_abs, tag = 'smem constant byte address 0x4 - core index']
  #allocation1 [shape = 'u32[144,128]{1,0:T(1,128)}', space=vmem, size = 0x12000, scoped, tag = 'internal scratch']
  #allocation2 [shape = 'f32[16,128]{1,0:T(8,128)}', space=vmem, size = 0x2000, scoped, tag = 'scratch operand']
  #allocation3 [shape = 'f32[16,128]{1,0:T(8,128)}', space=vmem, size = 0x2000, scoped, tag = 'scratch operand']
  %s0 = inlined_call_operand.hbm [shape: f32[16,116], index: 0, kind: input, shape index: {}]
  %s1 = inlined_call_operand.hbm [shape: bf16[2,128,384], index: 1, kind: input, shape index: {}]
  %s2 = inlined_call_operand.hbm [shape: bf16[2,128,384], index: 2, kind: input, shape index: {}]
  %s3 = inlined_call_operand.hbm [shape: f32[2,16,128], index: 3, kind: input, shape index: {}]
  %s4 = inlined_call_operand.hbm [shape: f32[16,116], index: 4, kind: output, shape index: {}]
  %s5 = sld [smem:[#allocation0]]
  $region42: #{tpu_custom_call.1} parent=0
    _
  %s7 = ssub.s32 1, %s5
  %s8 = scalar_select 0, %s7, %s5
  $region1: #{tpu_custom_call.1} parent=0
    #allocation4 [shape = 'u8[8192]{0}', space=vmem, size = 0x2000, scoped, tag = 'input window, operand 0, single buffered']
    #allocation5 [shape = 's32[1]{0}', space=sflag, size = 0x4, scoped, tag = 'scoped memory for tpu_custom_call.1']
    #allocation6 [shape = 's32[1]{0}', space=sflag, size = 0x4, scoped, tag = 'scoped memory for tpu_custom_call.1']
    #allocation7 [shape = 'u8[196608]{0}', space=vmem, size = 0x30000, scoped, tag = 'input window, operand 1, single buffered']
    #allocation8 [shape = 's32[1]{0}', space=sflag, size = 0x4, scoped, tag = 'scoped memory for tpu_custom_call.1']
    #allocation9 [shape = 'u8[196608]{0}', space=vmem, size = 0x30000, scoped, tag = 'input window, operand 2, single buffered']
    #allocation10 [shape = 'u8[16384]{0}', space=vmem, size = 0x4000, scoped, tag = 'input window, operand 3, single buffered']
    #allocation11 [shape = 's32[1]{0}', space=sflag, size = 0x4, scoped, tag = 'scoped memory for tpu_custom_call.1']
    #allocation12 [shape = 'u8[8192]{0}', space=vmem, size = 0x2000, scoped, tag = 'output window, operand 0, single buffered']
    %9 = vsyncpa [#allocation5], 0
    %10 = vsyncpa [#allocation8], 0
    %11 = vsyncpa [#allocation11], 0
    %12 = vsyncpa [#allocation6], 0
    // Predicated region
    $region2: #{tpu_custom_call.1} parent=1 // pred_check
      _
    $region3: #{tpu_custom_call.1} parent=1 // pred_check_branch
      %14 = sbr.rel (0) target = $region5
    $region4: #{tpu_custom_call.1} parent=1 // pred_region
      %s16 = ssub.s32 256, 256
      %17 = vsyncadd [#allocation5], %s16
      %s18 = sshll.u32 [#allocation4], 4
      %s19 = int_to_ptr.vmem [resolvable:$true] %s18
      %24 = dma.hbm_to_vmem [thread:$0]  %s0, 256, %s19, [#allocation5], 128, 128, 8
    $region5: #{tpu_custom_call.1} parent=1 // pred_fallthru
      _
    // Predicated region
    $region6: #{tpu_custom_call.1} parent=1 // pred_check
      _
    $region7: #{tpu_custom_call.1} parent=1 // pred_check_branch
      %26 = sbr.rel (0) target = $region9
    $region8: #{tpu_custom_call.1} parent=1 // pred_region
      %s28 = ssub.s32 6144, 6144
      %29 = vsyncadd [#allocation8], %s28
      %s30 = sshll.u32 [#allocation7], 4
      %s31 = int_to_ptr.vmem [resolvable:$true] %s30
      %36 = dma.hbm_to_vmem [thread:$0]  %s1, 6144, %s31, [#allocation8], 192, 192, 12
    $region9: #{tpu_custom_call.1} parent=1 // pred_fallthru
      _
    // Predicated region
    $region10: #{tpu_custom_call.1} parent=1 // pred_check
      _
    $region11: #{tpu_custom_call.1} parent=1 // pred_check_branch
      %38 = sbr.rel (0) target = $region13
    $region12: #{tpu_custom_call.1} parent=1 // pred_region
      %s40 = ssub.s32 6144, 6144
      %41 = vsyncadd [#allocation8], %s40
      %s42 = sshll.u32 [#allocation9], 4
      %s43 = int_to_ptr.vmem [resolvable:$true] %s42
      %48 = dma.hbm_to_vmem [thread:$0]  %s2, 6144, %s43, [#allocation8], 192, 192, 12
    $region13: #{tpu_custom_call.1} parent=1 // pred_fallthru
      _
    // Predicated region
    $region14: #{tpu_custom_call.1} parent=1 // pred_check
      _
    $region15: #{tpu_custom_call.1} parent=1 // pred_check_branch
      %50 = sbr.rel (0) target = $region17
    $region16: #{tpu_custom_call.1} parent=1 // pred_region
      %s52 = ssub.s32 512, 512
      %53 = vsyncadd [#allocation11], %s52
      %s54 = sshll.u32 [#allocation10], 4
      %s55 = int_to_ptr.vmem [resolvable:$true] %s54
      %60 = dma.hbm_to_vmem [thread:$0]  %s3, 512, %s55, [#allocation11], 128, 128, 8
    $region17: #{tpu_custom_call.1} parent=1 // pred_fallthru
      _
    // Predicated region
    $region18: #{tpu_custom_call.1} parent=1 // pred_check
      _
    $region19: #{tpu_custom_call.1} parent=1 // pred_check_branch
      %62 = sbr.rel (0) target = $region21
    $region20: #{tpu_custom_call.1} parent=1 // pred_region
      %63 = dma.done [#allocation5], 256
    $region21: #{tpu_custom_call.1} parent=1 // pred_fallthru
      _
    // Predicated region
    $region22: #{tpu_custom_call.1} parent=1 // pred_check
      _
    $region23: #{tpu_custom_call.1} parent=1 // pred_check_branch
      %65 = sbr.rel (0) target = $region25
    $region24: #{tpu_custom_call.1} parent=1 // pred_region
      %66 = dma.done [#allocation8], 6144
    $region25: #{tpu_custom_call.1} parent=1 // pred_fallthru
      _
    // Predicated region
    $region26: #{tpu_custom_call.1} parent=1 // pred_check
      _
    $region27: #{tpu_custom_call.1} parent=1 // pred_check_branch
      %68 = sbr.rel (0) target = $region29
    $region28: #{tpu_custom_call.1} parent=1 // pred_region
      %69 = dma.done [#allocation8], 6144
    $region29: #{tpu_custom_call.1} parent=1 // pred_fallthru
      _
    // Predicated region
    $region30: #{tpu_custom_call.1} parent=1 // pred_check
      _
    $region31: #{tpu_custom_call.1} parent=1 // pred_check_branch
      %71 = sbr.rel (0) target = $region33
    $region32: #{tpu_custom_call.1} parent=1 // pred_region
      %72 = dma.done [#allocation11], 512
    $region33: #{tpu_custom_call.1} parent=1 // pred_fallthru
      _
    %74 = vst [vmem:[#allocation2] sm:$0xff] 0.0
    %75 = vst [vmem:[#allocation2 + $0x8] sm:$0xff] 0.0
    %v76 = vld [vmem:[#allocation4] sm:$0xff]
    %v77 = vld [vmem:[#allocation4 + $0x8] sm:$0xff]
    %vm78 = vcmask 949248
    %79 = vst.msk [vmem:[#allocation2] sm:$0xff] %vm78, %v76
    %80 = vst.msk [vmem:[#allocation2 + $0x8] sm:$0xff] %vm78, %v77
    %v81 = vld [vmem:[#allocation2] sm:$0xff]
    %v82 = vld [vmem:[#allocation2 + $0x8] sm:$0xff]
    %v83 = vld [vmem:[#allocation7] sm:$0xff]
    %v84 = vld [vmem:[#allocation7 + $0x8] sm:$0xf]
    %v85 = vld [vmem:[#allocation7 + $0xc] sm:$0xff]
    %v86 = vld [vmem:[#allocation7 + $0x14] sm:$0xf]
    %v87 = vld [vmem:[#allocation7 + $0x18] sm:$0xff]
    %v88 = vld [vmem:[#allocation7 + $0x20] sm:$0xf]
    %v89 = vld [vmem:[#allocation7 + $0x24] sm:$0xff]
    %v90 = vld [vmem:[#allocation7 + $0x2c] sm:$0xf]
    %v91 = vld [vmem:[#allocation7 + $0x30] sm:$0xff]
    %v92 = vld [vmem:[#allocation7 + $0x38] sm:$0xf]
    %v93 = vld [vmem:[#allocation7 + $0x3c] sm:$0xff]
    %v94 = vld [vmem:[#allocation7 + $0x44] sm:$0xf]
    %v95 = vld [vmem:[#allocation7 + $0x48] sm:$0xff]
    %v96 = vld [vmem:[#allocation7 + $0x50] sm:$0xf]
    %v97 = vld [vmem:[#allocation7 + $0x54] sm:$0xff]
    %v98 = vld [vmem:[#allocation7 + $0x5c] sm:$0xf]
    %v99 = vld [vmem:[#allocation7 + $0x60] sm:$0xff]
    %v100 = vld [vmem:[#allocation7 + $0x68] sm:$0xf]
    %v101 = vld [vmem:[#allocation7 + $0x6c] sm:$0xff]
    %v102 = vld [vmem:[#allocation7 + $0x74] sm:$0xf]
    %v103 = vld [vmem:[#allocation7 + $0x78] sm:$0xff]
    %v104 = vld [vmem:[#allocation7 + $0x80] sm:$0xf]
    %v105 = vld [vmem:[#allocation7 + $0x84] sm:$0xff]
    %v106 = vld [vmem:[#allocation7 + $0x8c] sm:$0xf]
    %v107 = vld [vmem:[#allocation7 + $0x90] sm:$0xff]
    %v108 = vld [vmem:[#allocation7 + $0x98] sm:$0xf]
    %v109 = vld [vmem:[#allocation7 + $0x9c] sm:$0xff]
    %v110 = vld [vmem:[#allocation7 + $0xa4] sm:$0xf]
    %v111 = vld [vmem:[#allocation7 + $0xa8] sm:$0xff]
    %v112 = vld [vmem:[#allocation7 + $0xb0] sm:$0xf]
    %v113 = vld [vmem:[#allocation7 + $0xb4] sm:$0xff]
    %v114 = vld [vmem:[#allocation7 + $0xbc] sm:$0xf]
    %v115 = vld [vmem:[#allocation9] sm:$0xff]
    %v116 = vld [vmem:[#allocation9 + $0x8] sm:$0xf]
    %v117 = vld [vmem:[#allocation9 + $0xc] sm:$0xff]
    %v118 = vld [vmem:[#allocation9 + $0x14] sm:$0xf]
    %v119 = vld [vmem:[#allocation9 + $0x18] sm:$0xff]
    %v120 = vld [vmem:[#allocation9 + $0x20] sm:$0xf]
    %v121 = vld [vmem:[#allocation9 + $0x24] sm:$0xff]
    %v122 = vld [vmem:[#allocation9 + $0x2c] sm:$0xf]
    %v123 = vld [vmem:[#allocation9 + $0x30] sm:$0xff]
    %v124 = vld [vmem:[#allocation9 + $0x38] sm:$0xf]
    %v125 = vld [vmem:[#allocation9 + $0x3c] sm:$0xff]
    %v126 = vld [vmem:[#allocation9 + $0x44] sm:$0xf]
    %v127 = vld [vmem:[#allocation9 + $0x48] sm:$0xff]
    %v128 = vld [vmem:[#allocation9 + $0x50] sm:$0xf]
    %v129 = vld [vmem:[#allocation9 + $0x54] sm:$0xff]
    %v130 = vld [vmem:[#allocation9 + $0x5c] sm:$0xf]
    %v131 = vld [vmem:[#allocation9 + $0x60] sm:$0xff]
    %v132 = vld [vmem:[#allocation9 + $0x68] sm:$0xf]
    %v133 = vld [vmem:[#allocation9 + $0x6c] sm:$0xff]
    %v134 = vld [vmem:[#allocation9 + $0x74] sm:$0xf]
    %v135 = vld [vmem:[#allocation9 + $0x78] sm:$0xff]
    %v136 = vld [vmem:[#allocation9 + $0x80] sm:$0xf]
    %v137 = vld [vmem:[#allocation9 + $0x84] sm:$0xff]
    %v138 = vld [vmem:[#allocation9 + $0x8c] sm:$0xf]
    %v139 = vld [vmem:[#allocation9 + $0x90] sm:$0xff]
    %v140 = vld [vmem:[#allocation9 + $0x98] sm:$0xf]
    %v141 = vld [vmem:[#allocation9 + $0x9c] sm:$0xff]
    %v142 = vld [vmem:[#allocation9 + $0xa4] sm:$0xf]
    %v143 = vld [vmem:[#allocation9 + $0xa8] sm:$0xff]
    %v144 = vld [vmem:[#allocation9 + $0xb0] sm:$0xf]
    %v145 = vld [vmem:[#allocation9 + $0xb4] sm:$0xff]
    %v146 = vld [vmem:[#allocation9 + $0xbc] sm:$0xf]
    %v147 = vld [vmem:[#allocation10] sm:$0xff]
    %v148 = vld [vmem:[#allocation10 + $0x8] sm:$0xff]
    %v149 = vpack.c.bf16 %v82, %v81
    %v182 = vunpack.c.l.b16 %v83
    %v183 = vunpack.c.h.b16 %v83
    %v184 = vunpack.c.l.b16 %v84
    %v185 = vunpack.c.l.b16 %v85
    %v186 = vunpack.c.h.b16 %v85
    %v187 = vunpack.c.l.b16 %v86
    %v188 = vunpack.c.l.b16 %v87
    %v189 = vunpack.c.h.b16 %v87
    %v190 = vunpack.c.l.b16 %v88
    %v191 = vunpack.c.l.b16 %v89
    %v192 = vunpack.c.h.b16 %v89
    %v193 = vunpack.c.l.b16 %v90
    %v194 = vunpack.c.l.b16 %v91
    %v195 = vunpack.c.h.b16 %v91
    %v196 = vunpack.c.l.b16 %v92
    %v197 = vunpack.c.l.b16 %v93
    %v198 = vunpack.c.h.b16 %v93
    %v199 = vunpack.c.l.b16 %v94
    %v200 = vunpack.c.l.b16 %v95
    %v201 = vunpack.c.h.b16 %v95
    %v202 = vunpack.c.l.b16 %v96
    %v203 = vunpack.c.l.b16 %v97
    %v204 = vunpack.c.h.b16 %v97
    %v205 = vunpack.c.l.b16 %v98
    %v206 = vunpack.c.l.b16 %v99
    %v207 = vunpack.c.h.b16 %v99
    %v208 = vunpack.c.l.b16 %v100
    %v209 = vunpack.c.l.b16 %v101
    %v210 = vunpack.c.h.b16 %v101
    %v211 = vunpack.c.l.b16 %v102
    %v212 = vunpack.c.l.b16 %v103
    %v213 = vunpack.c.h.b16 %v103
    %v214 = vunpack.c.l.b16 %v104
    %v215 = vunpack.c.l.b16 %v105
    %v216 = vunpack.c.h.b16 %v105
    %v217 = vunpack.c.l.b16 %v106
    %v218 = vunpack.c.l.b16 %v107
    %v219 = vunpack.c.h.b16 %v107
    %v220 = vunpack.c.l.b16 %v108
    %v221 = vunpack.c.l.b16 %v109
    %v222 = vunpack.c.h.b16 %v109
    %v223 = vunpack.c.l.b16 %v110
    %v224 = vunpack.c.l.b16 %v111
    %v225 = vunpack.c.h.b16 %v111
    %v226 = vunpack.c.l.b16 %v112
    %v227 = vunpack.c.l.b16 %v113
    %v228 = vunpack.c.h.b16 %v113
    %v229 = vunpack.c.l.b16 %v114
    %v230 = vpack.c.b16 %v185, %v182
    %v231 = vpack.c.b16 %v186, %v183
    %v232 = vpack.c.b16 %v187, %v184
    %v233 = vpack.c.b16 %v191, %v188
    %v234 = vpack.c.b16 %v192, %v189
    %v235 = vpack.c.b16 %v193, %v190
    %v236 = vpack.c.b16 %v197, %v194
    %v237 = vpack.c.b16 %v198, %v195
    %v238 = vpack.c.b16 %v199, %v196
    %v239 = vpack.c.b16 %v203, %v200
    %v240 = vpack.c.b16 %v204, %v201
    %v241 = vpack.c.b16 %v205, %v202
    %v242 = vpack.c.b16 %v209, %v206
    %v243 = vpack.c.b16 %v210, %v207
    %v244 = vpack.c.b16 %v211, %v208
    %v245 = vpack.c.b16 %v215, %v212
    %v246 = vpack.c.b16 %v216, %v213
    %v247 = vpack.c.b16 %v217, %v214
    %v248 = vpack.c.b16 %v221, %v218
    %v249 = vpack.c.b16 %v222, %v219
    %v250 = vpack.c.b16 %v223, %v220
    %v251 = vpack.c.b16 %v227, %v224
    %v252 = vpack.c.b16 %v228, %v225
    %v253 = vpack.c.b16 %v229, %v226
    %278 = vmatprep.subr.bf16.mxu0 %v231
    %279 = vmatpush1.bf16.msra.mxu0 %v230
    %280 = vmatprep.subr.bf16.mxu0 %v234
    %281 = vmatpush1.bf16.msra.mxu0 %v233
    %282 = vmatprep.subr.bf16.mxu0 %v237
    %283 = vmatpush1.bf16.msra.mxu0 %v236
    %284 = vmatprep.subr.bf16.mxu0 %v240
    %285 = vmatpush1.bf16.msra.mxu0 %v239
    %286 = vmatprep.subr.bf16.mxu0 %v243
    %287 = vmatpush1.bf16.msra.mxu0 %v242
    %288 = vmatprep.subr.bf16.mxu0 %v246
    %289 = vmatpush1.bf16.msra.mxu0 %v245
    %290 = vmatprep.subr.bf16.mxu0 %v249
    %291 = vmatpush1.bf16.msra.mxu0 %v248
    %292 = vmatprep.subr.bf16.mxu0 %v252
    %293 = vmatpush1.bf16.msra.mxu0 %v251
    %294 = vmatprep.subr.bf16.mxu0 0
    %295 = vmatpush1.bf16.msra.mxu0 0
    %296 = vmatprep.subr.bf16.mxu0 0
    %297 = vmatpush1.bf16.msra.mxu0 0
    %298 = vmatprep.subr.bf16.mxu0 0
    %299 = vmatpush1.bf16.msra.mxu0 0
    %300 = vmatprep.subr.bf16.mxu0 0
    %301 = vmatpush1.bf16.msra.mxu0 0
    %302 = vmatprep.subr.bf16.mxu0 0
    %303 = vmatpush1.bf16.msra.mxu0 0
    %304 = vmatprep.subr.bf16.mxu0 0
    %305 = vmatpush1.bf16.msra.mxu0 0
    %306 = vmatprep.subr.bf16.mxu0 0
    %307 = vmatpush1.bf16.msra.mxu0 0
    %308 = vmatprep.subr.bf16.mxu0 0
    %309 = vmatpush1.bf16.msra.mxu0 0
    %310 = vmatprep.mubr.bf16.mxu0 0
    %311 = vmatmul.mubr.bf16.gmra.mrb[0].mxu0 %v149
    %v312 = vpop.f32.mrb[0].mxu0
    %v313 = vadd.f32 0.0, %v312
    %v314 = vpop.f32.mrb[0].mxu0
    %v315 = vadd.f32 0.0, %v314
    %v316 = vpop.f32.mrb[0].mxu0
    %v317 = vadd.f32 0.0, %v316
    %v318 = vpop.f32.mrb[0].mxu0
    %v319 = vadd.f32 0.0, %v318
    %320 = vdwg.mxu0
    %321 = vmatprep.subr.bf16.mxu0 0
    %322 = vmatpush1.bf16.msra.mxu0 %v232
    %323 = vmatprep.subr.bf16.mxu0 0
    %324 = vmatpush1.bf16.msra.mxu0 %v235
    %325 = vmatprep.subr.bf16.mxu0 0
    %326 = vmatpush1.bf16.msra.mxu0 %v238
    %327 = vmatprep.subr.bf16.mxu0 0
    %328 = vmatpush1.bf16.msra.mxu0 %v241
    %329 = vmatprep.subr.bf16.mxu0 0
    %330 = vmatpush1.bf16.msra.mxu0 %v244
    %331 = vmatprep.subr.bf16.mxu0 0
    %332 = vmatpush1.bf16.msra.mxu0 %v247
    %333 = vmatprep.subr.bf16.mxu0 0
    %334 = vmatpush1.bf16.msra.mxu0 %v250
    %335 = vmatprep.subr.bf16.mxu0 0
    %336 = vmatpush1.bf16.msra.mxu0 %v253
    %337 = vmatprep.subr.bf16.mxu0 0
    %338 = vmatpush1.bf16.msra.mxu0 0
    %339 = vmatprep.subr.bf16.mxu0 0
    %340 = vmatpush1.bf16.msra.mxu0 0
    %341 = vmatprep.subr.bf16.mxu0 0
    %342 = vmatpush1.bf16.msra.mxu0 0
    %343 = vmatprep.subr.bf16.mxu0 0
    %344 = vmatpush1.bf16.msra.mxu0 0
    %345 = vmatprep.subr.bf16.mxu0 0
    %346 = vmatpush1.bf16.msra.mxu0 0
    %347 = vmatprep.subr.bf16.mxu0 0
    %348 = vmatpush1.bf16.msra.mxu0 0
    %349 = vmatprep.subr.bf16.mxu0 0
    %350 = vmatpush1.bf16.msra.mxu0 0
    %351 = vmatprep.subr.bf16.mxu0 0
    %352 = vmatpush1.bf16.msra.mxu0 0
    %353 = vmatprep.mubr.bf16.mxu0 0
    %354 = vmatmul.mubr.bf16.gmra.mrb[0].mxu0 %v149
    %v355 = vpop.f32.mrb[0].mxu0
    %v356 = vadd.f32 0.0, %v355
    %v357 = vpop.f32.mrb[0].mxu0
    %v358 = vpop.f32.mrb[0].mxu0
    %v359 = vadd.f32 0.0, %v358
    %v360 = vpop.f32.mrb[0].mxu0
    %361 = vdwg.mxu0
    %v362 = vlaneseq
    %v363 = vshrl.u32 %v362, 7
    %v364 = vsub.s32 0, %v363
    %v365 = vrot.slane %v147, %v364
    %v366 = vadd.f32 %v313, %v365
    %v367 = vadd.f32 %v317, %v365
    %v368 = vpack.c.bf16 %v367, %v366
    %v369 = vlaneseq
    %v370 = vshrl.u32 %v369, 7
    %v371 = vsub.s32 1, %v370
    %v372 = vrot.slane %v147, %v371
    %v373 = vadd.f32 %v315, %v372
    %v374 = vadd.f32 %v319, %v372
    %v375 = vpack.c.bf16 %v374, %v373
    %v376 = vlaneseq
    %v377 = vshrl.u32 %v376, 7
    %v378 = vsub.s32 2, %v377
    %v379 = vrot.slane %v147, %v378
    %v380 = vadd.f32 %v356, %v379
    %v381 = vadd.f32 %v359, %v379
    %v382 = vpack.c.bf16 %v381, %v380
    %vm383 = vcmask 261120
    %v385 = vsel %vm383, %v368, 0
    %v388 = vsel %vm383, %v375, 0
    %390 = vmatprep.subr.bf16.mxu0 0
    %391 = vmatpush1.bf16.xpose.msra.mxu0 %v388
    %392 = vmatprep.subr.bf16.mxu0 0
    %393 = vmatpush1.bf16.xpose.msra.mxu0 0
    %394 = vmatprep.subr.bf16.mxu0 0
    %395 = vmatpush1.bf16.xpose.msra.mxu0 0
    %396 = vmatprep.subr.bf16.mxu0 0
    %397 = vmatpush1.bf16.xpose.msra.mxu0 0
    %398 = vmatprep.subr.bf16.mxu0 0
    %399 = vmatpush1.bf16.xpose.msra.mxu0 0
    %400 = vmatprep.subr.bf16.mxu0 0
    %401 = vmatpush1.bf16.xpose.msra.mxu0 0
    %402 = vmatprep.subr.bf16.mxu0 0
    %403 = vmatpush1.bf16.xpose.msra.mxu0 0
    %404 = vmatprep.subr.bf16.mxu0 0
    %405 = vmatpush1.bf16.xpose.msra.mxu0 0
    %406 = vmatprep.subr.bf16.mxu0 0
    %407 = vmatpush1.bf16.xpose.msra.mxu0 0
    %408 = vmatprep.subr.bf16.mxu0 0
    %409 = vmatpush1.bf16.xpose.msra.mxu0 0
    %410 = vmatprep.subr.bf16.mxu0 0
    %411 = vmatpush1.bf16.xpose.msra.mxu0 0
    %412 = vmatprep.subr.bf16.mxu0 0
    %413 = vmatpush1.bf16.xpose.msra.mxu0 0
    %414 = vmatprep.subr.bf16.mxu0 0
    %415 = vmatpush1.bf16.xpose.msra.mxu0 0
    %416 = vmatprep.subr.bf16.mxu0 0
    %417 = vmatpush1.bf16.xpose.msra.mxu0 0
    %418 = vmatprep.subr.bf16.mxu0 0
    %419 = vmatpush1.bf16.xpose.msra.mxu0 0
    %420 = vmatprep.subr.bf16.mxu0 0
    %421 = vmatpush1.bf16.xpose.msra.mxu0 0
    %422 = vmatprep.mubr.bf16.mxu0 0
    %423 = vmatmul.mubr.bf16.gmra.mrb[0].mxu0 %v385
    %v424 = vpop.f32.mrb[0].mxu0
    %v425 = vadd.f32 0.0, %v424
    %v426 = vpop.f32.mrb[0].mxu0
    %v427 = vpop.f32.mrb[0].mxu0
    %v428 = vpop.f32.mrb[0].mxu0
    %429 = vdwg.mxu0
    %431 = vrot.lane.b32.xlu0 %v368, 96
    %v432 = vpop.permute.xlu0 %431
    %434 = vrot.lane.b32.xlu0 %v375, 96
    %v435 = vpop.permute.xlu0 %434
    %v437 = vsel %vm383, %v432, 0
    %v440 = vsel %vm383, %v435, 0
    %442 = vmatprep.subr.bf16.mxu0 0
    %443 = vmatpush1.bf16.xpose.msra.mxu0 %v440
    %444 = vmatprep.subr.bf16.mxu0 0
    %445 = vmatpush1.bf16.xpose.msra.mxu0 0
    %446 = vmatprep.subr.bf16.mxu0 0
    %447 = vmatpush1.bf16.xpose.msra.mxu0 0
    %448 = vmatprep.subr.bf16.mxu0 0
    %449 = vmatpush1.bf16.xpose.msra.mxu0 0
    %450 = vmatprep.subr.bf16.mxu0 0
    %451 = vmatpush1.bf16.xpose.msra.mxu0 0
    %452 = vmatprep.subr.bf16.mxu0 0
    %453 = vmatpush1.bf16.xpose.msra.mxu0 0
    %454 = vmatprep.subr.bf16.mxu0 0
    %455 = vmatpush1.bf16.xpose.msra.mxu0 0
    %456 = vmatprep.subr.bf16.mxu0 0
    %457 = vmatpush1.bf16.xpose.msra.mxu0 0
    %458 = vmatprep.subr.bf16.mxu0 0
    %459 = vmatpush1.bf16.xpose.msra.mxu0 0
    %460 = vmatprep.subr.bf16.mxu0 0
    %461 = vmatpush1.bf16.xpose.msra.mxu0 0
    %462 = vmatprep.subr.bf16.mxu0 0
    %463 = vmatpush1.bf16.xpose.msra.mxu0 0
    %464 = vmatprep.subr.bf16.mxu0 0
    %465 = vmatpush1.bf16.xpose.msra.mxu0 0
    %466 = vmatprep.subr.bf16.mxu0 0
    %467 = vmatpush1.bf16.xpose.msra.mxu0 0
    %468 = vmatprep.subr.bf16.mxu0 0
    %469 = vmatpush1.bf16.xpose.msra.mxu0 0
    %470 = vmatprep.subr.bf16.mxu0 0
    %471 = vmatpush1.bf16.xpose.msra.mxu0 0
    %472 = vmatprep.subr.bf16.mxu0 0
    %473 = vmatpush1.bf16.xpose.msra.mxu0 0
    %474 = vmatprep.mubr.bf16.mxu0 0
    %475 = vmatmul.mubr.bf16.gmra.mrb[0].mxu0 %v437
    %v476 = vpop.f32.mrb[0].mxu0
    %v477 = vadd.f32 0.0, %v476
    %v478 = vpop.f32.mrb[0].mxu0
    %v479 = vpop.f32.mrb[0].mxu0
    %v480 = vpop.f32.mrb[0].mxu0
    %481 = vdwg.mxu0
    %482 = vrot.lane.b32.xlu0 %v368, 64
    %v483 = vpop.permute.xlu0 %482
    %484 = vrot.lane.b32.xlu0 %v375, 64
    %v485 = vpop.permute.xlu0 %484
    %v487 = vsel %vm383, %v483, 0
    %v490 = vsel %vm383, %v485, 0
    %492 = vmatprep.subr.bf16.mxu0 0
    %493 = vmatpush1.bf16.xpose.msra.mxu0 %v490
    %494 = vmatprep.subr.bf16.mxu0 0
    %495 = vmatpush1.bf16.xpose.msra.mxu0 0
    %496 = vmatprep.subr.bf16.mxu0 0
    %497 = vmatpush1.bf16.xpose.msra.mxu0 0
    %498 = vmatprep.subr.bf16.mxu0 0
    %499 = vmatpush1.bf16.xpose.msra.mxu0 0
    %500 = vmatprep.subr.bf16.mxu0 0
    %501 = vmatpush1.bf16.xpose.msra.mxu0 0
    %502 = vmatprep.subr.bf16.mxu0 0
    %503 = vmatpush1.bf16.xpose.msra.mxu0 0
    %504 = vmatprep.subr.bf16.mxu0 0
    %505 = vmatpush1.bf16.xpose.msra.mxu0 0
    %506 = vmatprep.subr.bf16.mxu0 0
    %507 = vmatpush1.bf16.xpose.msra.mxu0 0
    %508 = vmatprep.subr.bf16.mxu0 0
    %509 = vmatpush1.bf16.xpose.msra.mxu0 0
    %510 = vmatprep.subr.bf16.mxu0 0
    %511 = vmatpush1.bf16.xpose.msra.mxu0 0
    %512 = vmatprep.subr.bf16.mxu0 0
    %513 = vmatpush1.bf16.xpose.msra.mxu0 0
    %514 = vmatprep.subr.bf16.mxu0 0
    %515 = vmatpush1.bf16.xpose.msra.mxu0 0
    %516 = vmatprep.subr.bf16.mxu0 0
    %517 = vmatpush1.bf16.xpose.msra.mxu0 0
    %518 = vmatprep.subr.bf16.mxu0 0
    %519 = vmatpush1.bf16.xpose.msra.mxu0 0
    %520 = vmatprep.subr.bf16.mxu0 0
    %521 = vmatpush1.bf16.xpose.msra.mxu0 0
    %522 = vmatprep.subr.bf16.mxu0 0
    %523 = vmatpush1.bf16.xpose.msra.mxu0 0
    %524 = vmatprep.mubr.bf16.mxu0 0
    %525 = vmatmul.mubr.bf16.gmra.mrb[0].mxu0 %v487
    %v526 = vpop.f32.mrb[0].mxu0
    %v527 = vadd.f32 0.0, %v526
    %v528 = vpop.f32.mrb[0].mxu0
    %v529 = vpop.f32.mrb[0].mxu0
    %v530 = vpop.f32.mrb[0].mxu0
    %531 = vdwg.mxu0
    %532 = vrot.lane.b32.xlu0 %v368, 32
    %v533 = vpop.permute.xlu0 %532
    %534 = vrot.lane.b32.xlu0 %v375, 32
    %v535 = vpop.permute.xlu0 %534
    %v537 = vsel %vm383, %v533, 0
    %v540 = vsel %vm383, %v535, 0
    %542 = vmatprep.subr.bf16.mxu0 0
    %543 = vmatpush1.bf16.xpose.msra.mxu0 %v540
    %544 = vmatprep.subr.bf16.mxu0 0
    %545 = vmatpush1.bf16.xpose.msra.mxu0 0
    %546 = vmatprep.subr.bf16.mxu0 0
    %547 = vmatpush1.bf16.xpose.msra.mxu0 0
    %548 = vmatprep.subr.bf16.mxu0 0
    %549 = vmatpush1.bf16.xpose.msra.mxu0 0
    %550 = vmatprep.subr.bf16.mxu0 0
    %551 = vmatpush1.bf16.xpose.msra.mxu0 0
    %552 = vmatprep.subr.bf16.mxu0 0
    %553 = vmatpush1.bf16.xpose.msra.mxu0 0
    %554 = vmatprep.subr.bf16.mxu0 0
    %555 = vmatpush1.bf16.xpose.msra.mxu0 0
    %556 = vmatprep.subr.bf16.mxu0 0
    %557 = vmatpush1.bf16.xpose.msra.mxu0 0
    %558 = vmatprep.subr.bf16.mxu0 0
    %559 = vmatpush1.bf16.xpose.msra.mxu0 0
    %560 = vmatprep.subr.bf16.mxu0 0
    %561 = vmatpush1.bf16.xpose.msra.mxu0 0
    %562 = vmatprep.subr.bf16.mxu0 0
    %563 = vmatpush1.bf16.xpose.msra.mxu0 0
    %564 = vmatprep.subr.bf16.mxu0 0
    %565 = vmatpush1.bf16.xpose.msra.mxu0 0
    %566 = vmatprep.subr.bf16.mxu0 0
    %567 = vmatpush1.bf16.xpose.msra.mxu0 0
    %568 = vmatprep.subr.bf16.mxu0 0
    %569 = vmatpush1.bf16.xpose.msra.mxu0 0
    %570 = vmatprep.subr.bf16.mxu0 0
    %571 = vmatpush1.bf16.xpose.msra.mxu0 0
    %572 = vmatprep.subr.bf16.mxu0 0
    %573 = vmatpush1.bf16.xpose.msra.mxu0 0
    %574 = vmatprep.mubr.bf16.mxu0 0
    %575 = vmatmul.mubr.bf16.gmra.mrb[0].mxu0 %v537
    %v576 = vpop.f32.mrb[0].mxu0
    %v577 = vadd.f32 0.0, %v576
    %v578 = vpop.f32.mrb[0].mxu0
    %v579 = vpop.f32.mrb[0].mxu0
    %v580 = vpop.f32.mrb[0].mxu0
    %581 = vdwg.mxu0
    %v582 = vrot.slane %v368, 4
    %v583 = vrot.slane %v375, 4
    %v585 = vsel %vm383, %v582, 0
    %v588 = vsel %vm383, %v583, 0
    %590 = vmatprep.subr.bf16.mxu0 0
    %591 = vmatpush1.bf16.xpose.msra.mxu0 %v588
    %592 = vmatprep.subr.bf16.mxu0 0
    %593 = vmatpush1.bf16.xpose.msra.mxu0 0
    %594 = vmatprep.subr.bf16.mxu0 0
    %595 = vmatpush1.bf16.xpose.msra.mxu0 0
    %596 = vmatprep.subr.bf16.mxu0 0
    %597 = vmatpush1.bf16.xpose.msra.mxu0 0
    %598 = vmatprep.subr.bf16.mxu0 0
    %599 = vmatpush1.bf16.xpose.msra.mxu0 0
    %600 = vmatprep.subr.bf16.mxu0 0
    %601 = vmatpush1.bf16.xpose.msra.mxu0 0
    %602 = vmatprep.subr.bf16.mxu0 0
    %603 = vmatpush1.bf16.xpose.msra.mxu0 0
    %604 = vmatprep.subr.bf16.mxu0 0
    %605 = vmatpush1.bf16.xpose.msra.mxu0 0
    %606 = vmatprep.subr.bf16.mxu0 0
    %607 = vmatpush1.bf16.xpose.msra.mxu0 0
    %608 = vmatprep.subr.bf16.mxu0 0
    %609 = vmatpush1.bf16.xpose.msra.mxu0 0
    %610 = vmatprep.subr.bf16.mxu0 0
    %611 = vmatpush1.bf16.xpose.msra.mxu0 0
    %612 = vmatprep.subr.bf16.mxu0 0
    %613 = vmatpush1.bf16.xpose.msra.mxu0 0
    %614 = vmatprep.subr.bf16.mxu0 0
    %615 = vmatpush1.bf16.xpose.msra.mxu0 0
    %616 = vmatprep.subr.bf16.mxu0 0
    %617 = vmatpush1.bf16.xpose.msra.mxu0 0
    %618 = vmatprep.subr.bf16.mxu0 0
    %619 = vmatpush1.bf16.xpose.msra.mxu0 0
    %620 = vmatprep.subr.bf16.mxu0 0
    %621 = vmatpush1.bf16.xpose.msra.mxu0 0
    %622 = vmatprep.mubr.bf16.mxu0 0
    %623 = vmatmul.mubr.bf16.gmra.mrb[0].mxu0 %v585
    %v624 = vpop.f32.mrb[0].mxu0
    %v625 = vadd.f32 0.0, %v624
    %v626 = vpop.f32.mrb[0].mxu0
    %v627 = vpop.f32.mrb[0].mxu0
    %v628 = vpop.f32.mrb[0].mxu0
    %629 = vdwg.mxu0
    %630 = vrot.lane.b32.xlu0 %v582, 96
    %v631 = vpop.permute.xlu0 %630
    %632 = vrot.lane.b32.xlu0 %v583, 96
    %v633 = vpop.permute.xlu0 %632
    %v635 = vsel %vm383, %v631, 0
    %v638 = vsel %vm383, %v633, 0
    %640 = vmatprep.subr.bf16.mxu0 0
    %641 = vmatpush1.bf16.xpose.msra.mxu0 %v638
    %642 = vmatprep.subr.bf16.mxu0 0
    %643 = vmatpush1.bf16.xpose.msra.mxu0 0
    %644 = vmatprep.subr.bf16.mxu0 0
    %645 = vmatpush1.bf16.xpose.msra.mxu0 0
    %646 = vmatprep.subr.bf16.mxu0 0
    %647 = vmatpush1.bf16.xpose.msra.mxu0 0
    %648 = vmatprep.subr.bf16.mxu0 0
    %649 = vmatpush1.bf16.xpose.msra.mxu0 0
    %650 = vmatprep.subr.bf16.mxu0 0
    %651 = vmatpush1.bf16.xpose.msra.mxu0 0
    %652 = vmatprep.subr.bf16.mxu0 0
    %653 = vmatpush1.bf16.xpose.msra.mxu0 0
    %654 = vmatprep.subr.bf16.mxu0 0
    %655 = vmatpush1.bf16.xpose.msra.mxu0 0
    %656 = vmatprep.subr.bf16.mxu0 0
    %657 = vmatpush1.bf16.xpose.msra.mxu0 0
    %658 = vmatprep.subr.bf16.mxu0 0
    %659 = vmatpush1.bf16.xpose.msra.mxu0 0
    %660 = vmatprep.subr.bf16.mxu0 0
    %661 = vmatpush1.bf16.xpose.msra.mxu0 0
    %662 = vmatprep.subr.bf16.mxu0 0
    %663 = vmatpush1.bf16.xpose.msra.mxu0 0
    %664 = vmatprep.subr.bf16.mxu0 0
    %665 = vmatpush1.bf16.xpose.msra.mxu0 0
    %666 = vmatprep.subr.bf16.mxu0 0
    %667 = vmatpush1.bf16.xpose.msra.mxu0 0
    %668 = vmatprep.subr.bf16.mxu0 0
    %669 = vmatpush1.bf16.xpose.msra.mxu0 0
    %670 = vmatprep.subr.bf16.mxu0 0
    %671 = vmatpush1.bf16.xpose.msra.mxu0 0
    %672 = vmatprep.mubr.bf16.mxu0 0
    %673 = vmatmul.mubr.bf16.gmra.mrb[0].mxu0 %v635
    %v674 = vpop.f32.mrb[0].mxu0
    %v675 = vadd.f32 0.0, %v674
    %v676 = vpop.f32.mrb[0].mxu0
    %v677 = vpop.f32.mrb[0].mxu0
    %v678 = vpop.f32.mrb[0].mxu0
    %679 = vdwg.mxu0
    %680 = vrot.lane.b32.xlu0 %v582, 64
    %v681 = vpop.permute.xlu0 %680
    %682 = vrot.lane.b32.xlu0 %v583, 64
    %v683 = vpop.permute.xlu0 %682
    %v685 = vsel %vm383, %v681, 0
    %v688 = vsel %vm383, %v683, 0
    %690 = vmatprep.subr.bf16.mxu0 0
    %691 = vmatpush1.bf16.xpose.msra.mxu0 %v688
    %692 = vmatprep.subr.bf16.mxu0 0
    %693 = vmatpush1.bf16.xpose.msra.mxu0 0
    %694 = vmatprep.subr.bf16.mxu0 0
    %695 = vmatpush1.bf16.xpose.msra.mxu0 0
    %696 = vmatprep.subr.bf16.mxu0 0
    %697 = vmatpush1.bf16.xpose.msra.mxu0 0
    %698 = vmatprep.subr.bf16.mxu0 0
    %699 = vmatpush1.bf16.xpose.msra.mxu0 0
    %700 = vmatprep.subr.bf16.mxu0 0
    %701 = vmatpush1.bf16.xpose.msra.mxu0 0
    %702 = vmatprep.subr.bf16.mxu0 0
    %703 = vmatpush1.bf16.xpose.msra.mxu0 0
    %704 = vmatprep.subr.bf16.mxu0 0
    %705 = vmatpush1.bf16.xpose.msra.mxu0 0
    %706 = vmatprep.subr.bf16.mxu0 0
    %707 = vmatpush1.bf16.xpose.msra.mxu0 0
    %708 = vmatprep.subr.bf16.mxu0 0
    %709 = vmatpush1.bf16.xpose.msra.mxu0 0
    %710 = vmatprep.subr.bf16.mxu0 0
    %711 = vmatpush1.bf16.xpose.msra.mxu0 0
    %712 = vmatprep.subr.bf16.mxu0 0
    %713 = vmatpush1.bf16.xpose.msra.mxu0 0
    %714 = vmatprep.subr.bf16.mxu0 0
    %715 = vmatpush1.bf16.xpose.msra.mxu0 0
    %716 = vmatprep.subr.bf16.mxu0 0
    %717 = vmatpush1.bf16.xpose.msra.mxu0 0
    %718 = vmatprep.subr.bf16.mxu0 0
    %719 = vmatpush1.bf16.xpose.msra.mxu0 0
    %720 = vmatprep.subr.bf16.mxu0 0
    %721 = vmatpush1.bf16.xpose.msra.mxu0 0
    %722 = vmatprep.mubr.bf16.mxu0 0
    %723 = vmatmul.mubr.bf16.gmra.mrb[0].mxu0 %v685
    %v724 = vpop.f32.mrb[0].mxu0
    %v725 = vadd.f32 0.0, %v724
    %v726 = vpop.f32.mrb[0].mxu0
    %v727 = vpop.f32.mrb[0].mxu0
    %v728 = vpop.f32.mrb[0].mxu0
    %729 = vdwg.mxu0
    %730 = vrot.lane.b32.xlu0 %v582, 32
    %v731 = vpop.permute.xlu0 %730
    %732 = vrot.lane.b32.xlu0 %v583, 32
    %v733 = vpop.permute.xlu0 %732
    %v735 = vsel %vm383, %v731, 0
    %v738 = vsel %vm383, %v733, 0
    %740 = vmatprep.subr.bf16.mxu0 0
    %741 = vmatpush1.bf16.xpose.msra.mxu0 %v738
    %742 = vmatprep.subr.bf16.mxu0 0
    %743 = vmatpush1.bf16.xpose.msra.mxu0 0
    %744 = vmatprep.subr.bf16.mxu0 0
    %745 = vmatpush1.bf16.xpose.msra.mxu0 0
    %746 = vmatprep.subr.bf16.mxu0 0
    %747 = vmatpush1.bf16.xpose.msra.mxu0 0
    %748 = vmatprep.subr.bf16.mxu0 0
    %749 = vmatpush1.bf16.xpose.msra.mxu0 0
    %750 = vmatprep.subr.bf16.mxu0 0
    %751 = vmatpush1.bf16.xpose.msra.mxu0 0
    %752 = vmatprep.subr.bf16.mxu0 0
    %753 = vmatpush1.bf16.xpose.msra.mxu0 0
    %754 = vmatprep.subr.bf16.mxu0 0
    %755 = vmatpush1.bf16.xpose.msra.mxu0 0
    %756 = vmatprep.subr.bf16.mxu0 0
    %757 = vmatpush1.bf16.xpose.msra.mxu0 0
    %758 = vmatprep.subr.bf16.mxu0 0
    %759 = vmatpush1.bf16.xpose.msra.mxu0 0
    %760 = vmatprep.subr.bf16.mxu0 0
    %761 = vmatpush1.bf16.xpose.msra.mxu0 0
    %762 = vmatprep.subr.bf16.mxu0 0
    %763 = vmatpush1.bf16.xpose.msra.mxu0 0
    %764 = vmatprep.subr.bf16.mxu0 0
    %765 = vmatpush1.bf16.xpose.msra.mxu0 0
    %766 = vmatprep.subr.bf16.mxu0 0
    %767 = vmatpush1.bf16.xpose.msra.mxu0 0
    %768 = vmatprep.subr.bf16.mxu0 0
    %769 = vmatpush1.bf16.xpose.msra.mxu0 0
    %770 = vmatprep.subr.bf16.mxu0 0
    %771 = vmatpush1.bf16.xpose.msra.mxu0 0
    %772 = vmatprep.mubr.bf16.mxu0 0
    %773 = vmatmul.mubr.bf16.gmra.mrb[0].mxu0 %v735
    %v774 = vpop.f32.mrb[0].mxu0
    %v775 = vadd.f32 0.0, %v774
    %v776 = vpop.f32.mrb[0].mxu0
    %v777 = vpop.f32.mrb[0].mxu0
    %v778 = vpop.f32.mrb[0].mxu0
    %779 = vdwg.mxu0
    %vm780 = vcmask 64512
    %v781 = vsel %vm780, %v425, -inf
    %782 = vmax.xlane.f32.xlu0 %v781
    %v783 = vpop.xlane.xlu0 %782
    %v784 = vsel %vm780, %v477, -inf
    %785 = vmax.xlane.f32.xlu0 %v784
    %v786 = vpop.xlane.xlu0 %785
    %v787 = vsel %vm780, %v527, -inf
    %788 = vmax.xlane.f32.xlu0 %v787
    %v789 = vpop.xlane.xlu0 %788
    %v790 = vsel %vm780, %v577, -inf
    %791 = vmax.xlane.f32.xlu0 %v790
    %v792 = vpop.xlane.xlu0 %791
    %v793 = vsel %vm780, %v625, -inf
    %794 = vmax.xlane.f32.xlu0 %v793
    %v795 = vpop.xlane.xlu0 %794
    %v796 = vsel %vm780, %v675, -inf
    %797 = vmax.xlane.f32.xlu0 %v796
    %v798 = vpop.xlane.xlu0 %797
    %v799 = vsel %vm780, %v725, -inf
    %800 = vmax.xlane.f32.xlu0 %v799
    %v801 = vpop.xlane.xlu0 %800
    %v802 = vsel %vm780, %v775, -inf
    %803 = vmax.xlane.f32.xlu0 %v802
    %v804 = vpop.xlane.xlu0 %803
    %v805 = vsub.f32 %v425, %v783
    %v806 = vsub.f32 %v477, %v786
    %v807 = vsub.f32 %v527, %v789
    %v808 = vsub.f32 %v577, %v792
    %v809 = vsub.f32 %v625, %v795
    %v810 = vsub.f32 %v675, %v798
    %v811 = vsub.f32 %v725, %v801
    %v812 = vsub.f32 %v775, %v804
    %v813 = vmul.f32 %v805, 1.442695
    %v814 = vpow.pop %v813
    %v815 = vmul.f32 %v806, 1.442695
    %v816 = vpow.pop %v815
    %v817 = vmul.f32 %v807, 1.442695
    %v818 = vpow.pop %v817
    %v819 = vmul.f32 %v808, 1.442695
    %v820 = vpow.pop %v819
    %v821 = vmul.f32 %v809, 1.442695
    %v822 = vpow.pop %v821
    %v823 = vmul.f32 %v810, 1.442695
    %v824 = vpow.pop %v823
    %v825 = vmul.f32 %v811, 1.442695
    %v826 = vpow.pop %v825
    %v827 = vmul.f32 %v812, 1.442695
    %v828 = vpow.pop %v827
    %v829 = vsel %vm780, %v814, 0.0
    %830 = vadd.xlane.f32.xlu0 %v829
    %v831 = vpop.xlane.xlu0 %830
    %v832 = vsel %vm780, %v816, 0.0
    %833 = vadd.xlane.f32.xlu0 %v832
    %v834 = vpop.xlane.xlu0 %833
    %v835 = vsel %vm780, %v818, 0.0
    %836 = vadd.xlane.f32.xlu0 %v835
    %v837 = vpop.xlane.xlu0 %836
    %v838 = vsel %vm780, %v820, 0.0
    %839 = vadd.xlane.f32.xlu0 %v838
    %v840 = vpop.xlane.xlu0 %839
    %v841 = vsel %vm780, %v822, 0.0
    %842 = vadd.xlane.f32.xlu0 %v841
    %v843 = vpop.xlane.xlu0 %842
    %v844 = vsel %vm780, %v824, 0.0
    %845 = vadd.xlane.f32.xlu0 %v844
    %v846 = vpop.xlane.xlu0 %845
    %v847 = vsel %vm780, %v826, 0.0
    %848 = vadd.xlane.f32.xlu0 %v847
    %v849 = vpop.xlane.xlu0 %848
    %v850 = vsel %vm780, %v828, 0.0
    %851 = vadd.xlane.f32.xlu0 %v850
    %v852 = vpop.xlane.xlu0 %851
    %v853 = vrcp.pop %v831
    %v854 = vrcp.pop %v834
    %v855 = vrcp.pop %v837
    %v856 = vrcp.pop %v840
    %v857 = vrcp.pop %v843
    %v858 = vrcp.pop %v846
    %v859 = vrcp.pop %v849
    %v860 = vrcp.pop %v852
    %v861 = vmul.f32 %v814, %v853
    %v862 = vmul.f32 %v816, %v854
    %v863 = vmul.f32 %v818, %v855
    %v864 = vmul.f32 %v820, %v856
    %v865 = vmul.f32 %v822, %v857
    %v866 = vmul.f32 %v824, %v858
    %v867 = vmul.f32 %v826, %v859
    %v868 = vmul.f32 %v828, %v860
    %v869 = vpack.c.bf16 %v862, %v861
    %v870 = vpack.c.bf16 %v864, %v863
    %v871 = vpack.c.bf16 %v866, %v865
    %v872 = vpack.c.bf16 %v868, %v867
    %v874 = vsel %vm780, %v869, 0
    %vm876 = vcmask 1043456
    %v878 = vsel %vm876, %v382, 0
    %880 = vmatprep.subr.bf16.mxu0 0
    %881 = vmatpush1.bf16.msra.mxu0 %v878
    %882 = vmatprep.subr.bf16.mxu0 0
    %883 = vmatpush1.bf16.msra.mxu0 0
    %884 = vmatprep.subr.bf16.mxu0 0
    %885 = vmatpush1.bf16.msra.mxu0 0
    %886 = vmatprep.subr.bf16.mxu0 0
    %887 = vmatpush1.bf16.msra.mxu0 0
    %888 = vmatprep.subr.bf16.mxu0 0
    %889 = vmatpush1.bf16.msra.mxu0 0
    %890 = vmatprep.subr.bf16.mxu0 0
    %891 = vmatpush1.bf16.msra.mxu0 0
    %892 = vmatprep.subr.bf16.mxu0 0
    %893 = vmatpush1.bf16.msra.mxu0 0
    %894 = vmatprep.subr.bf16.mxu0 0
    %895 = vmatpush1.bf16.msra.mxu0 0
    %896 = vmatprep.subr.bf16.mxu0 0
    %897 = vmatpush1.bf16.msra.mxu0 0
    %898 = vmatprep.subr.bf16.mxu0 0
    %899 = vmatpush1.bf16.msra.mxu0 0
    %900 = vmatprep.subr.bf16.mxu0 0
    %901 = vmatpush1.bf16.msra.mxu0 0
    %902 = vmatprep.subr.bf16.mxu0 0
    %903 = vmatpush1.bf16.msra.mxu0 0
    %904 = vmatprep.subr.bf16.mxu0 0
    %905 = vmatpush1.bf16.msra.mxu0 0
    %906 = vmatprep.subr.bf16.mxu0 0
    %907 = vmatpush1.bf16.msra.mxu0 0
    %908 = vmatprep.subr.bf16.mxu0 0
    %909 = vmatpush1.bf16.msra.mxu0 0
    %910 = vmatprep.subr.bf16.mxu0 0
    %911 = vmatpush1.bf16.msra.mxu0 0
    %912 = vmatprep.mubr.bf16.mxu0 0
    %913 = vmatmul.mubr.bf16.gmra.mrb[0].mxu0 %v874
    %v914 = vpop.f32.mrb[0].mxu0
    %v915 = vadd.f32 0.0, %v914
    %v916 = vpop.f32.mrb[0].mxu0
    %v917 = vpop.f32.mrb[0].mxu0
    %v918 = vpop.f32.mrb[0].mxu0
    %919 = vdwg.mxu0
    %920 = vst.msk [vmem:[#allocation3] sm:$0xff] %vm383, %v915
    %v922 = vrot.slane %v869, 4
    %924 = vrot.lane.b32.xlu0 %v382, 96
    %v925 = vpop.permute.xlu0 %924
    %v927 = vsel %vm780, %v922, 0
    %v930 = vsel %vm876, %v925, 0
    %932 = vmatprep.subr.bf16.mxu0 0
    %933 = vmatpush1.bf16.msra.mxu0 %v930
    %934 = vmatprep.subr.bf16.mxu0 0
    %935 = vmatpush1.bf16.msra.mxu0 0
    %936 = vmatprep.subr.bf16.mxu0 0
    %937 = vmatpush1.bf16.msra.mxu0 0
    %938 = vmatprep.subr.bf16.mxu0 0
    %939 = vmatpush1.bf16.msra.mxu0 0
    %940 = vmatprep.subr.bf16.mxu0 0
    %941 = vmatpush1.bf16.msra.mxu0 0
    %942 = vmatprep.subr.bf16.mxu0 0
    %943 = vmatpush1.bf16.msra.mxu0 0
    %944 = vmatprep.subr.bf16.mxu0 0
    %945 = vmatpush1.bf16.msra.mxu0 0
    %946 = vmatprep.subr.bf16.mxu0 0
    %947 = vmatpush1.bf16.msra.mxu0 0
    %948 = vmatprep.subr.bf16.mxu0 0
    %949 = vmatpush1.bf16.msra.mxu0 0
    %950 = vmatprep.subr.bf16.mxu0 0
    %951 = vmatpush1.bf16.msra.mxu0 0
    %952 = vmatprep.subr.bf16.mxu0 0
    %953 = vmatpush1.bf16.msra.mxu0 0
    %954 = vmatprep.subr.bf16.mxu0 0
    %955 = vmatpush1.bf16.msra.mxu0 0
    %956 = vmatprep.subr.bf16.mxu0 0
    %957 = vmatpush1.bf16.msra.mxu0 0
    %958 = vmatprep.subr.bf16.mxu0 0
    %959 = vmatpush1.bf16.msra.mxu0 0
    %960 = vmatprep.subr.bf16.mxu0 0
    %961 = vmatpush1.bf16.msra.mxu0 0
    %962 = vmatprep.subr.bf16.mxu0 0
    %963 = vmatpush1.bf16.msra.mxu0 0
    %964 = vmatprep.mubr.bf16.mxu0 0
    %965 = vmatmul.mubr.bf16.gmra.mrb[0].mxu0 %v927
    %v966 = vpop.f32.mrb[0].mxu0
    %v967 = vadd.f32 0.0, %v966
    %v968 = vpop.f32.mrb[0].mxu0
    %v969 = vpop.f32.mrb[0].mxu0
    %v970 = vpop.f32.mrb[0].mxu0
    %971 = vdwg.mxu0
    %973 = vrot.lane.b32.xlu0 %v967, 32
    %v974 = vpop.permute.xlu0 %973
    %vm976 = vcmask 523520
    %977 = vst.msk [vmem:[#allocation3] sm:$0xff] %vm976, %v974
    %978 = vrot.lane.b32.xlu0 %v382, 64
    %v979 = vpop.permute.xlu0 %978
    %v981 = vsel %vm780, %v870, 0
    %v984 = vsel %vm876, %v979, 0
    %986 = vmatprep.subr.bf16.mxu0 0
    %987 = vmatpush1.bf16.msra.mxu0 %v984
    %988 = vmatprep.subr.bf16.mxu0 0
    %989 = vmatpush1.bf16.msra.mxu0 0
    %990 = vmatprep.subr.bf16.mxu0 0
    %991 = vmatpush1.bf16.msra.mxu0 0
    %992 = vmatprep.subr.bf16.mxu0 0
    %993 = vmatpush1.bf16.msra.mxu0 0
    %994 = vmatprep.subr.bf16.mxu0 0
    %995 = vmatpush1.bf16.msra.mxu0 0
    %996 = vmatprep.subr.bf16.mxu0 0
    %997 = vmatpush1.bf16.msra.mxu0 0
    %998 = vmatprep.subr.bf16.mxu0 0
    %999 = vmatpush1.bf16.msra.mxu0 0
    %1000 = vmatprep.subr.bf16.mxu0 0
    %1001 = vmatpush1.bf16.msra.mxu0 0
    %1002 = vmatprep.subr.bf16.mxu0 0
    %1003 = vmatpush1.bf16.msra.mxu0 0
    %1004 = vmatprep.subr.bf16.mxu0 0
    %1005 = vmatpush1.bf16.msra.mxu0 0
    %1006 = vmatprep.subr.bf16.mxu0 0
    %1007 = vmatpush1.bf16.msra.mxu0 0
    %1008 = vmatprep.subr.bf16.mxu0 0
    %1009 = vmatpush1.bf16.msra.mxu0 0
    %1010 = vmatprep.subr.bf16.mxu0 0
    %1011 = vmatpush1.bf16.msra.mxu0 0
    %1012 = vmatprep.subr.bf16.mxu0 0
    %1013 = vmatpush1.bf16.msra.mxu0 0
    %1014 = vmatprep.subr.bf16.mxu0 0
    %1015 = vmatpush1.bf16.msra.mxu0 0
    %1016 = vmatprep.subr.bf16.mxu0 0
    %1017 = vmatpush1.bf16.msra.mxu0 0
    %1018 = vmatprep.mubr.bf16.mxu0 0
    %1019 = vmatmul.mubr.bf16.gmra.mrb[0].mxu0 %v981
    %v1020 = vpop.f32.mrb[0].mxu0
    %v1021 = vadd.f32 0.0, %v1020
    %v1022 = vpop.f32.mrb[0].mxu0
    %v1023 = vpop.f32.mrb[0].mxu0
    %v1024 = vpop.f32.mrb[0].mxu0
    %1025 = vdwg.mxu0
    %1027 = vrot.lane.b32.xlu0 %v1021, 64
    %v1028 = vpop.permute.xlu0 %1027
    %vm1030 = vcmask 785920
    %1031 = vst.msk [vmem:[#allocation3] sm:$0xff] %vm1030, %v1028
    %v1033 = vrot.slane %v870, 4
    %1034 = vrot.lane.b32.xlu0 %v382, 32
    %v1035 = vpop.permute.xlu0 %1034
    %v1037 = vsel %vm780, %v1033, 0
    %v1040 = vsel %vm876, %v1035, 0
    %1042 = vmatprep.subr.bf16.mxu0 0
    %1043 = vmatpush1.bf16.msra.mxu0 %v1040
    %1044 = vmatprep.subr.bf16.mxu0 0
    %1045 = vmatpush1.bf16.msra.mxu0 0
    %1046 = vmatprep.subr.bf16.mxu0 0
    %1047 = vmatpush1.bf16.msra.mxu0 0
    %1048 = vmatprep.subr.bf16.mxu0 0
    %1049 = vmatpush1.bf16.msra.mxu0 0
    %1050 = vmatprep.subr.bf16.mxu0 0
    %1051 = vmatpush1.bf16.msra.mxu0 0
    %1052 = vmatprep.subr.bf16.mxu0 0
    %1053 = vmatpush1.bf16.msra.mxu0 0
    %1054 = vmatprep.subr.bf16.mxu0 0
    %1055 = vmatpush1.bf16.msra.mxu0 0
    %1056 = vmatprep.subr.bf16.mxu0 0
    %1057 = vmatpush1.bf16.msra.mxu0 0
    %1058 = vmatprep.subr.bf16.mxu0 0
    %1059 = vmatpush1.bf16.msra.mxu0 0
    %1060 = vmatprep.subr.bf16.mxu0 0
    %1061 = vmatpush1.bf16.msra.mxu0 0
    %1062 = vmatprep.subr.bf16.mxu0 0
    %1063 = vmatpush1.bf16.msra.mxu0 0
    %1064 = vmatprep.subr.bf16.mxu0 0
    %1065 = vmatpush1.bf16.msra.mxu0 0
    %1066 = vmatprep.subr.bf16.mxu0 0
    %1067 = vmatpush1.bf16.msra.mxu0 0
    %1068 = vmatprep.subr.bf16.mxu0 0
    %1069 = vmatpush1.bf16.msra.mxu0 0
    %1070 = vmatprep.subr.bf16.mxu0 0
    %1071 = vmatpush1.bf16.msra.mxu0 0
    %1072 = vmatprep.subr.bf16.mxu0 0
    %1073 = vmatpush1.bf16.msra.mxu0 0
    %1074 = vmatprep.mubr.bf16.mxu0 0
    %1075 = vmatmul.mubr.bf16.gmra.mrb[0].mxu0 %v1037
    %v1076 = vpop.f32.mrb[0].mxu0
    %v1077 = vadd.f32 0.0, %v1076
    %v1078 = vpop.f32.mrb[0].mxu0
    %v1079 = vpop.f32.mrb[0].mxu0
    %v1080 = vpop.f32.mrb[0].mxu0
    %1081 = vdwg.mxu0
    %1083 = vrot.lane.b32.xlu0 %v1077, 96
    %v1084 = vpop.permute.xlu0 %1083
    %vm1086 = vcmask 1048320
    %1087 = vst.msk [vmem:[#allocation3] sm:$0xff] %vm1086, %v1084
    %v1088 = vrot.slane %v382, 4
    %v1090 = vsel %vm780, %v871, 0
    %v1093 = vsel %vm876, %v1088, 0
    %1095 = vmatprep.subr.bf16.mxu0 0
    %1096 = vmatpush1.bf16.msra.mxu0 %v1093
    %1097 = vmatprep.subr.bf16.mxu0 0
    %1098 = vmatpush1.bf16.msra.mxu0 0
    %1099 = vmatprep.subr.bf16.mxu0 0
    %1100 = vmatpush1.bf16.msra.mxu0 0
    %1101 = vmatprep.subr.bf16.mxu0 0
    %1102 = vmatpush1.bf16.msra.mxu0 0
    %1103 = vmatprep.subr.bf16.mxu0 0
    %1104 = vmatpush1.bf16.msra.mxu0 0
    %1105 = vmatprep.subr.bf16.mxu0 0
    %1106 = vmatpush1.bf16.msra.mxu0 0
    %1107 = vmatprep.subr.bf16.mxu0 0
    %1108 = vmatpush1.bf16.msra.mxu0 0
    %1109 = vmatprep.subr.bf16.mxu0 0
    %1110 = vmatpush1.bf16.msra.mxu0 0
    %1111 = vmatprep.subr.bf16.mxu0 0
    %1112 = vmatpush1.bf16.msra.mxu0 0
    %1113 = vmatprep.subr.bf16.mxu0 0
    %1114 = vmatpush1.bf16.msra.mxu0 0
    %1115 = vmatprep.subr.bf16.mxu0 0
    %1116 = vmatpush1.bf16.msra.mxu0 0
    %1117 = vmatprep.subr.bf16.mxu0 0
    %1118 = vmatpush1.bf16.msra.mxu0 0
    %1119 = vmatprep.subr.bf16.mxu0 0
    %1120 = vmatpush1.bf16.msra.mxu0 0
    %1121 = vmatprep.subr.bf16.mxu0 0
    %1122 = vmatpush1.bf16.msra.mxu0 0
    %1123 = vmatprep.subr.bf16.mxu0 0
    %1124 = vmatpush1.bf16.msra.mxu0 0
    %1125 = vmatprep.subr.bf16.mxu0 0
    %1126 = vmatpush1.bf16.msra.mxu0 0
    %1127 = vmatprep.mubr.bf16.mxu0 0
    %1128 = vmatmul.mubr.bf16.gmra.mrb[0].mxu0 %v1090
    %v1129 = vpop.f32.mrb[0].mxu0
    %v1130 = vadd.f32 0.0, %v1129
    %v1131 = vpop.f32.mrb[0].mxu0
    %v1132 = vpop.f32.mrb[0].mxu0
    %v1133 = vpop.f32.mrb[0].mxu0
    %1134 = vdwg.mxu0
    %1135 = vst.msk [vmem:[#allocation3 + $0x8] sm:$0xff] %vm383, %v1130
    %v1137 = vrot.slane %v871, 4
    %1138 = vrot.lane.b32.xlu0 %v1088, 96
    %v1139 = vpop.permute.xlu0 %1138
    %v1141 = vsel %vm780, %v1137, 0
    %v1144 = vsel %vm876, %v1139, 0
    %1146 = vmatprep.subr.bf16.mxu0 0
    %1147 = vmatpush1.bf16.msra.mxu0 %v1144
    %1148 = vmatprep.subr.bf16.mxu0 0
    %1149 = vmatpush1.bf16.msra.mxu0 0
    %1150 = vmatprep.subr.bf16.mxu0 0
    %1151 = vmatpush1.bf16.msra.mxu0 0
    %1152 = vmatprep.subr.bf16.mxu0 0
    %1153 = vmatpush1.bf16.msra.mxu0 0
    %1154 = vmatprep.subr.bf16.mxu0 0
    %1155 = vmatpush1.bf16.msra.mxu0 0
    %1156 = vmatprep.subr.bf16.mxu0 0
    %1157 = vmatpush1.bf16.msra.mxu0 0
    %1158 = vmatprep.subr.bf16.mxu0 0
    %1159 = vmatpush1.bf16.msra.mxu0 0
    %1160 = vmatprep.subr.bf16.mxu0 0
    %1161 = vmatpush1.bf16.msra.mxu0 0
    %1162 = vmatprep.subr.bf16.mxu0 0
    %1163 = vmatpush1.bf16.msra.mxu0 0
    %1164 = vmatprep.subr.bf16.mxu0 0
    %1165 = vmatpush1.bf16.msra.mxu0 0
    %1166 = vmatprep.subr.bf16.mxu0 0
    %1167 = vmatpush1.bf16.msra.mxu0 0
    %1168 = vmatprep.subr.bf16.mxu0 0
    %1169 = vmatpush1.bf16.msra.mxu0 0
    %1170 = vmatprep.subr.bf16.mxu0 0
    %1171 = vmatpush1.bf16.msra.mxu0 0
    %1172 = vmatprep.subr.bf16.mxu0 0
    %1173 = vmatpush1.bf16.msra.mxu0 0
    %1174 = vmatprep.subr.bf16.mxu0 0
    %1175 = vmatpush1.bf16.msra.mxu0 0
    %1176 = vmatprep.subr.bf16.mxu0 0
    %1177 = vmatpush1.bf16.msra.mxu0 0
    %1178 = vmatprep.mubr.bf16.mxu0 0
    %1179 = vmatmul.mubr.bf16.gmra.mrb[0].mxu0 %v1141
    %v1180 = vpop.f32.mrb[0].mxu0
    %v1181 = vadd.f32 0.0, %v1180
    %v1182 = vpop.f32.mrb[0].mxu0
    %v1183 = vpop.f32.mrb[0].mxu0
    %v1184 = vpop.f32.mrb[0].mxu0
    %1185 = vdwg.mxu0
    %1187 = vrot.lane.b32.xlu0 %v1181, 32
    %v1188 = vpop.permute.xlu0 %1187
    %1190 = vst.msk [vmem:[#allocation3 + $0x8] sm:$0xff] %vm976, %v1188
    %1191 = vrot.lane.b32.xlu0 %v1088, 64
    %v1192 = vpop.permute.xlu0 %1191
    %v1194 = vsel %vm780, %v872, 0
    %v1197 = vsel %vm876, %v1192, 0
    %1199 = vmatprep.subr.bf16.mxu0 0
    %1200 = vmatpush1.bf16.msra.mxu0 %v1197
    %1201 = vmatprep.subr.bf16.mxu0 0
    %1202 = vmatpush1.bf16.msra.mxu0 0
    %1203 = vmatprep.subr.bf16.mxu0 0
    %1204 = vmatpush1.bf16.msra.mxu0 0
    %1205 = vmatprep.subr.bf16.mxu0 0
    %1206 = vmatpush1.bf16.msra.mxu0 0
    %1207 = vmatprep.subr.bf16.mxu0 0
    %1208 = vmatpush1.bf16.msra.mxu0 0
    %1209 = vmatprep.subr.bf16.mxu0 0
    %1210 = vmatpush1.bf16.msra.mxu0 0
    %1211 = vmatprep.subr.bf16.mxu0 0
    %1212 = vmatpush1.bf16.msra.mxu0 0
    %1213 = vmatprep.subr.bf16.mxu0 0
    %1214 = vmatpush1.bf16.msra.mxu0 0
    %1215 = vmatprep.subr.bf16.mxu0 0
    %1216 = vmatpush1.bf16.msra.mxu0 0
    %1217 = vmatprep.subr.bf16.mxu0 0
    %1218 = vmatpush1.bf16.msra.mxu0 0
    %1219 = vmatprep.subr.bf16.mxu0 0
    %1220 = vmatpush1.bf16.msra.mxu0 0
    %1221 = vmatprep.subr.bf16.mxu0 0
    %1222 = vmatpush1.bf16.msra.mxu0 0
    %1223 = vmatprep.subr.bf16.mxu0 0
    %1224 = vmatpush1.bf16.msra.mxu0 0
    %1225 = vmatprep.subr.bf16.mxu0 0
    %1226 = vmatpush1.bf16.msra.mxu0 0
    %1227 = vmatprep.subr.bf16.mxu0 0
    %1228 = vmatpush1.bf16.msra.mxu0 0
    %1229 = vmatprep.subr.bf16.mxu0 0
    %1230 = vmatpush1.bf16.msra.mxu0 0
    %1231 = vmatprep.mubr.bf16.mxu0 0
    %1232 = vmatmul.mubr.bf16.gmra.mrb[0].mxu0 %v1194
    %v1233 = vpop.f32.mrb[0].mxu0
    %v1234 = vadd.f32 0.0, %v1233
    %v1235 = vpop.f32.mrb[0].mxu0
    %v1236 = vpop.f32.mrb[0].mxu0
    %v1237 = vpop.f32.mrb[0].mxu0
    %1238 = vdwg.mxu0
    %1240 = vrot.lane.b32.xlu0 %v1234, 64
    %v1241 = vpop.permute.xlu0 %1240
    %1243 = vst.msk [vmem:[#allocation3 + $0x8] sm:$0xff] %vm1030, %v1241
    %v1245 = vrot.slane %v872, 4
    %1246 = vrot.lane.b32.xlu0 %v1088, 32
    %v1247 = vpop.permute.xlu0 %1246
    %v1249 = vsel %vm780, %v1245, 0
    %v1252 = vsel %vm876, %v1247, 0
    %1254 = vmatprep.subr.bf16.mxu0 0
    %1255 = vmatpush1.bf16.msra.mxu0 %v1252
    %1256 = vmatprep.subr.bf16.mxu0 0
    %1257 = vmatpush1.bf16.msra.mxu0 0
    %1258 = vmatprep.subr.bf16.mxu0 0
    %1259 = vmatpush1.bf16.msra.mxu0 0
    %1260 = vmatprep.subr.bf16.mxu0 0
    %1261 = vmatpush1.bf16.msra.mxu0 0
    %1262 = vmatprep.subr.bf16.mxu0 0
    %1263 = vmatpush1.bf16.msra.mxu0 0
    %1264 = vmatprep.subr.bf16.mxu0 0
    %1265 = vmatpush1.bf16.msra.mxu0 0
    %1266 = vmatprep.subr.bf16.mxu0 0
    %1267 = vmatpush1.bf16.msra.mxu0 0
    %1268 = vmatprep.subr.bf16.mxu0 0
    %1269 = vmatpush1.bf16.msra.mxu0 0
    %1270 = vmatprep.subr.bf16.mxu0 0
    %1271 = vmatpush1.bf16.msra.mxu0 0
    %1272 = vmatprep.subr.bf16.mxu0 0
    %1273 = vmatpush1.bf16.msra.mxu0 0
    %1274 = vmatprep.subr.bf16.mxu0 0
    %1275 = vmatpush1.bf16.msra.mxu0 0
    %1276 = vmatprep.subr.bf16.mxu0 0
    %1277 = vmatpush1.bf16.msra.mxu0 0
    %1278 = vmatprep.subr.bf16.mxu0 0
    %1279 = vmatpush1.bf16.msra.mxu0 0
    %1280 = vmatprep.subr.bf16.mxu0 0
    %1281 = vmatpush1.bf16.msra.mxu0 0
    %1282 = vmatprep.subr.bf16.mxu0 0
    %1283 = vmatpush1.bf16.msra.mxu0 0
    %1284 = vmatprep.subr.bf16.mxu0 0
    %1285 = vmatpush1.bf16.msra.mxu0 0
    %1286 = vmatprep.mubr.bf16.mxu0 0
    %1287 = vmatmul.mubr.bf16.gmra.mrb[0].mxu0 %v1249
    %v1288 = vpop.f32.mrb[0].mxu0
    %v1289 = vadd.f32 0.0, %v1288
    %v1290 = vpop.f32.mrb[0].mxu0
    %v1291 = vpop.f32.mrb[0].mxu0
    %v1292 = vpop.f32.mrb[0].mxu0
    %1293 = vdwg.mxu0
    %1295 = vrot.lane.b32.xlu0 %v1289, 96
    %v1296 = vpop.permute.xlu0 %1295
    %1298 = vst.msk [vmem:[#allocation3 + $0x8] sm:$0xff] %vm1086, %v1296
    %v1299 = vld [vmem:[#allocation3] sm:$0xff]
    %v1300 = vld [vmem:[#allocation3 + $0x8] sm:$0xff]
    %v1301 = vpack.c.bf16 %v1300, %v1299
    %v1302 = vlaneseq
    %v1303 = vshrl.u32 %v1302, 7
    %v1304 = vsub.s32 3, %v1303
    %v1305 = vrot.slane %v147, %v1304
    %v1322 = vunpack.c.l.b16 %v115
    %v1323 = vunpack.c.l.b16 %v117
    %v1324 = vunpack.c.l.b16 %v119
    %v1325 = vunpack.c.l.b16 %v121
    %v1326 = vunpack.c.l.b16 %v123
    %v1327 = vunpack.c.l.b16 %v125
    %v1328 = vunpack.c.l.b16 %v127
    %v1329 = vunpack.c.l.b16 %v129
    %v1330 = vunpack.c.l.b16 %v131
    %v1331 = vunpack.c.l.b16 %v133
    %v1332 = vunpack.c.l.b16 %v135
    %v1333 = vunpack.c.l.b16 %v137
    %v1334 = vunpack.c.l.b16 %v139
    %v1335 = vunpack.c.l.b16 %v141
    %v1336 = vunpack.c.l.b16 %v143
    %v1337 = vunpack.c.l.b16 %v145
    %v1338 = vpack.c.b16 %v1323, %v1322
    %v1339 = vpack.c.b16 %v1325, %v1324
    %v1340 = vpack.c.b16 %v1327, %v1326
    %v1341 = vpack.c.b16 %v1329, %v1328
    %v1342 = vpack.c.b16 %v1331, %v1330
    %v1343 = vpack.c.b16 %v1333, %v1332
    %v1344 = vpack.c.b16 %v1335, %v1334
    %v1345 = vpack.c.b16 %v1337, %v1336
    %1354 = vmatprep.subr.bf16.mxu0 0
    %1355 = vmatpush1.bf16.msra.mxu0 %v1338
    %1356 = vmatprep.subr.bf16.mxu0 0
    %1357 = vmatpush1.bf16.msra.mxu0 %v1339
    %1358 = vmatprep.subr.bf16.mxu0 0
    %1359 = vmatpush1.bf16.msra.mxu0 %v1340
    %1360 = vmatprep.subr.bf16.mxu0 0
    %1361 = vmatpush1.bf16.msra.mxu0 %v1341
    %1362 = vmatprep.subr.bf16.mxu0 0
    %1363 = vmatpush1.bf16.msra.mxu0 %v1342
    %1364 = vmatprep.subr.bf16.mxu0 0
    %1365 = vmatpush1.bf16.msra.mxu0 %v1343
    %1366 = vmatprep.subr.bf16.mxu0 0
    %1367 = vmatpush1.bf16.msra.mxu0 %v1344
    %1368 = vmatprep.subr.bf16.mxu0 0
    %1369 = vmatpush1.bf16.msra.mxu0 %v1345
    %1370 = vmatprep.subr.bf16.mxu0 0
    %1371 = vmatpush1.bf16.msra.mxu0 0
    %1372 = vmatprep.subr.bf16.mxu0 0
    %1373 = vmatpush1.bf16.msra.mxu0 0
    %1374 = vmatprep.subr.bf16.mxu0 0
    %1375 = vmatpush1.bf16.msra.mxu0 0
    %1376 = vmatprep.subr.bf16.mxu0 0
    %1377 = vmatpush1.bf16.msra.mxu0 0
    %1378 = vmatprep.subr.bf16.mxu0 0
    %1379 = vmatpush1.bf16.msra.mxu0 0
    %1380 = vmatprep.subr.bf16.mxu0 0
    %1381 = vmatpush1.bf16.msra.mxu0 0
    %1382 = vmatprep.subr.bf16.mxu0 0
    %1383 = vmatpush1.bf16.msra.mxu0 0
    %1384 = vmatprep.subr.bf16.mxu0 0
    %1385 = vmatpush1.bf16.msra.mxu0 0
    %1386 = vmatprep.mubr.bf16.mxu0 0
    %1387 = vmatmul.mubr.bf16.gmra.mrb[0].mxu0 %v1301
    %v1388 = vpop.f32.mrb[0].mxu0
    %v1389 = vadd.f32 %v1305, %v1388
    %v1390 = vpop.f32.mrb[0].mxu0
    %v1391 = vpop.f32.mrb[0].mxu0
    %v1392 = vadd.f32 %v1305, %v1391
    %v1393 = vpop.f32.mrb[0].mxu0
    %1394 = vdwg.mxu0
    %v1395 = vadd.f32 %v1389, %v81
    %v1396 = vadd.f32 %v1392, %v82
    %v1397 = vlaneseq
    %v1398 = vshrl.u32 %v1397, 7
    %v1399 = vsub.s32 2, %v1398
    %v1400 = vrot.slane %v148, %v1399
    %v1401 = vmul.f32 %v1395, %v1400
    %v1402 = vmul.f32 %v1396, %v1400
    %1403 = vadd.xlane.f32.xlu0 %v1401
    %v1404 = vpop.xlane.xlu0 %1403
    %1405 = vadd.xlane.f32.xlu0 %v1402
    %v1406 = vpop.xlane.xlu0 %1405
    %v1407 = vmul.f32 %v1404, 0.00862069
    %v1408 = vmul.f32 %v1406, 0.00862069
    %v1409 = vsub.f32 %v1401, %v1407
    %v1410 = vsub.f32 %v1402, %v1408
    %v1411 = vmul.f32 %v1409, %v1400
    %v1412 = vmul.f32 %v1410, %v1400
    %v1413 = vmul.f32 %v1411, %v1411
    %v1414 = vmul.f32 %v1412, %v1412
    %1415 = vadd.xlane.f32.xlu0 %v1413
    %v1416 = vpop.xlane.xlu0 %1415
    %1417 = vadd.xlane.f32.xlu0 %v1414
    %v1418 = vpop.xlane.xlu0 %1417
    %v1419 = vmul.f32 %v1416, 0.00862069
    %v1420 = vmul.f32 %v1418, 0.00862069
    %v1421 = vadd.f32 %v1419, 1e-05
    %v1422 = vadd.f32 %v1420, 1e-05
    %v1423 = vrsqrt.pop %v1421
    %v1424 = vrsqrt.pop %v1422
    %v1425 = vmul.f32 %v1411, %v1423
    %v1426 = vmul.f32 %v1412, %v1424
    %v1427 = vlaneseq
    %v1428 = vshrl.u32 %v1427, 7
    %v1429 = vsub.s32 4, %v1428
    %v1430 = vrot.slane %v147, %v1429
    %v1431 = vmul.f32 %v1425, %v1430
    %v1432 = vmul.f32 %v1426, %v1430
    %v1433 = vlaneseq
    %v1434 = vshrl.u32 %v1433, 7
    %v1435 = vsub.s32 5, %v1434
    %v1436 = vrot.slane %v147, %v1435
    %v1437 = vadd.f32 %v1431, %v1436
    %v1438 = vadd.f32 %v1432, %v1436
    %v1439 = vpack.c.bf16 %v1438, %v1437
    %v1440 = vlaneseq
    %v1441 = vshrl.u32 %v1440, 7
    %v1442 = vsub.s32 6, %v1441
    %v1443 = vrot.slane %v147, %v1442
    %v1444 = vunpack.c.h.b16 %v115
    %v1445 = vunpack.c.h.b16 %v117
    %v1446 = vunpack.c.h.b16 %v119
    %v1447 = vunpack.c.h.b16 %v121
    %v1448 = vunpack.c.h.b16 %v123
    %v1449 = vunpack.c.h.b16 %v125
    %v1450 = vunpack.c.h.b16 %v127
    %v1451 = vunpack.c.h.b16 %v129
    %v1452 = vunpack.c.h.b16 %v131
    %v1453 = vunpack.c.h.b16 %v133
    %v1454 = vunpack.c.h.b16 %v135
    %v1455 = vunpack.c.h.b16 %v137
    %v1456 = vunpack.c.h.b16 %v139
    %v1457 = vunpack.c.h.b16 %v141
    %v1458 = vunpack.c.h.b16 %v143
    %v1459 = vunpack.c.h.b16 %v145
    %v1460 = vpack.c.b16 %v1445, %v1444
    %v1461 = vpack.c.b16 %v1447, %v1446
    %v1462 = vpack.c.b16 %v1449, %v1448
    %v1463 = vpack.c.b16 %v1451, %v1450
    %v1464 = vpack.c.b16 %v1453, %v1452
    %v1465 = vpack.c.b16 %v1455, %v1454
    %v1466 = vpack.c.b16 %v1457, %v1456
    %v1467 = vpack.c.b16 %v1459, %v1458
    %1476 = vmatprep.subr.bf16.mxu0 0
    %1477 = vmatpush1.bf16.msra.mxu0 %v1460
    %1478 = vmatprep.subr.bf16.mxu0 0
    %1479 = vmatpush1.bf16.msra.mxu0 %v1461
    %1480 = vmatprep.subr.bf16.mxu0 0
    %1481 = vmatpush1.bf16.msra.mxu0 %v1462
    %1482 = vmatprep.subr.bf16.mxu0 0
    %1483 = vmatpush1.bf16.msra.mxu0 %v1463
    %1484 = vmatprep.subr.bf16.mxu0 0
    %1485 = vmatpush1.bf16.msra.mxu0 %v1464
    %1486 = vmatprep.subr.bf16.mxu0 0
    %1487 = vmatpush1.bf16.msra.mxu0 %v1465
    %1488 = vmatprep.subr.bf16.mxu0 0
    %1489 = vmatpush1.bf16.msra.mxu0 %v1466
    %1490 = vmatprep.subr.bf16.mxu0 0
    %1491 = vmatpush1.bf16.msra.mxu0 %v1467
    %1492 = vmatprep.subr.bf16.mxu0 0
    %1493 = vmatpush1.bf16.msra.mxu0 0
    %1494 = vmatprep.subr.bf16.mxu0 0
    %1495 = vmatpush1.bf16.msra.mxu0 0
    %1496 = vmatprep.subr.bf16.mxu0 0
    %1497 = vmatpush1.bf16.msra.mxu0 0
    %1498 = vmatprep.subr.bf16.mxu0 0
    %1499 = vmatpush1.bf16.msra.mxu0 0
    %1500 = vmatprep.subr.bf16.mxu0 0
    %1501 = vmatpush1.bf16.msra.mxu0 0
    %1502 = vmatprep.subr.bf16.mxu0 0
    %1503 = vmatpush1.bf16.msra.mxu0 0
    %1504 = vmatprep.subr.bf16.mxu0 0
    %1505 = vmatpush1.bf16.msra.mxu0 0
    %1506 = vmatprep.subr.bf16.mxu0 0
    %1507 = vmatpush1.bf16.msra.mxu0 0
    %1508 = vmatprep.mubr.bf16.mxu0 0
    %1509 = vmatmul.mubr.bf16.gmra.mrb[0].mxu0 %v1439
    %v1510 = vpop.f32.mrb[0].mxu0
    %v1511 = vadd.f32 %v1443, %v1510
    %v1512 = vpop.f32.mrb[0].mxu0
    %v1513 = vpop.f32.mrb[0].mxu0
    %v1514 = vadd.f32 %v1443, %v1513
    %v1515 = vpop.f32.mrb[0].mxu0
    %1516 = vdwg.mxu0
    %v1517 = vmax.f32 %v1511, 0.0
    %v1518 = vmax.f32 %v1514, 0.0
    %v1519 = vpack.c.bf16 %v1518, %v1517
    %v1520 = vlaneseq
    %v1521 = vshrl.u32 %v1520, 7
    %v1522 = vsub.s32 7, %v1521
    %v1523 = vrot.slane %v147, %v1522
    %v1540 = vunpack.c.l.b16 %v116
    %v1541 = vunpack.c.l.b16 %v118
    %v1542 = vunpack.c.l.b16 %v120
    %v1543 = vunpack.c.l.b16 %v122
    %v1544 = vunpack.c.l.b16 %v124
    %v1545 = vunpack.c.l.b16 %v126
    %v1546 = vunpack.c.l.b16 %v128
    %v1547 = vunpack.c.l.b16 %v130
    %v1548 = vunpack.c.l.b16 %v132
    %v1549 = vunpack.c.l.b16 %v134
    %v1550 = vunpack.c.l.b16 %v136
    %v1551 = vunpack.c.l.b16 %v138
    %v1552 = vunpack.c.l.b16 %v140
    %v1553 = vunpack.c.l.b16 %v142
    %v1554 = vunpack.c.l.b16 %v144
    %v1555 = vunpack.c.l.b16 %v146
    %v1556 = vpack.c.b16 %v1541, %v1540
    %v1557 = vpack.c.b16 %v1543, %v1542
    %v1558 = vpack.c.b16 %v1545, %v1544
    %v1559 = vpack.c.b16 %v1547, %v1546
    %v1560 = vpack.c.b16 %v1549, %v1548
    %v1561 = vpack.c.b16 %v1551, %v1550
    %v1562 = vpack.c.b16 %v1553, %v1552
    %v1563 = vpack.c.b16 %v1555, %v1554
    %1572 = vmatprep.subr.bf16.mxu0 0
    %1573 = vmatpush1.bf16.msra.mxu0 %v1556
    %1574 = vmatprep.subr.bf16.mxu0 0
    %1575 = vmatpush1.bf16.msra.mxu0 %v1557
    %1576 = vmatprep.subr.bf16.mxu0 0
    %1577 = vmatpush1.bf16.msra.mxu0 %v1558
    %1578 = vmatprep.subr.bf16.mxu0 0
    %1579 = vmatpush1.bf16.msra.mxu0 %v1559
    %1580 = vmatprep.subr.bf16.mxu0 0
    %1581 = vmatpush1.bf16.msra.mxu0 %v1560
    %1582 = vmatprep.subr.bf16.mxu0 0
    %1583 = vmatpush1.bf16.msra.mxu0 %v1561
    %1584 = vmatprep.subr.bf16.mxu0 0
    %1585 = vmatpush1.bf16.msra.mxu0 %v1562
    %1586 = vmatprep.subr.bf16.mxu0 0
    %1587 = vmatpush1.bf16.msra.mxu0 %v1563
    %1588 = vmatprep.subr.bf16.mxu0 0
    %1589 = vmatpush1.bf16.msra.mxu0 0
    %1590 = vmatprep.subr.bf16.mxu0 0
    %1591 = vmatpush1.bf16.msra.mxu0 0
    %1592 = vmatprep.subr.bf16.mxu0 0
    %1593 = vmatpush1.bf16.msra.mxu0 0
    %1594 = vmatprep.subr.bf16.mxu0 0
    %1595 = vmatpush1.bf16.msra.mxu0 0
    %1596 = vmatprep.subr.bf16.mxu0 0
    %1597 = vmatpush1.bf16.msra.mxu0 0
    %1598 = vmatprep.subr.bf16.mxu0 0
    %1599 = vmatpush1.bf16.msra.mxu0 0
    %1600 = vmatprep.subr.bf16.mxu0 0
    %1601 = vmatpush1.bf16.msra.mxu0 0
    %1602 = vmatprep.subr.bf16.mxu0 0
    %1603 = vmatpush1.bf16.msra.mxu0 0
    %1604 = vmatprep.mubr.bf16.mxu0 0
    %1605 = vmatmul.mubr.bf16.gmra.mrb[0].mxu0 %v1519
    %v1606 = vpop.f32.mrb[0].mxu0
    %v1607 = vadd.f32 %v1523, %v1606
    %v1608 = vpop.f32.mrb[0].mxu0
    %v1609 = vpop.f32.mrb[0].mxu0
    %v1610 = vadd.f32 %v1523, %v1609
    %v1611 = vpop.f32.mrb[0].mxu0
    %1612 = vdwg.mxu0
    %v1613 = vadd.f32 %v1607, %v1437
    %v1614 = vadd.f32 %v1610, %v1438
    %v1615 = vmul.f32 %v1613, %v1400
    %v1616 = vmul.f32 %v1614, %v1400
    %1617 = vadd.xlane.f32.xlu0 %v1615
    %v1618 = vpop.xlane.xlu0 %1617
    %1619 = vadd.xlane.f32.xlu0 %v1616
    %v1620 = vpop.xlane.xlu0 %1619
    %v1621 = vmul.f32 %v1618, 0.00862069
    %v1622 = vmul.f32 %v1620, 0.00862069
    %v1623 = vsub.f32 %v1615, %v1621
    %v1624 = vsub.f32 %v1616, %v1622
    %v1625 = vmul.f32 %v1623, %v1400
    %v1626 = vmul.f32 %v1624, %v1400
    %v1627 = vmul.f32 %v1625, %v1625
    %v1628 = vmul.f32 %v1626, %v1626
    %1629 = vadd.xlane.f32.xlu0 %v1627
    %v1630 = vpop.xlane.xlu0 %1629
    %1631 = vadd.xlane.f32.xlu0 %v1628
    %v1632 = vpop.xlane.xlu0 %1631
    %v1633 = vmul.f32 %v1630, 0.00862069
    %v1634 = vmul.f32 %v1632, 0.00862069
    %v1635 = vadd.f32 %v1633, 1e-05
    %v1636 = vadd.f32 %v1634, 1e-05
    %v1637 = vrsqrt.pop %v1635
    %v1638 = vrsqrt.pop %v1636
    %v1639 = vmul.f32 %v1625, %v1637
    %v1640 = vmul.f32 %v1626, %v1638
    %v1641 = vlaneseq
    %v1642 = vshrl.u32 %v1641, 7
    %v1643 = vsub.s32 0, %v1642
    %v1644 = vrot.slane %v148, %v1643
    %v1645 = vmul.f32 %v1639, %v1644
    %v1646 = vmul.f32 %v1640, %v1644
    %v1647 = vlaneseq
    %v1648 = vshrl.u32 %v1647, 7
    %v1649 = vsub.s32 1, %v1648
    %v1650 = vrot.slane %v148, %v1649
    %v1651 = vadd.f32 %v1645, %v1650
    %v1652 = vadd.f32 %v1646, %v1650
    %s1653 = scalar_lea.vmem [#allocation7], 192
    %v1654 = vld [vmem:[%s1653] sm:$0xff]
    %v1655 = vld [vmem:[%s1653 + $0x8] sm:$0xf]
    %v1656 = vld [vmem:[%s1653 + $0xc] sm:$0xff]
    %v1657 = vld [vmem:[%s1653 + $0x14] sm:$0xf]
    %v1658 = vld [vmem:[%s1653 + $0x18] sm:$0xff]
    %v1659 = vld [vmem:[%s1653 + $0x20] sm:$0xf]
    %v1660 = vld [vmem:[%s1653 + $0x24] sm:$0xff]
    %v1661 = vld [vmem:[%s1653 + $0x2c] sm:$0xf]
    %v1662 = vld [vmem:[%s1653 + $0x30] sm:$0xff]
    %v1663 = vld [vmem:[%s1653 + $0x38] sm:$0xf]
    %v1664 = vld [vmem:[%s1653 + $0x3c] sm:$0xff]
    %v1665 = vld [vmem:[%s1653 + $0x44] sm:$0xf]
    %v1666 = vld [vmem:[%s1653 + $0x48] sm:$0xff]
    %v1667 = vld [vmem:[%s1653 + $0x50] sm:$0xf]
    %v1668 = vld [vmem:[%s1653 + $0x54] sm:$0xff]
    %v1669 = vld [vmem:[%s1653 + $0x5c] sm:$0xf]
    %v1670 = vld [vmem:[%s1653 + $0x60] sm:$0xff]
    %v1671 = vld [vmem:[%s1653 + $0x68] sm:$0xf]
    %v1672 = vld [vmem:[%s1653 + $0x6c] sm:$0xff]
    %v1673 = vld [vmem:[%s1653 + $0x74] sm:$0xf]
    %v1674 = vld [vmem:[%s1653 + $0x78] sm:$0xff]
    %v1675 = vld [vmem:[%s1653 + $0x80] sm:$0xf]
    %v1676 = vld [vmem:[%s1653 + $0x84] sm:$0xff]
    %v1677 = vld [vmem:[%s1653 + $0x8c] sm:$0xf]
    %v1678 = vld [vmem:[%s1653 + $0x90] sm:$0xff]
    %v1679 = vld [vmem:[%s1653 + $0x98] sm:$0xf]
    %v1680 = vld [vmem:[%s1653 + $0x9c] sm:$0xff]
    %v1681 = vld [vmem:[%s1653 + $0xa4] sm:$0xf]
    %v1682 = vld [vmem:[%s1653 + $0xa8] sm:$0xff]
    %v1683 = vld [vmem:[%s1653 + $0xb0] sm:$0xf]
    %v1684 = vld [vmem:[%s1653 + $0xb4] sm:$0xff]
    %v1685 = vld [vmem:[%s1653 + $0xbc] sm:$0xf]
    %s1686 = scalar_lea.vmem [#allocation9], 192
    %v1687 = vld [vmem:[%s1686] sm:$0xff]
    %v1688 = vld [vmem:[%s1686 + $0x8] sm:$0xf]
    %v1689 = vld [vmem:[%s1686 + $0xc] sm:$0xff]
    %v1690 = vld [vmem:[%s1686 + $0x14] sm:$0xf]
    %v1691 = vld [vmem:[%s1686 + $0x18] sm:$0xff]
    %v1692 = vld [vmem:[%s1686 + $0x20] sm:$0xf]
    %v1693 = vld [vmem:[%s1686 + $0x24] sm:$0xff]
    %v1694 = vld [vmem:[%s1686 + $0x2c] sm:$0xf]
    %v1695 = vld [vmem:[%s1686 + $0x30] sm:$0xff]
    %v1696 = vld [vmem:[%s1686 + $0x38] sm:$0xf]
    %v1697 = vld [vmem:[%s1686 + $0x3c] sm:$0xff]
    %v1698 = vld [vmem:[%s1686 + $0x44] sm:$0xf]
    %v1699 = vld [vmem:[%s1686 + $0x48] sm:$0xff]
    %v1700 = vld [vmem:[%s1686 + $0x50] sm:$0xf]
    %v1701 = vld [vmem:[%s1686 + $0x54] sm:$0xff]
    %v1702 = vld [vmem:[%s1686 + $0x5c] sm:$0xf]
    %v1703 = vld [vmem:[%s1686 + $0x60] sm:$0xff]
    %v1704 = vld [vmem:[%s1686 + $0x68] sm:$0xf]
    %v1705 = vld [vmem:[%s1686 + $0x6c] sm:$0xff]
    %v1706 = vld [vmem:[%s1686 + $0x74] sm:$0xf]
    %v1707 = vld [vmem:[%s1686 + $0x78] sm:$0xff]
    %v1708 = vld [vmem:[%s1686 + $0x80] sm:$0xf]
    %v1709 = vld [vmem:[%s1686 + $0x84] sm:$0xff]
    %v1710 = vld [vmem:[%s1686 + $0x8c] sm:$0xf]
    %v1711 = vld [vmem:[%s1686 + $0x90] sm:$0xff]
    %v1712 = vld [vmem:[%s1686 + $0x98] sm:$0xf]
    %v1713 = vld [vmem:[%s1686 + $0x9c] sm:$0xff]
    %v1714 = vld [vmem:[%s1686 + $0xa4] sm:$0xf]
    %v1715 = vld [vmem:[%s1686 + $0xa8] sm:$0xff]
    %v1716 = vld [vmem:[%s1686 + $0xb0] sm:$0xf]
    %v1717 = vld [vmem:[%s1686 + $0xb4] sm:$0xff]
    %v1718 = vld [vmem:[%s1686 + $0xbc] sm:$0xf]
    %s1719 = scalar_lea.vmem [#allocation10], 16
    %v1720 = vld [vmem:[%s1719] sm:$0xff]
    %v1721 = vld [vmem:[%s1719 + $0x8] sm:$0xff]
    %v1722 = vpack.c.bf16 %v1652, %v1651
    %v1755 = vunpack.c.l.b16 %v1654
    %v1756 = vunpack.c.h.b16 %v1654
    %v1757 = vunpack.c.l.b16 %v1655
    %v1758 = vunpack.c.l.b16 %v1656
    %v1759 = vunpack.c.h.b16 %v1656
    %v1760 = vunpack.c.l.b16 %v1657
    %v1761 = vunpack.c.l.b16 %v1658
    %v1762 = vunpack.c.h.b16 %v1658
    %v1763 = vunpack.c.l.b16 %v1659
    %v1764 = vunpack.c.l.b16 %v1660
    %v1765 = vunpack.c.h.b16 %v1660
    %v1766 = vunpack.c.l.b16 %v1661
    %v1767 = vunpack.c.l.b16 %v1662
    %v1768 = vunpack.c.h.b16 %v1662
    %v1769 = vunpack.c.l.b16 %v1663
    %v1770 = vunpack.c.l.b16 %v1664
    %v1771 = vunpack.c.h.b16 %v1664
    %v1772 = vunpack.c.l.b16 %v1665
    %v1773 = vunpack.c.l.b16 %v1666
    %v1774 = vunpack.c.h.b16 %v1666
    %v1775 = vunpack.c.l.b16 %v1667
    %v1776 = vunpack.c.l.b16 %v1668
    %v1777 = vunpack.c.h.b16 %v1668
    %v1778 = vunpack.c.l.b16 %v1669
    %v1779 = vunpack.c.l.b16 %v1670
    %v1780 = vunpack.c.h.b16 %v1670
    %v1781 = vunpack.c.l.b16 %v1671
    %v1782 = vunpack.c.l.b16 %v1672
    %v1783 = vunpack.c.h.b16 %v1672
    %v1784 = vunpack.c.l.b16 %v1673
    %v1785 = vunpack.c.l.b16 %v1674
    %v1786 = vunpack.c.h.b16 %v1674
    %v1787 = vunpack.c.l.b16 %v1675
    %v1788 = vunpack.c.l.b16 %v1676
    %v1789 = vunpack.c.h.b16 %v1676
    %v1790 = vunpack.c.l.b16 %v1677
    %v1791 = vunpack.c.l.b16 %v1678
    %v1792 = vunpack.c.h.b16 %v1678
    %v1793 = vunpack.c.l.b16 %v1679
    %v1794 = vunpack.c.l.b16 %v1680
    %v1795 = vunpack.c.h.b16 %v1680
    %v1796 = vunpack.c.l.b16 %v1681
    %v1797 = vunpack.c.l.b16 %v1682
    %v1798 = vunpack.c.h.b16 %v1682
    %v1799 = vunpack.c.l.b16 %v1683
    %v1800 = vunpack.c.l.b16 %v1684
    %v1801 = vunpack.c.h.b16 %v1684
    %v1802 = vunpack.c.l.b16 %v1685
    %v1803 = vpack.c.b16 %v1758, %v1755
    %v1804 = vpack.c.b16 %v1759, %v1756
    %v1805 = vpack.c.b16 %v1760, %v1757
    %v1806 = vpack.c.b16 %v1764, %v1761
    %v1807 = vpack.c.b16 %v1765, %v1762
    %v1808 = vpack.c.b16 %v1766, %v1763
    %v1809 = vpack.c.b16 %v1770, %v1767
    %v1810 = vpack.c.b16 %v1771, %v1768
    %v1811 = vpack.c.b16 %v1772, %v1769
    %v1812 = vpack.c.b16 %v1776, %v1773
    %v1813 = vpack.c.b16 %v1777, %v1774
    %v1814 = vpack.c.b16 %v1778, %v1775
    %v1815 = vpack.c.b16 %v1782, %v1779
    %v1816 = vpack.c.b16 %v1783, %v1780
    %v1817 = vpack.c.b16 %v1784, %v1781
    %v1818 = vpack.c.b16 %v1788, %v1785
    %v1819 = vpack.c.b16 %v1789, %v1786
    %v1820 = vpack.c.b16 %v1790, %v1787
    %v1821 = vpack.c.b16 %v1794, %v1791
    %v1822 = vpack.c.b16 %v1795, %v1792
    %v1823 = vpack.c.b16 %v1796, %v1793
    %v1824 = vpack.c.b16 %v1800, %v1797
    %v1825 = vpack.c.b16 %v1801, %v1798
    %v1826 = vpack.c.b16 %v1802, %v1799
    %1851 = vmatprep.subr.bf16.mxu0 %v1804
    %1852 = vmatpush1.bf16.msra.mxu0 %v1803
    %1853 = vmatprep.subr.bf16.mxu0 %v1807
    %1854 = vmatpush1.bf16.msra.mxu0 %v1806
    %1855 = vmatprep.subr.bf16.mxu0 %v1810
    %1856 = vmatpush1.bf16.msra.mxu0 %v1809
    %1857 = vmatprep.subr.bf16.mxu0 %v1813
    %1858 = vmatpush1.bf16.msra.mxu0 %v1812
    %1859 = vmatprep.subr.bf16.mxu0 %v1816
    %1860 = vmatpush1.bf16.msra.mxu0 %v1815
    %1861 = vmatprep.subr.bf16.mxu0 %v1819
    %1862 = vmatpush1.bf16.msra.mxu0 %v1818
    %1863 = vmatprep.subr.bf16.mxu0 %v1822
    %1864 = vmatpush1.bf16.msra.mxu0 %v1821
    %1865 = vmatprep.subr.bf16.mxu0 %v1825
    %1866 = vmatpush1.bf16.msra.mxu0 %v1824
    %1867 = vmatprep.subr.bf16.mxu0 0
    %1868 = vmatpush1.bf16.msra.mxu0 0
    %1869 = vmatprep.subr.bf16.mxu0 0
    %1870 = vmatpush1.bf16.msra.mxu0 0
    %1871 = vmatprep.subr.bf16.mxu0 0
    %1872 = vmatpush1.bf16.msra.mxu0 0
    %1873 = vmatprep.subr.bf16.mxu0 0
    %1874 = vmatpush1.bf16.msra.mxu0 0
    %1875 = vmatprep.subr.bf16.mxu0 0
    %1876 = vmatpush1.bf16.msra.mxu0 0
    %1877 = vmatprep.subr.bf16.mxu0 0
    %1878 = vmatpush1.bf16.msra.mxu0 0
    %1879 = vmatprep.subr.bf16.mxu0 0
    %1880 = vmatpush1.bf16.msra.mxu0 0
    %1881 = vmatprep.subr.bf16.mxu0 0
    %1882 = vmatpush1.bf16.msra.mxu0 0
    %1883 = vmatprep.mubr.bf16.mxu0 0
    %1884 = vmatmul.mubr.bf16.gmra.mrb[0].mxu0 %v1722
    %v1885 = vpop.f32.mrb[0].mxu0
    %v1886 = vadd.f32 0.0, %v1885
    %v1887 = vpop.f32.mrb[0].mxu0
    %v1888 = vadd.f32 0.0, %v1887
    %v1889 = vpop.f32.mrb[0].mxu0
    %v1890 = vadd.f32 0.0, %v1889
    %v1891 = vpop.f32.mrb[0].mxu0
    %v1892 = vadd.f32 0.0, %v1891
    %1893 = vdwg.mxu0
    %1894 = vmatprep.subr.bf16.mxu0 0
    %1895 = vmatpush1.bf16.msra.mxu0 %v1805
    %1896 = vmatprep.subr.bf16.mxu0 0
    %1897 = vmatpush1.bf16.msra.mxu0 %v1808
    %1898 = vmatprep.subr.bf16.mxu0 0
    %1899 = vmatpush1.bf16.msra.mxu0 %v1811
    %1900 = vmatprep.subr.bf16.mxu0 0
    %1901 = vmatpush1.bf16.msra.mxu0 %v1814
    %1902 = vmatprep.subr.bf16.mxu0 0
    %1903 = vmatpush1.bf16.msra.mxu0 %v1817
    %1904 = vmatprep.subr.bf16.mxu0 0
    %1905 = vmatpush1.bf16.msra.mxu0 %v1820
    %1906 = vmatprep.subr.bf16.mxu0 0
    %1907 = vmatpush1.bf16.msra.mxu0 %v1823
    %1908 = vmatprep.subr.bf16.mxu0 0
    %1909 = vmatpush1.bf16.msra.mxu0 %v1826
    %1910 = vmatprep.subr.bf16.mxu0 0
    %1911 = vmatpush1.bf16.msra.mxu0 0
    %1912 = vmatprep.subr.bf16.mxu0 0
    %1913 = vmatpush1.bf16.msra.mxu0 0
    %1914 = vmatprep.subr.bf16.mxu0 0
    %1915 = vmatpush1.bf16.msra.mxu0 0
    %1916 = vmatprep.subr.bf16.mxu0 0
    %1917 = vmatpush1.bf16.msra.mxu0 0
    %1918 = vmatprep.subr.bf16.mxu0 0
    %1919 = vmatpush1.bf16.msra.mxu0 0
    %1920 = vmatprep.subr.bf16.mxu0 0
    %1921 = vmatpush1.bf16.msra.mxu0 0
    %1922 = vmatprep.subr.bf16.mxu0 0
    %1923 = vmatpush1.bf16.msra.mxu0 0
    %1924 = vmatprep.subr.bf16.mxu0 0
    %1925 = vmatpush1.bf16.msra.mxu0 0
    %1926 = vmatprep.mubr.bf16.mxu0 0
    %1927 = vmatmul.mubr.bf16.gmra.mrb[0].mxu0 %v1722
    %v1928 = vpop.f32.mrb[0].mxu0
    %v1929 = vadd.f32 0.0, %v1928
    %v1930 = vpop.f32.mrb[0].mxu0
    %v1931 = vpop.f32.mrb[0].mxu0
    %v1932 = vadd.f32 0.0, %v1931
    %v1933 = vpop.f32.mrb[0].mxu0
    %1934 = vdwg.mxu0
    %v1935 = vlaneseq
    %v1936 = vshrl.u32 %v1935, 7
    %v1937 = vsub.s32 0, %v1936
    %v1938 = vrot.slane %v1720, %v1937
    %v1939 = vadd.f32 %v1886, %v1938
    %v1940 = vadd.f32 %v1890, %v1938
    %v1941 = vpack.c.bf16 %v1940, %v1939
    %v1942 = vlaneseq
    %v1943 = vshrl.u32 %v1942, 7
    %v1944 = vsub.s32 1, %v1943
    %v1945 = vrot.slane %v1720, %v1944
    %v1946 = vadd.f32 %v1888, %v1945
    %v1947 = vadd.f32 %v1892, %v1945
    %v1948 = vpack.c.bf16 %v1947, %v1946
    %v1949 = vlaneseq
    %v1950 = vshrl.u32 %v1949, 7
    %v1951 = vsub.s32 2, %v1950
    %v1952 = vrot.slane %v1720, %v1951
    %v1953 = vadd.f32 %v1929, %v1952
    %v1954 = vadd.f32 %v1932, %v1952
    %v1955 = vpack.c.bf16 %v1954, %v1953
    %v1957 = vsel %vm383, %v1941, 0
    %v1960 = vsel %vm383, %v1948, 0
    %1962 = vmatprep.subr.bf16.mxu0 0
    %1963 = vmatpush1.bf16.xpose.msra.mxu0 %v1960
    %1964 = vmatprep.subr.bf16.mxu0 0
    %1965 = vmatpush1.bf16.xpose.msra.mxu0 0
    %1966 = vmatprep.subr.bf16.mxu0 0
    %1967 = vmatpush1.bf16.xpose.msra.mxu0 0
    %1968 = vmatprep.subr.bf16.mxu0 0
    %1969 = vmatpush1.bf16.xpose.msra.mxu0 0
    %1970 = vmatprep.subr.bf16.mxu0 0
    %1971 = vmatpush1.bf16.xpose.msra.mxu0 0
    %1972 = vmatprep.subr.bf16.mxu0 0
    %1973 = vmatpush1.bf16.xpose.msra.mxu0 0
    %1974 = vmatprep.subr.bf16.mxu0 0
    %1975 = vmatpush1.bf16.xpose.msra.mxu0 0
    %1976 = vmatprep.subr.bf16.mxu0 0
    %1977 = vmatpush1.bf16.xpose.msra.mxu0 0
    %1978 = vmatprep.subr.bf16.mxu0 0
    %1979 = vmatpush1.bf16.xpose.msra.mxu0 0
    %1980 = vmatprep.subr.bf16.mxu0 0
    %1981 = vmatpush1.bf16.xpose.msra.mxu0 0
    %1982 = vmatprep.subr.bf16.mxu0 0
    %1983 = vmatpush1.bf16.xpose.msra.mxu0 0
    %1984 = vmatprep.subr.bf16.mxu0 0
    %1985 = vmatpush1.bf16.xpose.msra.mxu0 0
    %1986 = vmatprep.subr.bf16.mxu0 0
    %1987 = vmatpush1.bf16.xpose.msra.mxu0 0
    %1988 = vmatprep.subr.bf16.mxu0 0
    %1989 = vmatpush1.bf16.xpose.msra.mxu0 0
    %1990 = vmatprep.subr.bf16.mxu0 0
    %1991 = vmatpush1.bf16.xpose.msra.mxu0 0
    %1992 = vmatprep.subr.bf16.mxu0 0
    %1993 = vmatpush1.bf16.xpose.msra.mxu0 0
    %1994 = vmatprep.mubr.bf16.mxu0 0
    %1995 = vmatmul.mubr.bf16.gmra.mrb[0].mxu0 %v1957
    %v1996 = vpop.f32.mrb[0].mxu0
    %v1997 = vadd.f32 0.0, %v1996
    %v1998 = vpop.f32.mrb[0].mxu0
    %v1999 = vpop.f32.mrb[0].mxu0
    %v2000 = vpop.f32.mrb[0].mxu0
    %2001 = vdwg.mxu0
    %2003 = vrot.lane.b32.xlu0 %v1941, 96
    %v2004 = vpop.permute.xlu0 %2003
    %2006 = vrot.lane.b32.xlu0 %v1948, 96
    %v2007 = vpop.permute.xlu0 %2006
    %v2009 = vsel %vm383, %v2004, 0
    %v2012 = vsel %vm383, %v2007, 0
    %2014 = vmatprep.subr.bf16.mxu0 0
    %2015 = vmatpush1.bf16.xpose.msra.mxu0 %v2012
    %2016 = vmatprep.subr.bf16.mxu0 0
    %2017 = vmatpush1.bf16.xpose.msra.mxu0 0
    %2018 = vmatprep.subr.bf16.mxu0 0
    %2019 = vmatpush1.bf16.xpose.msra.mxu0 0
    %2020 = vmatprep.subr.bf16.mxu0 0
    %2021 = vmatpush1.bf16.xpose.msra.mxu0 0
    %2022 = vmatprep.subr.bf16.mxu0 0
    %2023 = vmatpush1.bf16.xpose.msra.mxu0 0
    %2024 = vmatprep.subr.bf16.mxu0 0
    %2025 = vmatpush1.bf16.xpose.msra.mxu0 0
    %2026 = vmatprep.subr.bf16.mxu0 0
    %2027 = vmatpush1.bf16.xpose.msra.mxu0 0
    %2028 = vmatprep.subr.bf16.mxu0 0
    %2029 = vmatpush1.bf16.xpose.msra.mxu0 0
    %2030 = vmatprep.subr.bf16.mxu0 0
    %2031 = vmatpush1.bf16.xpose.msra.mxu0 0
    %2032 = vmatprep.subr.bf16.mxu0 0
    %2033 = vmatpush1.bf16.xpose.msra.mxu0 0
    %2034 = vmatprep.subr.bf16.mxu0 0
    %2035 = vmatpush1.bf16.xpose.msra.mxu0 0
    %2036 = vmatprep.subr.bf16.mxu0 0
    %2037 = vmatpush1.bf16.xpose.msra.mxu0 0
    %2038 = vmatprep.subr.bf16.mxu0 0
    %2039 = vmatpush1.bf16.xpose.msra.mxu0 0
    %2040 = vmatprep.subr.bf16.mxu0 0
    %2041 = vmatpush1.bf16.xpose.msra.mxu0 0
    %2042 = vmatprep.subr.bf16.mxu0 0
    %2043 = vmatpush1.bf16.xpose.msra.mxu0 0
    %2044 = vmatprep.subr.bf16.mxu0 0
    %2045 = vmatpush1.bf16.xpose.msra.mxu0 0
    %2046 = vmatprep.mubr.bf16.mxu0 0
    %2047 = vmatmul.mubr.bf16.gmra.mrb[0].mxu0 %v2009
    %v2048 = vpop.f32.mrb[0].mxu0
    %v2049 = vadd.f32 0.0, %v2048
    %v2050 = vpop.f32.mrb[0].mxu0
    %v2051 = vpop.f32.mrb[0].mxu0
    %v2052 = vpop.f32.mrb[0].mxu0
    %2053 = vdwg.mxu0
    %2054 = vrot.lane.b32.xlu0 %v1941, 64
    %v2055 = vpop.permute.xlu0 %2054
    %2056 = vrot.lane.b32.xlu0 %v1948, 64
    %v2057 = vpop.permute.xlu0 %2056
    %v2059 = vsel %vm383, %v2055, 0
    %v2062 = vsel %vm383, %v2057, 0
    %2064 = vmatprep.subr.bf16.mxu0 0
    %2065 = vmatpush1.bf16.xpose.msra.mxu0 %v2062
    %2066 = vmatprep.subr.bf16.mxu0 0
    %2067 = vmatpush1.bf16.xpose.msra.mxu0 0
    %2068 = vmatprep.subr.bf16.mxu0 0
    %2069 = vmatpush1.bf16.xpose.msra.mxu0 0
    %2070 = vmatprep.subr.bf16.mxu0 0
    %2071 = vmatpush1.bf16.xpose.msra.mxu0 0
    %2072 = vmatprep.subr.bf16.mxu0 0
    %2073 = vmatpush1.bf16.xpose.msra.mxu0 0
    %2074 = vmatprep.subr.bf16.mxu0 0
    %2075 = vmatpush1.bf16.xpose.msra.mxu0 0
    %2076 = vmatprep.subr.bf16.mxu0 0
    %2077 = vmatpush1.bf16.xpose.msra.mxu0 0
    %2078 = vmatprep.subr.bf16.mxu0 0
    %2079 = vmatpush1.bf16.xpose.msra.mxu0 0
    %2080 = vmatprep.subr.bf16.mxu0 0
    %2081 = vmatpush1.bf16.xpose.msra.mxu0 0
    %2082 = vmatprep.subr.bf16.mxu0 0
    %2083 = vmatpush1.bf16.xpose.msra.mxu0 0
    %2084 = vmatprep.subr.bf16.mxu0 0
    %2085 = vmatpush1.bf16.xpose.msra.mxu0 0
    %2086 = vmatprep.subr.bf16.mxu0 0
    %2087 = vmatpush1.bf16.xpose.msra.mxu0 0
    %2088 = vmatprep.subr.bf16.mxu0 0
    %2089 = vmatpush1.bf16.xpose.msra.mxu0 0
    %2090 = vmatprep.subr.bf16.mxu0 0
    %2091 = vmatpush1.bf16.xpose.msra.mxu0 0
    %2092 = vmatprep.subr.bf16.mxu0 0
    %2093 = vmatpush1.bf16.xpose.msra.mxu0 0
    %2094 = vmatprep.subr.bf16.mxu0 0
    %2095 = vmatpush1.bf16.xpose.msra.mxu0 0
    %2096 = vmatprep.mubr.bf16.mxu0 0
    %2097 = vmatmul.mubr.bf16.gmra.mrb[0].mxu0 %v2059
    %v2098 = vpop.f32.mrb[0].mxu0
    %v2099 = vadd.f32 0.0, %v2098
    %v2100 = vpop.f32.mrb[0].mxu0
    %v2101 = vpop.f32.mrb[0].mxu0
    %v2102 = vpop.f32.mrb[0].mxu0
    %2103 = vdwg.mxu0
    %2104 = vrot.lane.b32.xlu0 %v1941, 32
    %v2105 = vpop.permute.xlu0 %2104
    %2106 = vrot.lane.b32.xlu0 %v1948, 32
    %v2107 = vpop.permute.xlu0 %2106
    %v2109 = vsel %vm383, %v2105, 0
    %v2112 = vsel %vm383, %v2107, 0
    %2114 = vmatprep.subr.bf16.mxu0 0
    %2115 = vmatpush1.bf16.xpose.msra.mxu0 %v2112
    %2116 = vmatprep.subr.bf16.mxu0 0
    %2117 = vmatpush1.bf16.xpose.msra.mxu0 0
    %2118 = vmatprep.subr.bf16.mxu0 0
    %2119 = vmatpush1.bf16.xpose.msra.mxu0 0
    %2120 = vmatprep.subr.bf16.mxu0 0
    %2121 = vmatpush1.bf16.xpose.msra.mxu0 0
    %2122 = vmatprep.subr.bf16.mxu0 0
    %2123 = vmatpush1.bf16.xpose.msra.mxu0 0
    %2124 = vmatprep.subr.bf16.mxu0 0
    %2125 = vmatpush1.bf16.xpose.msra.mxu0 0
    %2126 = vmatprep.subr.bf16.mxu0 0
    %2127 = vmatpush1.bf16.xpose.msra.mxu0 0
    %2128 = vmatprep.subr.bf16.mxu0 0
    %2129 = vmatpush1.bf16.xpose.msra.mxu0 0
    %2130 = vmatprep.subr.bf16.mxu0 0
    %2131 = vmatpush1.bf16.xpose.msra.mxu0 0
    %2132 = vmatprep.subr.bf16.mxu0 0
    %2133 = vmatpush1.bf16.xpose.msra.mxu0 0
    %2134 = vmatprep.subr.bf16.mxu0 0
    %2135 = vmatpush1.bf16.xpose.msra.mxu0 0
    %2136 = vmatprep.subr.bf16.mxu0 0
    %2137 = vmatpush1.bf16.xpose.msra.mxu0 0
    %2138 = vmatprep.subr.bf16.mxu0 0
    %2139 = vmatpush1.bf16.xpose.msra.mxu0 0
    %2140 = vmatprep.subr.bf16.mxu0 0
    %2141 = vmatpush1.bf16.xpose.msra.mxu0 0
    %2142 = vmatprep.subr.bf16.mxu0 0
    %2143 = vmatpush1.bf16.xpose.msra.mxu0 0
    %2144 = vmatprep.subr.bf16.mxu0 0
    %2145 = vmatpush1.bf16.xpose.msra.mxu0 0
    %2146 = vmatprep.mubr.bf16.mxu0 0
    %2147 = vmatmul.mubr.bf16.gmra.mrb[0].mxu0 %v2109
    %v2148 = vpop.f32.mrb[0].mxu0
    %v2149 = vadd.f32 0.0, %v2148
    %v2150 = vpop.f32.mrb[0].mxu0
    %v2151 = vpop.f32.mrb[0].mxu0
    %v2152 = vpop.f32.mrb[0].mxu0
    %2153 = vdwg.mxu0
    %v2154 = vrot.slane %v1941, 4
    %v2155 = vrot.slane %v1948, 4
    %v2157 = vsel %vm383, %v2154, 0
    %v2160 = vsel %vm383, %v2155, 0
    %2162 = vmatprep.subr.bf16.mxu0 0
    %2163 = vmatpush1.bf16.xpose.msra.mxu0 %v2160
    %2164 = vmatprep.subr.bf16.mxu0 0
    %2165 = vmatpush1.bf16.xpose.msra.mxu0 0
    %2166 = vmatprep.subr.bf16.mxu0 0
    %2167 = vmatpush1.bf16.xpose.msra.mxu0 0
    %2168 = vmatprep.subr.bf16.mxu0 0
    %2169 = vmatpush1.bf16.xpose.msra.mxu0 0
    %2170 = vmatprep.subr.bf16.mxu0 0
    %2171 = vmatpush1.bf16.xpose.msra.mxu0 0
    %2172 = vmatprep.subr.bf16.mxu0 0
    %2173 = vmatpush1.bf16.xpose.msra.mxu0 0
    %2174 = vmatprep.subr.bf16.mxu0 0
    %2175 = vmatpush1.bf16.xpose.msra.mxu0 0
    %2176 = vmatprep.subr.bf16.mxu0 0
    %2177 = vmatpush1.bf16.xpose.msra.mxu0 0
    %2178 = vmatprep.subr.bf16.mxu0 0
    %2179 = vmatpush1.bf16.xpose.msra.mxu0 0
    %2180 = vmatprep.subr.bf16.mxu0 0
    %2181 = vmatpush1.bf16.xpose.msra.mxu0 0
    %2182 = vmatprep.subr.bf16.mxu0 0
    %2183 = vmatpush1.bf16.xpose.msra.mxu0 0
    %2184 = vmatprep.subr.bf16.mxu0 0
    %2185 = vmatpush1.bf16.xpose.msra.mxu0 0
    %2186 = vmatprep.subr.bf16.mxu0 0
    %2187 = vmatpush1.bf16.xpose.msra.mxu0 0
    %2188 = vmatprep.subr.bf16.mxu0 0
    %2189 = vmatpush1.bf16.xpose.msra.mxu0 0
    %2190 = vmatprep.subr.bf16.mxu0 0
    %2191 = vmatpush1.bf16.xpose.msra.mxu0 0
    %2192 = vmatprep.subr.bf16.mxu0 0
    %2193 = vmatpush1.bf16.xpose.msra.mxu0 0
    %2194 = vmatprep.mubr.bf16.mxu0 0
    %2195 = vmatmul.mubr.bf16.gmra.mrb[0].mxu0 %v2157
    %v2196 = vpop.f32.mrb[0].mxu0
    %v2197 = vadd.f32 0.0, %v2196
    %v2198 = vpop.f32.mrb[0].mxu0
    %v2199 = vpop.f32.mrb[0].mxu0
    %v2200 = vpop.f32.mrb[0].mxu0
    %2201 = vdwg.mxu0
    %2202 = vrot.lane.b32.xlu0 %v2154, 96
    %v2203 = vpop.permute.xlu0 %2202
    %2204 = vrot.lane.b32.xlu0 %v2155, 96
    %v2205 = vpop.permute.xlu0 %2204
    %v2207 = vsel %vm383, %v2203, 0
    %v2210 = vsel %vm383, %v2205, 0
    %2212 = vmatprep.subr.bf16.mxu0 0
    %2213 = vmatpush1.bf16.xpose.msra.mxu0 %v2210
    %2214 = vmatprep.subr.bf16.mxu0 0
    %2215 = vmatpush1.bf16.xpose.msra.mxu0 0
    %2216 = vmatprep.subr.bf16.mxu0 0
    %2217 = vmatpush1.bf16.xpose.msra.mxu0 0
    %2218 = vmatprep.subr.bf16.mxu0 0
    %2219 = vmatpush1.bf16.xpose.msra.mxu0 0
    %2220 = vmatprep.subr.bf16.mxu0 0
    %2221 = vmatpush1.bf16.xpose.msra.mxu0 0
    %2222 = vmatprep.subr.bf16.mxu0 0
    %2223 = vmatpush1.bf16.xpose.msra.mxu0 0
    %2224 = vmatprep.subr.bf16.mxu0 0
    %2225 = vmatpush1.bf16.xpose.msra.mxu0 0
    %2226 = vmatprep.subr.bf16.mxu0 0
    %2227 = vmatpush1.bf16.xpose.msra.mxu0 0
    %2228 = vmatprep.subr.bf16.mxu0 0
    %2229 = vmatpush1.bf16.xpose.msra.mxu0 0
    %2230 = vmatprep.subr.bf16.mxu0 0
    %2231 = vmatpush1.bf16.xpose.msra.mxu0 0
    %2232 = vmatprep.subr.bf16.mxu0 0
    %2233 = vmatpush1.bf16.xpose.msra.mxu0 0
    %2234 = vmatprep.subr.bf16.mxu0 0
    %2235 = vmatpush1.bf16.xpose.msra.mxu0 0
    %2236 = vmatprep.subr.bf16.mxu0 0
    %2237 = vmatpush1.bf16.xpose.msra.mxu0 0
    %2238 = vmatprep.subr.bf16.mxu0 0
    %2239 = vmatpush1.bf16.xpose.msra.mxu0 0
    %2240 = vmatprep.subr.bf16.mxu0 0
    %2241 = vmatpush1.bf16.xpose.msra.mxu0 0
    %2242 = vmatprep.subr.bf16.mxu0 0
    %2243 = vmatpush1.bf16.xpose.msra.mxu0 0
    %2244 = vmatprep.mubr.bf16.mxu0 0
    %2245 = vmatmul.mubr.bf16.gmra.mrb[0].mxu0 %v2207
    %v2246 = vpop.f32.mrb[0].mxu0
    %v2247 = vadd.f32 0.0, %v2246
    %v2248 = vpop.f32.mrb[0].mxu0
    %v2249 = vpop.f32.mrb[0].mxu0
    %v2250 = vpop.f32.mrb[0].mxu0
    %2251 = vdwg.mxu0
    %2252 = vrot.lane.b32.xlu0 %v2154, 64
    %v2253 = vpop.permute.xlu0 %2252
    %2254 = vrot.lane.b32.xlu0 %v2155, 64
    %v2255 = vpop.permute.xlu0 %2254
    %v2257 = vsel %vm383, %v2253, 0
    %v2260 = vsel %vm383, %v2255, 0
    %2262 = vmatprep.subr.bf16.mxu0 0
    %2263 = vmatpush1.bf16.xpose.msra.mxu0 %v2260
    %2264 = vmatprep.subr.bf16.mxu0 0
    %2265 = vmatpush1.bf16.xpose.msra.mxu0 0
    %2266 = vmatprep.subr.bf16.mxu0 0
    %2267 = vmatpush1.bf16.xpose.msra.mxu0 0
    %2268 = vmatprep.subr.bf16.mxu0 0
    %2269 = vmatpush1.bf16.xpose.msra.mxu0 0
    %2270 = vmatprep.subr.bf16.mxu0 0
    %2271 = vmatpush1.bf16.xpose.msra.mxu0 0
    %2272 = vmatprep.subr.bf16.mxu0 0
    %2273 = vmatpush1.bf16.xpose.msra.mxu0 0
    %2274 = vmatprep.subr.bf16.mxu0 0
    %2275 = vmatpush1.bf16.xpose.msra.mxu0 0
    %2276 = vmatprep.subr.bf16.mxu0 0
    %2277 = vmatpush1.bf16.xpose.msra.mxu0 0
    %2278 = vmatprep.subr.bf16.mxu0 0
    %2279 = vmatpush1.bf16.xpose.msra.mxu0 0
    %2280 = vmatprep.subr.bf16.mxu0 0
    %2281 = vmatpush1.bf16.xpose.msra.mxu0 0
    %2282 = vmatprep.subr.bf16.mxu0 0
    %2283 = vmatpush1.bf16.xpose.msra.mxu0 0
    %2284 = vmatprep.subr.bf16.mxu0 0
    %2285 = vmatpush1.bf16.xpose.msra.mxu0 0
    %2286 = vmatprep.subr.bf16.mxu0 0
    %2287 = vmatpush1.bf16.xpose.msra.mxu0 0
    %2288 = vmatprep.subr.bf16.mxu0 0
    %2289 = vmatpush1.bf16.xpose.msra.mxu0 0
    %2290 = vmatprep.subr.bf16.mxu0 0
    %2291 = vmatpush1.bf16.xpose.msra.mxu0 0
    %2292 = vmatprep.subr.bf16.mxu0 0
    %2293 = vmatpush1.bf16.xpose.msra.mxu0 0
    %2294 = vmatprep.mubr.bf16.mxu0 0
    %2295 = vmatmul.mubr.bf16.gmra.mrb[0].mxu0 %v2257
    %v2296 = vpop.f32.mrb[0].mxu0
    %v2297 = vadd.f32 0.0, %v2296
    %v2298 = vpop.f32.mrb[0].mxu0
    %v2299 = vpop.f32.mrb[0].mxu0
    %v2300 = vpop.f32.mrb[0].mxu0
    %2301 = vdwg.mxu0
    %2302 = vrot.lane.b32.xlu0 %v2154, 32
    %v2303 = vpop.permute.xlu0 %2302
    %2304 = vrot.lane.b32.xlu0 %v2155, 32
    %v2305 = vpop.permute.xlu0 %2304
    %v2307 = vsel %vm383, %v2303, 0
    %v2310 = vsel %vm383, %v2305, 0
    %2312 = vmatprep.subr.bf16.mxu0 0
    %2313 = vmatpush1.bf16.xpose.msra.mxu0 %v2310
    %2314 = vmatprep.subr.bf16.mxu0 0
    %2315 = vmatpush1.bf16.xpose.msra.mxu0 0
    %2316 = vmatprep.subr.bf16.mxu0 0
    %2317 = vmatpush1.bf16.xpose.msra.mxu0 0
    %2318 = vmatprep.subr.bf16.mxu0 0
    %2319 = vmatpush1.bf16.xpose.msra.mxu0 0
    %2320 = vmatprep.subr.bf16.mxu0 0
    %2321 = vmatpush1.bf16.xpose.msra.mxu0 0
    %2322 = vmatprep.subr.bf16.mxu0 0
    %2323 = vmatpush1.bf16.xpose.msra.mxu0 0
    %2324 = vmatprep.subr.bf16.mxu0 0
    %2325 = vmatpush1.bf16.xpose.msra.mxu0 0
    %2326 = vmatprep.subr.bf16.mxu0 0
    %2327 = vmatpush1.bf16.xpose.msra.mxu0 0
    %2328 = vmatprep.subr.bf16.mxu0 0
    %2329 = vmatpush1.bf16.xpose.msra.mxu0 0
    %2330 = vmatprep.subr.bf16.mxu0 0
    %2331 = vmatpush1.bf16.xpose.msra.mxu0 0
    %2332 = vmatprep.subr.bf16.mxu0 0
    %2333 = vmatpush1.bf16.xpose.msra.mxu0 0
    %2334 = vmatprep.subr.bf16.mxu0 0
    %2335 = vmatpush1.bf16.xpose.msra.mxu0 0
    %2336 = vmatprep.subr.bf16.mxu0 0
    %2337 = vmatpush1.bf16.xpose.msra.mxu0 0
    %2338 = vmatprep.subr.bf16.mxu0 0
    %2339 = vmatpush1.bf16.xpose.msra.mxu0 0
    %2340 = vmatprep.subr.bf16.mxu0 0
    %2341 = vmatpush1.bf16.xpose.msra.mxu0 0
    %2342 = vmatprep.subr.bf16.mxu0 0
    %2343 = vmatpush1.bf16.xpose.msra.mxu0 0
    %2344 = vmatprep.mubr.bf16.mxu0 0
    %2345 = vmatmul.mubr.bf16.gmra.mrb[0].mxu0 %v2307
    %v2346 = vpop.f32.mrb[0].mxu0
    %v2347 = vadd.f32 0.0, %v2346
    %v2348 = vpop.f32.mrb[0].mxu0
    %v2349 = vpop.f32.mrb[0].mxu0
    %v2350 = vpop.f32.mrb[0].mxu0
    %2351 = vdwg.mxu0
    %v2352 = vsel %vm780, %v1997, -inf
    %2353 = vmax.xlane.f32.xlu0 %v2352
    %v2354 = vpop.xlane.xlu0 %2353
    %v2355 = vsel %vm780, %v2049, -inf
    %2356 = vmax.xlane.f32.xlu0 %v2355
    %v2357 = vpop.xlane.xlu0 %2356
    %v2358 = vsel %vm780, %v2099, -inf
    %2359 = vmax.xlane.f32.xlu0 %v2358
    %v2360 = vpop.xlane.xlu0 %2359
    %v2361 = vsel %vm780, %v2149, -inf
    %2362 = vmax.xlane.f32.xlu0 %v2361
    %v2363 = vpop.xlane.xlu0 %2362
    %v2364 = vsel %vm780, %v2197, -inf
    %2365 = vmax.xlane.f32.xlu0 %v2364
    %v2366 = vpop.xlane.xlu0 %2365
    %v2367 = vsel %vm780, %v2247, -inf
    %2368 = vmax.xlane.f32.xlu0 %v2367
    %v2369 = vpop.xlane.xlu0 %2368
    %v2370 = vsel %vm780, %v2297, -inf
    %2371 = vmax.xlane.f32.xlu0 %v2370
    %v2372 = vpop.xlane.xlu0 %2371
    %v2373 = vsel %vm780, %v2347, -inf
    %2374 = vmax.xlane.f32.xlu0 %v2373
    %v2375 = vpop.xlane.xlu0 %2374
    %v2376 = vsub.f32 %v1997, %v2354
    %v2377 = vsub.f32 %v2049, %v2357
    %v2378 = vsub.f32 %v2099, %v2360
    %v2379 = vsub.f32 %v2149, %v2363
    %v2380 = vsub.f32 %v2197, %v2366
    %v2381 = vsub.f32 %v2247, %v2369
    %v2382 = vsub.f32 %v2297, %v2372
    %v2383 = vsub.f32 %v2347, %v2375
    %v2384 = vmul.f32 %v2376, 1.442695
    %v2385 = vpow.pop %v2384
    %v2386 = vmul.f32 %v2377, 1.442695
    %v2387 = vpow.pop %v2386
    %v2388 = vmul.f32 %v2378, 1.442695
    %v2389 = vpow.pop %v2388
    %v2390 = vmul.f32 %v2379, 1.442695
    %v2391 = vpow.pop %v2390
    %v2392 = vmul.f32 %v2380, 1.442695
    %v2393 = vpow.pop %v2392
    %v2394 = vmul.f32 %v2381, 1.442695
    %v2395 = vpow.pop %v2394
    %v2396 = vmul.f32 %v2382, 1.442695
    %v2397 = vpow.pop %v2396
    %v2398 = vmul.f32 %v2383, 1.442695
    %v2399 = vpow.pop %v2398
    %v2400 = vsel %vm780, %v2385, 0.0
    %2401 = vadd.xlane.f32.xlu0 %v2400
    %v2402 = vpop.xlane.xlu0 %2401
    %v2403 = vsel %vm780, %v2387, 0.0
    %2404 = vadd.xlane.f32.xlu0 %v2403
    %v2405 = vpop.xlane.xlu0 %2404
    %v2406 = vsel %vm780, %v2389, 0.0
    %2407 = vadd.xlane.f32.xlu0 %v2406
    %v2408 = vpop.xlane.xlu0 %2407
    %v2409 = vsel %vm780, %v2391, 0.0
    %2410 = vadd.xlane.f32.xlu0 %v2409
    %v2411 = vpop.xlane.xlu0 %2410
    %v2412 = vsel %vm780, %v2393, 0.0
    %2413 = vadd.xlane.f32.xlu0 %v2412
    %v2414 = vpop.xlane.xlu0 %2413
    %v2415 = vsel %vm780, %v2395, 0.0
    %2416 = vadd.xlane.f32.xlu0 %v2415
    %v2417 = vpop.xlane.xlu0 %2416
    %v2418 = vsel %vm780, %v2397, 0.0
    %2419 = vadd.xlane.f32.xlu0 %v2418
    %v2420 = vpop.xlane.xlu0 %2419
    %v2421 = vsel %vm780, %v2399, 0.0
    %2422 = vadd.xlane.f32.xlu0 %v2421
    %v2423 = vpop.xlane.xlu0 %2422
    %v2424 = vrcp.pop %v2402
    %v2425 = vrcp.pop %v2405
    %v2426 = vrcp.pop %v2408
    %v2427 = vrcp.pop %v2411
    %v2428 = vrcp.pop %v2414
    %v2429 = vrcp.pop %v2417
    %v2430 = vrcp.pop %v2420
    %v2431 = vrcp.pop %v2423
    %v2432 = vmul.f32 %v2385, %v2424
    %v2433 = vmul.f32 %v2387, %v2425
    %v2434 = vmul.f32 %v2389, %v2426
    %v2435 = vmul.f32 %v2391, %v2427
    %v2436 = vmul.f32 %v2393, %v2428
    %v2437 = vmul.f32 %v2395, %v2429
    %v2438 = vmul.f32 %v2397, %v2430
    %v2439 = vmul.f32 %v2399, %v2431
    %v2440 = vpack.c.bf16 %v2433, %v2432
    %v2441 = vpack.c.bf16 %v2435, %v2434
    %v2442 = vpack.c.bf16 %v2437, %v2436
    %v2443 = vpack.c.bf16 %v2439, %v2438
    %v2445 = vsel %vm780, %v2440, 0
    %v2448 = vsel %vm876, %v1955, 0
    %2450 = vmatprep.subr.bf16.mxu0 0
    %2451 = vmatpush1.bf16.msra.mxu0 %v2448
    %2452 = vmatprep.subr.bf16.mxu0 0
    %2453 = vmatpush1.bf16.msra.mxu0 0
    %2454 = vmatprep.subr.bf16.mxu0 0
    %2455 = vmatpush1.bf16.msra.mxu0 0
    %2456 = vmatprep.subr.bf16.mxu0 0
    %2457 = vmatpush1.bf16.msra.mxu0 0
    %2458 = vmatprep.subr.bf16.mxu0 0
    %2459 = vmatpush1.bf16.msra.mxu0 0
    %2460 = vmatprep.subr.bf16.mxu0 0
    %2461 = vmatpush1.bf16.msra.mxu0 0
    %2462 = vmatprep.subr.bf16.mxu0 0
    %2463 = vmatpush1.bf16.msra.mxu0 0
    %2464 = vmatprep.subr.bf16.mxu0 0
    %2465 = vmatpush1.bf16.msra.mxu0 0
    %2466 = vmatprep.subr.bf16.mxu0 0
    %2467 = vmatpush1.bf16.msra.mxu0 0
    %2468 = vmatprep.subr.bf16.mxu0 0
    %2469 = vmatpush1.bf16.msra.mxu0 0
    %2470 = vmatprep.subr.bf16.mxu0 0
    %2471 = vmatpush1.bf16.msra.mxu0 0
    %2472 = vmatprep.subr.bf16.mxu0 0
    %2473 = vmatpush1.bf16.msra.mxu0 0
    %2474 = vmatprep.subr.bf16.mxu0 0
    %2475 = vmatpush1.bf16.msra.mxu0 0
    %2476 = vmatprep.subr.bf16.mxu0 0
    %2477 = vmatpush1.bf16.msra.mxu0 0
    %2478 = vmatprep.subr.bf16.mxu0 0
    %2479 = vmatpush1.bf16.msra.mxu0 0
    %2480 = vmatprep.subr.bf16.mxu0 0
    %2481 = vmatpush1.bf16.msra.mxu0 0
    %2482 = vmatprep.mubr.bf16.mxu0 0
    %2483 = vmatmul.mubr.bf16.gmra.mrb[0].mxu0 %v2445
    %v2484 = vpop.f32.mrb[0].mxu0
    %v2485 = vadd.f32 0.0, %v2484
    %v2486 = vpop.f32.mrb[0].mxu0
    %v2487 = vpop.f32.mrb[0].mxu0
    %v2488 = vpop.f32.mrb[0].mxu0
    %2489 = vdwg.mxu0
    %2490 = vst.msk [vmem:[#allocation3] sm:$0xff] %vm383, %v2485
    %v2492 = vrot.slane %v2440, 4
    %2494 = vrot.lane.b32.xlu0 %v1955, 96
    %v2495 = vpop.permute.xlu0 %2494
    %v2497 = vsel %vm780, %v2492, 0
    %v2500 = vsel %vm876, %v2495, 0
    %2502 = vmatprep.subr.bf16.mxu0 0
    %2503 = vmatpush1.bf16.msra.mxu0 %v2500
    %2504 = vmatprep.subr.bf16.mxu0 0
    %2505 = vmatpush1.bf16.msra.mxu0 0
    %2506 = vmatprep.subr.bf16.mxu0 0
    %2507 = vmatpush1.bf16.msra.mxu0 0
    %2508 = vmatprep.subr.bf16.mxu0 0
    %2509 = vmatpush1.bf16.msra.mxu0 0
    %2510 = vmatprep.subr.bf16.mxu0 0
    %2511 = vmatpush1.bf16.msra.mxu0 0
    %2512 = vmatprep.subr.bf16.mxu0 0
    %2513 = vmatpush1.bf16.msra.mxu0 0
    %2514 = vmatprep.subr.bf16.mxu0 0
    %2515 = vmatpush1.bf16.msra.mxu0 0
    %2516 = vmatprep.subr.bf16.mxu0 0
    %2517 = vmatpush1.bf16.msra.mxu0 0
    %2518 = vmatprep.subr.bf16.mxu0 0
    %2519 = vmatpush1.bf16.msra.mxu0 0
    %2520 = vmatprep.subr.bf16.mxu0 0
    %2521 = vmatpush1.bf16.msra.mxu0 0
    %2522 = vmatprep.subr.bf16.mxu0 0
    %2523 = vmatpush1.bf16.msra.mxu0 0
    %2524 = vmatprep.subr.bf16.mxu0 0
    %2525 = vmatpush1.bf16.msra.mxu0 0
    %2526 = vmatprep.subr.bf16.mxu0 0
    %2527 = vmatpush1.bf16.msra.mxu0 0
    %2528 = vmatprep.subr.bf16.mxu0 0
    %2529 = vmatpush1.bf16.msra.mxu0 0
    %2530 = vmatprep.subr.bf16.mxu0 0
    %2531 = vmatpush1.bf16.msra.mxu0 0
    %2532 = vmatprep.subr.bf16.mxu0 0
    %2533 = vmatpush1.bf16.msra.mxu0 0
    %2534 = vmatprep.mubr.bf16.mxu0 0
    %2535 = vmatmul.mubr.bf16.gmra.mrb[0].mxu0 %v2497
    %v2536 = vpop.f32.mrb[0].mxu0
    %v2537 = vadd.f32 0.0, %v2536
    %v2538 = vpop.f32.mrb[0].mxu0
    %v2539 = vpop.f32.mrb[0].mxu0
    %v2540 = vpop.f32.mrb[0].mxu0
    %2541 = vdwg.mxu0
    %2543 = vrot.lane.b32.xlu0 %v2537, 32
    %v2544 = vpop.permute.xlu0 %2543
    %2546 = vst.msk [vmem:[#allocation3] sm:$0xff] %vm976, %v2544
    %2547 = vrot.lane.b32.xlu0 %v1955, 64
    %v2548 = vpop.permute.xlu0 %2547
    %v2550 = vsel %vm780, %v2441, 0
    %v2553 = vsel %vm876, %v2548, 0
    %2555 = vmatprep.subr.bf16.mxu0 0
    %2556 = vmatpush1.bf16.msra.mxu0 %v2553
    %2557 = vmatprep.subr.bf16.mxu0 0
    %2558 = vmatpush1.bf16.msra.mxu0 0
    %2559 = vmatprep.subr.bf16.mxu0 0
    %2560 = vmatpush1.bf16.msra.mxu0 0
    %2561 = vmatprep.subr.bf16.mxu0 0
    %2562 = vmatpush1.bf16.msra.mxu0 0
    %2563 = vmatprep.subr.bf16.mxu0 0
    %2564 = vmatpush1.bf16.msra.mxu0 0
    %2565 = vmatprep.subr.bf16.mxu0 0
    %2566 = vmatpush1.bf16.msra.mxu0 0
    %2567 = vmatprep.subr.bf16.mxu0 0
    %2568 = vmatpush1.bf16.msra.mxu0 0
    %2569 = vmatprep.subr.bf16.mxu0 0
    %2570 = vmatpush1.bf16.msra.mxu0 0
    %2571 = vmatprep.subr.bf16.mxu0 0
    %2572 = vmatpush1.bf16.msra.mxu0 0
    %2573 = vmatprep.subr.bf16.mxu0 0
    %2574 = vmatpush1.bf16.msra.mxu0 0
    %2575 = vmatprep.subr.bf16.mxu0 0
    %2576 = vmatpush1.bf16.msra.mxu0 0
    %2577 = vmatprep.subr.bf16.mxu0 0
    %2578 = vmatpush1.bf16.msra.mxu0 0
    %2579 = vmatprep.subr.bf16.mxu0 0
    %2580 = vmatpush1.bf16.msra.mxu0 0
    %2581 = vmatprep.subr.bf16.mxu0 0
    %2582 = vmatpush1.bf16.msra.mxu0 0
    %2583 = vmatprep.subr.bf16.mxu0 0
    %2584 = vmatpush1.bf16.msra.mxu0 0
    %2585 = vmatprep.subr.bf16.mxu0 0
    %2586 = vmatpush1.bf16.msra.mxu0 0
    %2587 = vmatprep.mubr.bf16.mxu0 0
    %2588 = vmatmul.mubr.bf16.gmra.mrb[0].mxu0 %v2550
    %v2589 = vpop.f32.mrb[0].mxu0
    %v2590 = vadd.f32 0.0, %v2589
    %v2591 = vpop.f32.mrb[0].mxu0
    %v2592 = vpop.f32.mrb[0].mxu0
    %v2593 = vpop.f32.mrb[0].mxu0
    %2594 = vdwg.mxu0
    %2596 = vrot.lane.b32.xlu0 %v2590, 64
    %v2597 = vpop.permute.xlu0 %2596
    %2599 = vst.msk [vmem:[#allocation3] sm:$0xff] %vm1030, %v2597
    %v2601 = vrot.slane %v2441, 4
    %2602 = vrot.lane.b32.xlu0 %v1955, 32
    %v2603 = vpop.permute.xlu0 %2602
    %v2605 = vsel %vm780, %v2601, 0
    %v2608 = vsel %vm876, %v2603, 0
    %2610 = vmatprep.subr.bf16.mxu0 0
    %2611 = vmatpush1.bf16.msra.mxu0 %v2608
    %2612 = vmatprep.subr.bf16.mxu0 0
    %2613 = vmatpush1.bf16.msra.mxu0 0
    %2614 = vmatprep.subr.bf16.mxu0 0
    %2615 = vmatpush1.bf16.msra.mxu0 0
    %2616 = vmatprep.subr.bf16.mxu0 0
    %2617 = vmatpush1.bf16.msra.mxu0 0
    %2618 = vmatprep.subr.bf16.mxu0 0
    %2619 = vmatpush1.bf16.msra.mxu0 0
    %2620 = vmatprep.subr.bf16.mxu0 0
    %2621 = vmatpush1.bf16.msra.mxu0 0
    %2622 = vmatprep.subr.bf16.mxu0 0
    %2623 = vmatpush1.bf16.msra.mxu0 0
    %2624 = vmatprep.subr.bf16.mxu0 0
    %2625 = vmatpush1.bf16.msra.mxu0 0
    %2626 = vmatprep.subr.bf16.mxu0 0
    %2627 = vmatpush1.bf16.msra.mxu0 0
    %2628 = vmatprep.subr.bf16.mxu0 0
    %2629 = vmatpush1.bf16.msra.mxu0 0
    %2630 = vmatprep.subr.bf16.mxu0 0
    %2631 = vmatpush1.bf16.msra.mxu0 0
    %2632 = vmatprep.subr.bf16.mxu0 0
    %2633 = vmatpush1.bf16.msra.mxu0 0
    %2634 = vmatprep.subr.bf16.mxu0 0
    %2635 = vmatpush1.bf16.msra.mxu0 0
    %2636 = vmatprep.subr.bf16.mxu0 0
    %2637 = vmatpush1.bf16.msra.mxu0 0
    %2638 = vmatprep.subr.bf16.mxu0 0
    %2639 = vmatpush1.bf16.msra.mxu0 0
    %2640 = vmatprep.subr.bf16.mxu0 0
    %2641 = vmatpush1.bf16.msra.mxu0 0
    %2642 = vmatprep.mubr.bf16.mxu0 0
    %2643 = vmatmul.mubr.bf16.gmra.mrb[0].mxu0 %v2605
    %v2644 = vpop.f32.mrb[0].mxu0
    %v2645 = vadd.f32 0.0, %v2644
    %v2646 = vpop.f32.mrb[0].mxu0
    %v2647 = vpop.f32.mrb[0].mxu0
    %v2648 = vpop.f32.mrb[0].mxu0
    %2649 = vdwg.mxu0
    %2651 = vrot.lane.b32.xlu0 %v2645, 96
    %v2652 = vpop.permute.xlu0 %2651
    %2654 = vst.msk [vmem:[#allocation3] sm:$0xff] %vm1086, %v2652
    %v2655 = vrot.slane %v1955, 4
    %v2657 = vsel %vm780, %v2442, 0
    %v2660 = vsel %vm876, %v2655, 0
    %2662 = vmatprep.subr.bf16.mxu0 0
    %2663 = vmatpush1.bf16.msra.mxu0 %v2660
    %2664 = vmatprep.subr.bf16.mxu0 0
    %2665 = vmatpush1.bf16.msra.mxu0 0
    %2666 = vmatprep.subr.bf16.mxu0 0
    %2667 = vmatpush1.bf16.msra.mxu0 0
    %2668 = vmatprep.subr.bf16.mxu0 0
    %2669 = vmatpush1.bf16.msra.mxu0 0
    %2670 = vmatprep.subr.bf16.mxu0 0
    %2671 = vmatpush1.bf16.msra.mxu0 0
    %2672 = vmatprep.subr.bf16.mxu0 0
    %2673 = vmatpush1.bf16.msra.mxu0 0
    %2674 = vmatprep.subr.bf16.mxu0 0
    %2675 = vmatpush1.bf16.msra.mxu0 0
    %2676 = vmatprep.subr.bf16.mxu0 0
    %2677 = vmatpush1.bf16.msra.mxu0 0
    %2678 = vmatprep.subr.bf16.mxu0 0
    %2679 = vmatpush1.bf16.msra.mxu0 0
    %2680 = vmatprep.subr.bf16.mxu0 0
    %2681 = vmatpush1.bf16.msra.mxu0 0
    %2682 = vmatprep.subr.bf16.mxu0 0
    %2683 = vmatpush1.bf16.msra.mxu0 0
    %2684 = vmatprep.subr.bf16.mxu0 0
    %2685 = vmatpush1.bf16.msra.mxu0 0
    %2686 = vmatprep.subr.bf16.mxu0 0
    %2687 = vmatpush1.bf16.msra.mxu0 0
    %2688 = vmatprep.subr.bf16.mxu0 0
    %2689 = vmatpush1.bf16.msra.mxu0 0
    %2690 = vmatprep.subr.bf16.mxu0 0
    %2691 = vmatpush1.bf16.msra.mxu0 0
    %2692 = vmatprep.subr.bf16.mxu0 0
    %2693 = vmatpush1.bf16.msra.mxu0 0
    %2694 = vmatprep.mubr.bf16.mxu0 0
    %2695 = vmatmul.mubr.bf16.gmra.mrb[0].mxu0 %v2657
    %v2696 = vpop.f32.mrb[0].mxu0
    %v2697 = vadd.f32 0.0, %v2696
    %v2698 = vpop.f32.mrb[0].mxu0
    %v2699 = vpop.f32.mrb[0].mxu0
    %v2700 = vpop.f32.mrb[0].mxu0
    %2701 = vdwg.mxu0
    %2702 = vst.msk [vmem:[#allocation3 + $0x8] sm:$0xff] %vm383, %v2697
    %v2704 = vrot.slane %v2442, 4
    %2705 = vrot.lane.b32.xlu0 %v2655, 96
    %v2706 = vpop.permute.xlu0 %2705
    %v2708 = vsel %vm780, %v2704, 0
    %v2711 = vsel %vm876, %v2706, 0
    %2713 = vmatprep.subr.bf16.mxu0 0
    %2714 = vmatpush1.bf16.msra.mxu0 %v2711
    %2715 = vmatprep.subr.bf16.mxu0 0
    %2716 = vmatpush1.bf16.msra.mxu0 0
    %2717 = vmatprep.subr.bf16.mxu0 0
    %2718 = vmatpush1.bf16.msra.mxu0 0
    %2719 = vmatprep.subr.bf16.mxu0 0
    %2720 = vmatpush1.bf16.msra.mxu0 0
    %2721 = vmatprep.subr.bf16.mxu0 0
    %2722 = vmatpush1.bf16.msra.mxu0 0
    %2723 = vmatprep.subr.bf16.mxu0 0
    %2724 = vmatpush1.bf16.msra.mxu0 0
    %2725 = vmatprep.subr.bf16.mxu0 0
    %2726 = vmatpush1.bf16.msra.mxu0 0
    %2727 = vmatprep.subr.bf16.mxu0 0
    %2728 = vmatpush1.bf16.msra.mxu0 0
    %2729 = vmatprep.subr.bf16.mxu0 0
    %2730 = vmatpush1.bf16.msra.mxu0 0
    %2731 = vmatprep.subr.bf16.mxu0 0
    %2732 = vmatpush1.bf16.msra.mxu0 0
    %2733 = vmatprep.subr.bf16.mxu0 0
    %2734 = vmatpush1.bf16.msra.mxu0 0
    %2735 = vmatprep.subr.bf16.mxu0 0
    %2736 = vmatpush1.bf16.msra.mxu0 0
    %2737 = vmatprep.subr.bf16.mxu0 0
    %2738 = vmatpush1.bf16.msra.mxu0 0
    %2739 = vmatprep.subr.bf16.mxu0 0
    %2740 = vmatpush1.bf16.msra.mxu0 0
    %2741 = vmatprep.subr.bf16.mxu0 0
    %2742 = vmatpush1.bf16.msra.mxu0 0
    %2743 = vmatprep.subr.bf16.mxu0 0
    %2744 = vmatpush1.bf16.msra.mxu0 0
    %2745 = vmatprep.mubr.bf16.mxu0 0
    %2746 = vmatmul.mubr.bf16.gmra.mrb[0].mxu0 %v2708
    %v2747 = vpop.f32.mrb[0].mxu0
    %v2748 = vadd.f32 0.0, %v2747
    %v2749 = vpop.f32.mrb[0].mxu0
    %v2750 = vpop.f32.mrb[0].mxu0
    %v2751 = vpop.f32.mrb[0].mxu0
    %2752 = vdwg.mxu0
    %2754 = vrot.lane.b32.xlu0 %v2748, 32
    %v2755 = vpop.permute.xlu0 %2754
    %2757 = vst.msk [vmem:[#allocation3 + $0x8] sm:$0xff] %vm976, %v2755
    %2758 = vrot.lane.b32.xlu0 %v2655, 64
    %v2759 = vpop.permute.xlu0 %2758
    %v2761 = vsel %vm780, %v2443, 0
    %v2764 = vsel %vm876, %v2759, 0
    %2766 = vmatprep.subr.bf16.mxu0 0
    %2767 = vmatpush1.bf16.msra.mxu0 %v2764
    %2768 = vmatprep.subr.bf16.mxu0 0
    %2769 = vmatpush1.bf16.msra.mxu0 0
    %2770 = vmatprep.subr.bf16.mxu0 0
    %2771 = vmatpush1.bf16.msra.mxu0 0
    %2772 = vmatprep.subr.bf16.mxu0 0
    %2773 = vmatpush1.bf16.msra.mxu0 0
    %2774 = vmatprep.subr.bf16.mxu0 0
    %2775 = vmatpush1.bf16.msra.mxu0 0
    %2776 = vmatprep.subr.bf16.mxu0 0
    %2777 = vmatpush1.bf16.msra.mxu0 0
    %2778 = vmatprep.subr.bf16.mxu0 0
    %2779 = vmatpush1.bf16.msra.mxu0 0
    %2780 = vmatprep.subr.bf16.mxu0 0
    %2781 = vmatpush1.bf16.msra.mxu0 0
    %2782 = vmatprep.subr.bf16.mxu0 0
    %2783 = vmatpush1.bf16.msra.mxu0 0
    %2784 = vmatprep.subr.bf16.mxu0 0
    %2785 = vmatpush1.bf16.msra.mxu0 0
    %2786 = vmatprep.subr.bf16.mxu0 0
    %2787 = vmatpush1.bf16.msra.mxu0 0
    %2788 = vmatprep.subr.bf16.mxu0 0
    %2789 = vmatpush1.bf16.msra.mxu0 0
    %2790 = vmatprep.subr.bf16.mxu0 0
    %2791 = vmatpush1.bf16.msra.mxu0 0
    %2792 = vmatprep.subr.bf16.mxu0 0
    %2793 = vmatpush1.bf16.msra.mxu0 0
    %2794 = vmatprep.subr.bf16.mxu0 0
    %2795 = vmatpush1.bf16.msra.mxu0 0
    %2796 = vmatprep.subr.bf16.mxu0 0
    %2797 = vmatpush1.bf16.msra.mxu0 0
    %2798 = vmatprep.mubr.bf16.mxu0 0
    %2799 = vmatmul.mubr.bf16.gmra.mrb[0].mxu0 %v2761
    %v2800 = vpop.f32.mrb[0].mxu0
    %v2801 = vadd.f32 0.0, %v2800
    %v2802 = vpop.f32.mrb[0].mxu0
    %v2803 = vpop.f32.mrb[0].mxu0
    %v2804 = vpop.f32.mrb[0].mxu0
    %2805 = vdwg.mxu0
    %2807 = vrot.lane.b32.xlu0 %v2801, 64
    %v2808 = vpop.permute.xlu0 %2807
    %2810 = vst.msk [vmem:[#allocation3 + $0x8] sm:$0xff] %vm1030, %v2808
    %v2812 = vrot.slane %v2443, 4
    %2813 = vrot.lane.b32.xlu0 %v2655, 32
    %v2814 = vpop.permute.xlu0 %2813
    %v2816 = vsel %vm780, %v2812, 0
    %v2819 = vsel %vm876, %v2814, 0
    %2821 = vmatprep.subr.bf16.mxu0 0
    %2822 = vmatpush1.bf16.msra.mxu0 %v2819
    %2823 = vmatprep.subr.bf16.mxu0 0
    %2824 = vmatpush1.bf16.msra.mxu0 0
    %2825 = vmatprep.subr.bf16.mxu0 0
    %2826 = vmatpush1.bf16.msra.mxu0 0
    %2827 = vmatprep.subr.bf16.mxu0 0
    %2828 = vmatpush1.bf16.msra.mxu0 0
    %2829 = vmatprep.subr.bf16.mxu0 0
    %2830 = vmatpush1.bf16.msra.mxu0 0
    %2831 = vmatprep.subr.bf16.mxu0 0
    %2832 = vmatpush1.bf16.msra.mxu0 0
    %2833 = vmatprep.subr.bf16.mxu0 0
    %2834 = vmatpush1.bf16.msra.mxu0 0
    %2835 = vmatprep.subr.bf16.mxu0 0
    %2836 = vmatpush1.bf16.msra.mxu0 0
    %2837 = vmatprep.subr.bf16.mxu0 0
    %2838 = vmatpush1.bf16.msra.mxu0 0
    %2839 = vmatprep.subr.bf16.mxu0 0
    %2840 = vmatpush1.bf16.msra.mxu0 0
    %2841 = vmatprep.subr.bf16.mxu0 0
    %2842 = vmatpush1.bf16.msra.mxu0 0
    %2843 = vmatprep.subr.bf16.mxu0 0
    %2844 = vmatpush1.bf16.msra.mxu0 0
    %2845 = vmatprep.subr.bf16.mxu0 0
    %2846 = vmatpush1.bf16.msra.mxu0 0
    %2847 = vmatprep.subr.bf16.mxu0 0
    %2848 = vmatpush1.bf16.msra.mxu0 0
    %2849 = vmatprep.subr.bf16.mxu0 0
    %2850 = vmatpush1.bf16.msra.mxu0 0
    %2851 = vmatprep.subr.bf16.mxu0 0
    %2852 = vmatpush1.bf16.msra.mxu0 0
    %2853 = vmatprep.mubr.bf16.mxu0 0
    %2854 = vmatmul.mubr.bf16.gmra.mrb[0].mxu0 %v2816
    %v2855 = vpop.f32.mrb[0].mxu0
    %v2856 = vadd.f32 0.0, %v2855
    %v2857 = vpop.f32.mrb[0].mxu0
    %v2858 = vpop.f32.mrb[0].mxu0
    %v2859 = vpop.f32.mrb[0].mxu0
    %2860 = vdwg.mxu0
    %2862 = vrot.lane.b32.xlu0 %v2856, 96
    %v2863 = vpop.permute.xlu0 %2862
    %2865 = vst.msk [vmem:[#allocation3 + $0x8] sm:$0xff] %vm1086, %v2863
    %v2866 = vld [vmem:[#allocation3] sm:$0xff]
    %v2867 = vld [vmem:[#allocation3 + $0x8] sm:$0xff]
    %v2868 = vpack.c.bf16 %v2867, %v2866
    %v2869 = vlaneseq
    %v2870 = vshrl.u32 %v2869, 7
    %v2871 = vsub.s32 3, %v2870
    %v2872 = vrot.slane %v1720, %v2871
    %v2889 = vunpack.c.l.b16 %v1687
    %v2890 = vunpack.c.l.b16 %v1689
    %v2891 = vunpack.c.l.b16 %v1691
    %v2892 = vunpack.c.l.b16 %v1693
    %v2893 = vunpack.c.l.b16 %v1695
    %v2894 = vunpack.c.l.b16 %v1697
    %v2895 = vunpack.c.l.b16 %v1699
    %v2896 = vunpack.c.l.b16 %v1701
    %v2897 = vunpack.c.l.b16 %v1703
    %v2898 = vunpack.c.l.b16 %v1705
    %v2899 = vunpack.c.l.b16 %v1707
    %v2900 = vunpack.c.l.b16 %v1709
    %v2901 = vunpack.c.l.b16 %v1711
    %v2902 = vunpack.c.l.b16 %v1713
    %v2903 = vunpack.c.l.b16 %v1715
    %v2904 = vunpack.c.l.b16 %v1717
    %v2905 = vpack.c.b16 %v2890, %v2889
    %v2906 = vpack.c.b16 %v2892, %v2891
    %v2907 = vpack.c.b16 %v2894, %v2893
    %v2908 = vpack.c.b16 %v2896, %v2895
    %v2909 = vpack.c.b16 %v2898, %v2897
    %v2910 = vpack.c.b16 %v2900, %v2899
    %v2911 = vpack.c.b16 %v2902, %v2901
    %v2912 = vpack.c.b16 %v2904, %v2903
    %2921 = vmatprep.subr.bf16.mxu0 0
    %2922 = vmatpush1.bf16.msra.mxu0 %v2905
    %2923 = vmatprep.subr.bf16.mxu0 0
    %2924 = vmatpush1.bf16.msra.mxu0 %v2906
    %2925 = vmatprep.subr.bf16.mxu0 0
    %2926 = vmatpush1.bf16.msra.mxu0 %v2907
    %2927 = vmatprep.subr.bf16.mxu0 0
    %2928 = vmatpush1.bf16.msra.mxu0 %v2908
    %2929 = vmatprep.subr.bf16.mxu0 0
    %2930 = vmatpush1.bf16.msra.mxu0 %v2909
    %2931 = vmatprep.subr.bf16.mxu0 0
    %2932 = vmatpush1.bf16.msra.mxu0 %v2910
    %2933 = vmatprep.subr.bf16.mxu0 0
    %2934 = vmatpush1.bf16.msra.mxu0 %v2911
    %2935 = vmatprep.subr.bf16.mxu0 0
    %2936 = vmatpush1.bf16.msra.mxu0 %v2912
    %2937 = vmatprep.subr.bf16.mxu0 0
    %2938 = vmatpush1.bf16.msra.mxu0 0
    %2939 = vmatprep.subr.bf16.mxu0 0
    %2940 = vmatpush1.bf16.msra.mxu0 0
    %2941 = vmatprep.subr.bf16.mxu0 0
    %2942 = vmatpush1.bf16.msra.mxu0 0
    %2943 = vmatprep.subr.bf16.mxu0 0
    %2944 = vmatpush1.bf16.msra.mxu0 0
    %2945 = vmatprep.subr.bf16.mxu0 0
    %2946 = vmatpush1.bf16.msra.mxu0 0
    %2947 = vmatprep.subr.bf16.mxu0 0
    %2948 = vmatpush1.bf16.msra.mxu0 0
    %2949 = vmatprep.subr.bf16.mxu0 0
    %2950 = vmatpush1.bf16.msra.mxu0 0
    %2951 = vmatprep.subr.bf16.mxu0 0
    %2952 = vmatpush1.bf16.msra.mxu0 0
    %2953 = vmatprep.mubr.bf16.mxu0 0
    %2954 = vmatmul.mubr.bf16.gmra.mrb[0].mxu0 %v2868
    %v2955 = vpop.f32.mrb[0].mxu0
    %v2956 = vadd.f32 %v2872, %v2955
    %v2957 = vpop.f32.mrb[0].mxu0
    %v2958 = vpop.f32.mrb[0].mxu0
    %v2959 = vadd.f32 %v2872, %v2958
    %v2960 = vpop.f32.mrb[0].mxu0
    %2961 = vdwg.mxu0
    %v2962 = vadd.f32 %v2956, %v1651
    %v2963 = vadd.f32 %v2959, %v1652
    %v2964 = vlaneseq
    %v2965 = vshrl.u32 %v2964, 7
    %v2966 = vsub.s32 2, %v2965
    %v2967 = vrot.slane %v1721, %v2966
    %v2968 = vmul.f32 %v2962, %v2967
    %v2969 = vmul.f32 %v2963, %v2967
    %2970 = vadd.xlane.f32.xlu0 %v2968
    %v2971 = vpop.xlane.xlu0 %2970
    %2972 = vadd.xlane.f32.xlu0 %v2969
    %v2973 = vpop.xlane.xlu0 %2972
    %v2974 = vmul.f32 %v2971, 0.00862069
    %v2975 = vmul.f32 %v2973, 0.00862069
    %v2976 = vsub.f32 %v2968, %v2974
    %v2977 = vsub.f32 %v2969, %v2975
    %v2978 = vmul.f32 %v2976, %v2967
    %v2979 = vmul.f32 %v2977, %v2967
    %v2980 = vmul.f32 %v2978, %v2978
    %v2981 = vmul.f32 %v2979, %v2979
    %2982 = vadd.xlane.f32.xlu0 %v2980
    %v2983 = vpop.xlane.xlu0 %2982
    %2984 = vadd.xlane.f32.xlu0 %v2981
    %v2985 = vpop.xlane.xlu0 %2984
    %v2986 = vmul.f32 %v2983, 0.00862069
    %v2987 = vmul.f32 %v2985, 0.00862069
    %v2988 = vadd.f32 %v2986, 1e-05
    %v2989 = vadd.f32 %v2987, 1e-05
    %v2990 = vrsqrt.pop %v2988
    %v2991 = vrsqrt.pop %v2989
    %v2992 = vmul.f32 %v2978, %v2990
    %v2993 = vmul.f32 %v2979, %v2991
    %v2994 = vlaneseq
    %v2995 = vshrl.u32 %v2994, 7
    %v2996 = vsub.s32 4, %v2995
    %v2997 = vrot.slane %v1720, %v2996
    %v2998 = vmul.f32 %v2992, %v2997
    %v2999 = vmul.f32 %v2993, %v2997
    %v3000 = vlaneseq
    %v3001 = vshrl.u32 %v3000, 7
    %v3002 = vsub.s32 5, %v3001
    %v3003 = vrot.slane %v1720, %v3002
    %v3004 = vadd.f32 %v2998, %v3003
    %v3005 = vadd.f32 %v2999, %v3003
    %v3006 = vpack.c.bf16 %v3005, %v3004
    %v3007 = vlaneseq
    %v3008 = vshrl.u32 %v3007, 7
    %v3009 = vsub.s32 6, %v3008
    %v3010 = vrot.slane %v1720, %v3009
    %v3011 = vunpack.c.h.b16 %v1687
    %v3012 = vunpack.c.h.b16 %v1689
    %v3013 = vunpack.c.h.b16 %v1691
    %v3014 = vunpack.c.h.b16 %v1693
    %v3015 = vunpack.c.h.b16 %v1695
    %v3016 = vunpack.c.h.b16 %v1697
    %v3017 = vunpack.c.h.b16 %v1699
    %v3018 = vunpack.c.h.b16 %v1701
    %v3019 = vunpack.c.h.b16 %v1703
    %v3020 = vunpack.c.h.b16 %v1705
    %v3021 = vunpack.c.h.b16 %v1707
    %v3022 = vunpack.c.h.b16 %v1709
    %v3023 = vunpack.c.h.b16 %v1711
    %v3024 = vunpack.c.h.b16 %v1713
    %v3025 = vunpack.c.h.b16 %v1715
    %v3026 = vunpack.c.h.b16 %v1717
    %v3027 = vpack.c.b16 %v3012, %v3011
    %v3028 = vpack.c.b16 %v3014, %v3013
    %v3029 = vpack.c.b16 %v3016, %v3015
    %v3030 = vpack.c.b16 %v3018, %v3017
    %v3031 = vpack.c.b16 %v3020, %v3019
    %v3032 = vpack.c.b16 %v3022, %v3021
    %v3033 = vpack.c.b16 %v3024, %v3023
    %v3034 = vpack.c.b16 %v3026, %v3025
    %3043 = vmatprep.subr.bf16.mxu0 0
    %3044 = vmatpush1.bf16.msra.mxu0 %v3027
    %3045 = vmatprep.subr.bf16.mxu0 0
    %3046 = vmatpush1.bf16.msra.mxu0 %v3028
    %3047 = vmatprep.subr.bf16.mxu0 0
    %3048 = vmatpush1.bf16.msra.mxu0 %v3029
    %3049 = vmatprep.subr.bf16.mxu0 0
    %3050 = vmatpush1.bf16.msra.mxu0 %v3030
    %3051 = vmatprep.subr.bf16.mxu0 0
    %3052 = vmatpush1.bf16.msra.mxu0 %v3031
    %3053 = vmatprep.subr.bf16.mxu0 0
    %3054 = vmatpush1.bf16.msra.mxu0 %v3032
    %3055 = vmatprep.subr.bf16.mxu0 0
    %3056 = vmatpush1.bf16.msra.mxu0 %v3033
    %3057 = vmatprep.subr.bf16.mxu0 0
    %3058 = vmatpush1.bf16.msra.mxu0 %v3034
    %3059 = vmatprep.subr.bf16.mxu0 0
    %3060 = vmatpush1.bf16.msra.mxu0 0
    %3061 = vmatprep.subr.bf16.mxu0 0
    %3062 = vmatpush1.bf16.msra.mxu0 0
    %3063 = vmatprep.subr.bf16.mxu0 0
    %3064 = vmatpush1.bf16.msra.mxu0 0
    %3065 = vmatprep.subr.bf16.mxu0 0
    %3066 = vmatpush1.bf16.msra.mxu0 0
    %3067 = vmatprep.subr.bf16.mxu0 0
    %3068 = vmatpush1.bf16.msra.mxu0 0
    %3069 = vmatprep.subr.bf16.mxu0 0
    %3070 = vmatpush1.bf16.msra.mxu0 0
    %3071 = vmatprep.subr.bf16.mxu0 0
    %3072 = vmatpush1.bf16.msra.mxu0 0
    %3073 = vmatprep.subr.bf16.mxu0 0
    %3074 = vmatpush1.bf16.msra.mxu0 0
    %3075 = vmatprep.mubr.bf16.mxu0 0
    %3076 = vmatmul.mubr.bf16.gmra.mrb[0].mxu0 %v3006
    %v3077 = vpop.f32.mrb[0].mxu0
    %v3078 = vadd.f32 %v3010, %v3077
    %v3079 = vpop.f32.mrb[0].mxu0
    %v3080 = vpop.f32.mrb[0].mxu0
    %v3081 = vadd.f32 %v3010, %v3080
    %v3082 = vpop.f32.mrb[0].mxu0
    %3083 = vdwg.mxu0
    %v3084 = vmax.f32 %v3078, 0.0
    %v3085 = vmax.f32 %v3081, 0.0
    %v3086 = vpack.c.bf16 %v3085, %v3084
    %v3087 = vlaneseq
    %v3088 = vshrl.u32 %v3087, 7
    %v3089 = vsub.s32 7, %v3088
    %v3090 = vrot.slane %v1720, %v3089
    %v3107 = vunpack.c.l.b16 %v1688
    %v3108 = vunpack.c.l.b16 %v1690
    %v3109 = vunpack.c.l.b16 %v1692
    %v3110 = vunpack.c.l.b16 %v1694
    %v3111 = vunpack.c.l.b16 %v1696
    %v3112 = vunpack.c.l.b16 %v1698
    %v3113 = vunpack.c.l.b16 %v1700
    %v3114 = vunpack.c.l.b16 %v1702
    %v3115 = vunpack.c.l.b16 %v1704
    %v3116 = vunpack.c.l.b16 %v1706
    %v3117 = vunpack.c.l.b16 %v1708
    %v3118 = vunpack.c.l.b16 %v1710
    %v3119 = vunpack.c.l.b16 %v1712
    %v3120 = vunpack.c.l.b16 %v1714
    %v3121 = vunpack.c.l.b16 %v1716
    %v3122 = vunpack.c.l.b16 %v1718
    %v3123 = vpack.c.b16 %v3108, %v3107
    %v3124 = vpack.c.b16 %v3110, %v3109
    %v3125 = vpack.c.b16 %v3112, %v3111
    %v3126 = vpack.c.b16 %v3114, %v3113
    %v3127 = vpack.c.b16 %v3116, %v3115
    %v3128 = vpack.c.b16 %v3118, %v3117
    %v3129 = vpack.c.b16 %v3120, %v3119
    %v3130 = vpack.c.b16 %v3122, %v3121
    %3139 = vmatprep.subr.bf16.mxu0 0
    %3140 = vmatpush1.bf16.msra.mxu0 %v3123
    %3141 = vmatprep.subr.bf16.mxu0 0
    %3142 = vmatpush1.bf16.msra.mxu0 %v3124
    %3143 = vmatprep.subr.bf16.mxu0 0
    %3144 = vmatpush1.bf16.msra.mxu0 %v3125
    %3145 = vmatprep.subr.bf16.mxu0 0
    %3146 = vmatpush1.bf16.msra.mxu0 %v3126
    %3147 = vmatprep.subr.bf16.mxu0 0
    %3148 = vmatpush1.bf16.msra.mxu0 %v3127
    %3149 = vmatprep.subr.bf16.mxu0 0
    %3150 = vmatpush1.bf16.msra.mxu0 %v3128
    %3151 = vmatprep.subr.bf16.mxu0 0
    %3152 = vmatpush1.bf16.msra.mxu0 %v3129
    %3153 = vmatprep.subr.bf16.mxu0 0
    %3154 = vmatpush1.bf16.msra.mxu0 %v3130
    %3155 = vmatprep.subr.bf16.mxu0 0
    %3156 = vmatpush1.bf16.msra.mxu0 0
    %3157 = vmatprep.subr.bf16.mxu0 0
    %3158 = vmatpush1.bf16.msra.mxu0 0
    %3159 = vmatprep.subr.bf16.mxu0 0
    %3160 = vmatpush1.bf16.msra.mxu0 0
    %3161 = vmatprep.subr.bf16.mxu0 0
    %3162 = vmatpush1.bf16.msra.mxu0 0
    %3163 = vmatprep.subr.bf16.mxu0 0
    %3164 = vmatpush1.bf16.msra.mxu0 0
    %3165 = vmatprep.subr.bf16.mxu0 0
    %3166 = vmatpush1.bf16.msra.mxu0 0
    %3167 = vmatprep.subr.bf16.mxu0 0
    %3168 = vmatpush1.bf16.msra.mxu0 0
    %3169 = vmatprep.subr.bf16.mxu0 0
    %3170 = vmatpush1.bf16.msra.mxu0 0
    %3171 = vmatprep.mubr.bf16.mxu0 0
    %3172 = vmatmul.mubr.bf16.gmra.mrb[0].mxu0 %v3086
    %v3173 = vpop.f32.mrb[0].mxu0
    %v3174 = vadd.f32 %v3090, %v3173
    %v3175 = vpop.f32.mrb[0].mxu0
    %v3176 = vpop.f32.mrb[0].mxu0
    %v3177 = vadd.f32 %v3090, %v3176
    %v3178 = vpop.f32.mrb[0].mxu0
    %3179 = vdwg.mxu0
    %v3180 = vadd.f32 %v3174, %v3004
    %v3181 = vadd.f32 %v3177, %v3005
    %v3182 = vmul.f32 %v3180, %v2967
    %v3183 = vmul.f32 %v3181, %v2967
    %3184 = vadd.xlane.f32.xlu0 %v3182
    %v3185 = vpop.xlane.xlu0 %3184
    %3186 = vadd.xlane.f32.xlu0 %v3183
    %v3187 = vpop.xlane.xlu0 %3186
    %v3188 = vmul.f32 %v3185, 0.00862069
    %v3189 = vmul.f32 %v3187, 0.00862069
    %v3190 = vsub.f32 %v3182, %v3188
    %v3191 = vsub.f32 %v3183, %v3189
    %v3192 = vmul.f32 %v3190, %v2967
    %v3193 = vmul.f32 %v3191, %v2967
    %v3194 = vmul.f32 %v3192, %v3192
    %v3195 = vmul.f32 %v3193, %v3193
    %3196 = vadd.xlane.f32.xlu0 %v3194
    %v3197 = vpop.xlane.xlu0 %3196
    %3198 = vadd.xlane.f32.xlu0 %v3195
    %v3199 = vpop.xlane.xlu0 %3198
    %v3200 = vmul.f32 %v3197, 0.00862069
    %v3201 = vmul.f32 %v3199, 0.00862069
    %v3202 = vadd.f32 %v3200, 1e-05
    %v3203 = vadd.f32 %v3201, 1e-05
    %v3204 = vrsqrt.pop %v3202
    %v3205 = vrsqrt.pop %v3203
    %v3206 = vmul.f32 %v3192, %v3204
    %v3207 = vmul.f32 %v3193, %v3205
    %v3208 = vlaneseq
    %v3209 = vshrl.u32 %v3208, 7
    %v3210 = vsub.s32 0, %v3209
    %v3211 = vrot.slane %v1721, %v3210
    %v3212 = vmul.f32 %v3206, %v3211
    %v3213 = vmul.f32 %v3207, %v3211
    %v3214 = vlaneseq
    %v3215 = vshrl.u32 %v3214, 7
    %v3216 = vsub.s32 1, %v3215
    %v3217 = vrot.slane %v1721, %v3216
    %v3218 = vadd.f32 %v3212, %v3217
    %v3219 = vadd.f32 %v3213, %v3217
    %3220 = vst.msk [vmem:[#allocation12] sm:$0xff] %vm78, %v3218
    %3221 = vst.msk [vmem:[#allocation12 + $0x8] sm:$0xff] %vm78, %v3219
    // Predicated region
    $region34: #{tpu_custom_call.1} parent=1 // pred_check
      _
    $region35: #{tpu_custom_call.1} parent=1 // pred_check_branch
      %3223 = sbr.rel (0) target = $region37
    $region36: #{tpu_custom_call.1} parent=1 // pred_region
      %s3225 = ssub.s32 256, 256
      %3226 = vsyncadd [#allocation6], %s3225
      %s3227 = sshll.u32 [#allocation12], 4
      %s3228 = int_to_ptr.vmem [resolvable:$true] %s3227
      %3233 = dma.vmem_to_hbm [thread:$0]  %s3228, 256, %s4, [#allocation6], 128, 128, 8
    $region37: #{tpu_custom_call.1} parent=1 // pred_fallthru
      _
    // Predicated region
    $region38: #{tpu_custom_call.1} parent=1 // pred_check
      _
    $region39: #{tpu_custom_call.1} parent=1 // pred_check_branch
      %3235 = sbr.rel (0) target = $region41
    $region40: #{tpu_custom_call.1} parent=1 // pred_region
      %3236 = dma.done [#allocation6], 256
    $region41: #{tpu_custom_call.1} parent=1 // pred_fallthru
      _
    %3237 = vsyncpa [#allocation5], 1
    %3238 = vsyncpa [#allocation8], 1
    %3239 = vsyncpa [#allocation11], 1
    %3240 = vsyncpa [#allocation6], 1

</llo_original>
